<compile_context>
chip_gen: v7x
topology: tpu7x:2x2x1
jax: 0.10.0
libtpu: 0.0.40
codegen_flags: <defaults>
</compile_context>

<pallas_src>
import math

import jax
import jax.numpy as jnp
from jax.experimental import pallas as pl
from jax.experimental.pallas import tpu as pltpu

# ----------------------------- model config (small) -------------------------
B = 2            # batch
C = 3            # image channels
IMG = 16         # image size
P = 8            # patch size
GH = GW = IMG // P
N_PATCH = GH * GW          # 4
T = N_PATCH + 1            # tokens incl. CLS = 5
D = 32                     # hidden size
H = 2                      # attention heads
DH = D // H                # head dim = 16
I = 64                     # intermediate (MLP) size
L = 2                      # encoder layers
NUM_LABELS = 10
LN_EPS = 1e-12             # HF ViT layer_norm_eps

PAD_ROWS = 8               # padded logits rows   (>= B,  multiple of 8)
PAD_LABELS = 128           # padded logits lanes  (>= NUM_LABELS, multiple of 128)


# ------------------------------ fused ViT kernel -----------------------------
def _vit_kernel(patches_ref, pw_ref, pb_ref, cls_ref, pos_ref,
                ln1g_ref, ln1b_ref, wqkv_ref, bqkv_ref, wo_ref, bo_ref,
                ln2g_ref, ln2b_ref, w1_ref, b1_ref, w2_ref, b2_ref,
                lnfg_ref, lnfb_ref, cw_ref, cb_ref,
                o_ref, sbuf, cbuf):
    f32 = jnp.float32
    inv_sqrt2 = 1.0 / math.sqrt(2.0)
    scale = 1.0 / math.sqrt(DH)

    def layernorm(x, g, b):
        mu = jnp.mean(x, axis=-1, keepdims=True)
        d = x - mu
        var = jnp.mean(d * d, axis=-1, keepdims=True)
        return d * jax.lax.rsqrt(var + LN_EPS) * g + b

    # ---- patch embedding (conv with kernel == stride  ->  matmul) ----
    emb = jnp.dot(patches_ref[...], pw_ref[...],
                  preferred_element_type=f32) + pb_ref[...]          # (B*NP, D)
    cls_tok = cls_ref[...]                                           # (1, D)
    pos = pos_ref[...]                                               # (T, D)
    for b in range(B):
        sbuf[b * T:b * T + 1, :] = cls_tok + pos[0:1, :]
        sbuf[b * T + 1:(b + 1) * T, :] = (
            emb[b * N_PATCH:(b + 1) * N_PATCH, :] + pos[1:T, :])
    h = sbuf[...]                                                    # (B*T, D)

    # ---- encoder layers (statically unrolled, weights stacked on L axis) ----
    for l in range(L):
        # MHSA block (pre-LN), fused QKV matmul
        x1 = layernorm(h, ln1g_ref[l], ln1b_ref[l])
        qkv = jnp.dot(x1, wqkv_ref[l], preferred_element_type=f32) + bqkv_ref[l]
        wo_l = wo_ref[l]                                             # (D, D)
        bo_l = bo_ref[l]                                             # (1, D)
        for b in range(B):
            r0, r1 = b * T, (b + 1) * T
            acc = bo_l
            for hd in range(H):
                c0, c1 = hd * DH, (hd + 1) * DH
                qh = qkv[r0:r1, c0:c1]                               # (T, DH)
                kh = qkv[r0:r1, D + c0:D + c1]
                vh = qkv[r0:r1, 2 * D + c0:2 * D + c1]
                s = jax.lax.dot_general(
                    qh, kh, (((1,), (1,)), ((), ())),
                    preferred_element_type=f32) * scale              # (T, T)
                s = s - jnp.max(s, axis=-1, keepdims=True)
                p = jnp.exp(s)
                p = p * pl.reciprocal(jnp.sum(p, axis=-1, keepdims=True),
                                      approx=False)
                ctx = jnp.dot(p, vh, preferred_element_type=f32)     # (T, DH)
                # fused per-head output projection (sum_h == concat @ wo)
                acc = acc + jnp.dot(ctx, wo_l[c0:c1, :],
                                    preferred_element_type=f32)
            sbuf[r0:r1, :] = acc
        h = h + sbuf[...]                                            # residual 1

        # MLP block (pre-LN, exact erf-GELU to match HF hidden_act="gelu")
        x2 = layernorm(h, ln2g_ref[l], ln2b_ref[l])
        m = jnp.dot(x2, w1_ref[l], preferred_element_type=f32) + b1_ref[l]
        m = 0.5 * m * (1.0 + jax.lax.erf(m * inv_sqrt2))
        m = jnp.dot(m, w2_ref[l], preferred_element_type=f32) + b2_ref[l]
        h = h + m                                                    # residual 2

    # ---- final LN + classifier head on CLS tokens ----
    h = layernorm(h, lnfg_ref[...], lnfb_ref[...])
    cbuf[...] = jnp.zeros_like(cbuf)
    for b in range(B):
        cbuf[b:b + 1, :] = h[b * T:b * T + 1, :]
    # lane-dense (8, 128) unmasked store; wrapper slices to (B, NUM_LABELS)
    o_ref[...] = jnp.dot(cbuf[...], cw_ref[...],
                         preferred_element_type=f32) + cb_ref[...]


# --------------------------- pallas_call wrapper ------------------------------
def _spec(shape):
    # whole-array block (block shape == full array dims)
    nd = len(shape)
    return pl.BlockSpec(shape, lambda i, nd=nd: (0,) * nd)


def vit_forward(x_nchw, params):
    # host-side layout only: extract non-overlapping patches as matmul rows
    patches = (x_nchw.reshape(B, C, GH, P, GW, P)
               .transpose(0, 2, 4, 1, 3, 5)             # (B, gh, gw, C, P, P)
               .reshape(B * N_PATCH, C * P * P))

    args = (patches,
            params["patch_w"], params["patch_b"], params["cls"], params["pos"],
            params["ln1_g"], params["ln1_b"], params["wqkv"], params["bqkv"],
            params["wo"], params["bo"], params["ln2_g"], params["ln2_b"],
            params["w_fc1"], params["b_fc1"], params["w_fc2"], params["b_fc2"],
            params["ln_f_g"], params["ln_f_b"], params["cls_w"], params["cls_b"])

    out = pl.pallas_call(
        _vit_kernel,
        grid=(1,),
        in_specs=[_spec(a.shape) for a in args],
        out_specs=_spec((PAD_ROWS, PAD_LABELS)),
        out_shape=jax.ShapeDtypeStruct((PAD_ROWS, PAD_LABELS), jnp.float32),
        scratch_shapes=[pltpu.VMEM((B * T, D), jnp.float32),     # token/ctx buf
                        pltpu.VMEM((PAD_ROWS, D), jnp.float32)], # CLS rows buf
        compiler_params=pltpu.CompilerParams(
            dimension_semantics=("arbitrary",)),
    )(*args)
    return out[:B, :NUM_LABELS]


# ------------------------------ parameter setup ------------------------------
def init_params(key):
    ks = iter(jax.random.split(key, 64))

    def nrm(shape):
        return jax.random.normal(next(ks), shape, jnp.float32) * 0.02

    cls_w = nrm((D, NUM_LABELS))
    params = {
        # conv patch embedding (D, C, P, P) flattened to (C*P*P, D) matmul weight
        "patch_w": nrm((C * P * P, D)),
        "patch_b": jnp.zeros((1, D), jnp.float32),
        "cls": nrm((1, D)),
        "pos": nrm((T, D)),
        "ln_f_g": jnp.ones((1, D), jnp.float32),
        "ln_f_b": jnp.zeros((1, D), jnp.float32),
        # classifier padded lane-dense to 128 labels (extra cols are zero)
        "cls_w": jnp.zeros((D, PAD_LABELS), jnp.float32).at[:, :NUM_LABELS].set(cls_w),
        "cls_b": jnp.zeros((1, PAD_LABELS), jnp.float32),
        # per-layer weights stacked on a leading L axis; QKV merged into (D, 3D)
        "ln1_g": jnp.ones((L, 1, D), jnp.float32),
        "ln1_b": jnp.zeros((L, 1, D), jnp.float32),
        "wqkv": jnp.stack([nrm((D, 3 * D)) for _ in range(L)], axis=0),
        "bqkv": jnp.zeros((L, 1, 3 * D), jnp.float32),
        "wo": jnp.stack([nrm((D, D)) for _ in range(L)], axis=0),
        "bo": jnp.zeros((L, 1, D), jnp.float32),
        "ln2_g": jnp.ones((L, 1, D), jnp.float32),
        "ln2_b": jnp.zeros((L, 1, D), jnp.float32),
        "w_fc1": jnp.stack([nrm((D, I)) for _ in range(L)], axis=0),
        "b_fc1": jnp.zeros((L, 1, I), jnp.float32),
        "w_fc2": jnp.stack([nrm((I, D)) for _ in range(L)], axis=0),
        "b_fc2": jnp.zeros((L, 1, D), jnp.float32),
    }
    return params


# ------------------------- pure-JAX reference (checking) ----------------------
def vit_forward_ref(x_nchw, params):
    patches = (x_nchw.reshape(B, C, GH, P, GW, P)
               .transpose(0, 2, 4, 1, 3, 5)
               .reshape(B, N_PATCH, C * P * P))
    emb = patches @ params["patch_w"] + params["patch_b"]           # (B, NP, D)
    cls = jnp.broadcast_to(params["cls"][None], (B, 1, D))
    h = jnp.concatenate([cls, emb], axis=1) + params["pos"][None]   # (B, T, D)

    def ln(x, g, b):
        mu = x.mean(-1, keepdims=True)
        var = ((x - mu) ** 2).mean(-1, keepdims=True)
        return (x - mu) / jnp.sqrt(var + LN_EPS) * g + b

    for l in range(L):
        x1 = ln(h, params["ln1_g"][l], params["ln1_b"][l])
        qkv = x1 @ params["wqkv"][l] + params["bqkv"][l]
        q, k, v = jnp.split(qkv, 3, axis=-1)
        q = q.reshape(B, T, H, DH).transpose(0, 2, 1, 3)
        k = k.reshape(B, T, H, DH).transpose(0, 2, 1, 3)
        v = v.reshape(B, T, H, DH).transpose(0, 2, 1, 3)
        s = (q @ k.transpose(0, 1, 3, 2)) / math.sqrt(DH)
        p = jax.nn.softmax(s, axis=-1)
        ctx = (p @ v).transpose(0, 2, 1, 3).reshape(B, T, D)
        h = h + ctx @ params["wo"][l] + params["bo"][l]
        x2 = ln(h, params["ln2_g"][l], params["ln2_b"][l])
        m = x2 @ params["w_fc1"][l] + params["b_fc1"][l]
        m = 0.5 * m * (1.0 + jax.lax.erf(m / math.sqrt(2.0)))
        h = h + m @ params["w_fc2"][l] + params["b_fc2"][l]

    h = ln(h, params["ln_f_g"], params["ln_f_b"])
    return (h[:, 0, :] @ params["cls_w"][:, :NUM_LABELS]
            + params["cls_b"][0, :NUM_LABELS])


# ----------------------------------- main -------------------------------------
if __name__ == "__main__":
    x = jax.random.normal(jax.random.PRNGKey(0), (B, C, IMG, IMG), jnp.float32)
    params = init_params(jax.random.PRNGKey(1))

    logits = jax.jit(vit_forward)(x, params)
    logits = jax.block_until_ready(logits)
    assert logits.shape == (B, NUM_LABELS)
    assert bool(jnp.all(jnp.isfinite(logits)))

    ref = jax.block_until_ready(jax.jit(vit_forward_ref)(x, params))
    assert bool(jnp.allclose(logits, ref, atol=1e-4, rtol=1e-4)), (
        "mismatch vs reference", float(jnp.max(jnp.abs(logits - ref))))

    print("KERNEL_OK")
</pallas_src>

<mosaic_0001>
module attributes {stable_mosaic.version = 11 : i64} {
  func.func @_vit_kernel(%arg0: i32, %arg1: memref<8x192xf32, #tpu.memory_space<vmem>>, %arg2: memref<192x32xf32, #tpu.memory_space<vmem>>, %arg3: memref<1x32xf32, #tpu.memory_space<vmem>>, %arg4: memref<1x32xf32, #tpu.memory_space<vmem>>, %arg5: memref<5x32xf32, #tpu.memory_space<vmem>>, %arg6: memref<2x1x32xf32, #tpu.memory_space<vmem>>, %arg7: memref<2x1x32xf32, #tpu.memory_space<vmem>>, %arg8: memref<2x32x96xf32, #tpu.memory_space<vmem>>, %arg9: memref<2x1x96xf32, #tpu.memory_space<vmem>>, %arg10: memref<2x32x32xf32, #tpu.memory_space<vmem>>, %arg11: memref<2x1x32xf32, #tpu.memory_space<vmem>>, %arg12: memref<2x1x32xf32, #tpu.memory_space<vmem>>, %arg13: memref<2x1x32xf32, #tpu.memory_space<vmem>>, %arg14: memref<2x32x64xf32, #tpu.memory_space<vmem>>, %arg15: memref<2x1x64xf32, #tpu.memory_space<vmem>>, %arg16: memref<2x64x32xf32, #tpu.memory_space<vmem>>, %arg17: memref<2x1x32xf32, #tpu.memory_space<vmem>>, %arg18: memref<1x32xf32, #tpu.memory_space<vmem>>, %arg19: memref<1x32xf32, #tpu.memory_space<vmem>>, %arg20: memref<32x128xf32, #tpu.memory_space<vmem>>, %arg21: memref<1x128xf32, #tpu.memory_space<vmem>>, %arg22: memref<8x128xf32, #tpu.memory_space<vmem>>, %arg23: memref<10x32xf32, #tpu.memory_space<vmem>>, %arg24: memref<8x32xf32, #tpu.memory_space<vmem>>) attributes {dimension_semantics = [#tpu.dimension_semantics<arbitrary>], iteration_bounds = array<i64: 1>, scalar_prefetch = 0 : i64, scratch_operands = 2 : i64, tpu.core_type = #tpu.core_type<tc>, window_params = [{pipeline_mode = #tpu.pipeline_mode<synchronous>, transform_indices = @transform_0, window_bounds = array<i64: 8, 192>}, {pipeline_mode = #tpu.pipeline_mode<synchronous>, transform_indices = @transform_1, window_bounds = array<i64: 192, 32>}, {pipeline_mode = #tpu.pipeline_mode<synchronous>, transform_indices = @transform_2, window_bounds = array<i64: 1, 32>}, {pipeline_mode = #tpu.pipeline_mode<synchronous>, transform_indices = @transform_3, window_bounds = array<i64: 1, 32>}, {pipeline_mode = #tpu.pipeline_mode<synchronous>, transform_indices = @transform_4, window_bounds = array<i64: 5, 32>}, {pipeline_mode = #tpu.pipeline_mode<synchronous>, transform_indices = @transform_5, window_bounds = array<i64: 2, 1, 32>}, {pipeline_mode = #tpu.pipeline_mode<synchronous>, transform_indices = @transform_6, window_bounds = array<i64: 2, 1, 32>}, {pipeline_mode = #tpu.pipeline_mode<synchronous>, transform_indices = @transform_7, window_bounds = array<i64: 2, 32, 96>}, {pipeline_mode = #tpu.pipeline_mode<synchronous>, transform_indices = @transform_8, window_bounds = array<i64: 2, 1, 96>}, {pipeline_mode = #tpu.pipeline_mode<synchronous>, transform_indices = @transform_9, window_bounds = array<i64: 2, 32, 32>}, {pipeline_mode = #tpu.pipeline_mode<synchronous>, transform_indices = @transform_10, window_bounds = array<i64: 2, 1, 32>}, {pipeline_mode = #tpu.pipeline_mode<synchronous>, transform_indices = @transform_11, window_bounds = array<i64: 2, 1, 32>}, {pipeline_mode = #tpu.pipeline_mode<synchronous>, transform_indices = @transform_12, window_bounds = array<i64: 2, 1, 32>}, {pipeline_mode = #tpu.pipeline_mode<synchronous>, transform_indices = @transform_13, window_bounds = array<i64: 2, 32, 64>}, {pipeline_mode = #tpu.pipeline_mode<synchronous>, transform_indices = @transform_14, window_bounds = array<i64: 2, 1, 64>}, {pipeline_mode = #tpu.pipeline_mode<synchronous>, transform_indices = @transform_15, window_bounds = array<i64: 2, 64, 32>}, {pipeline_mode = #tpu.pipeline_mode<synchronous>, transform_indices = @transform_16, window_bounds = array<i64: 2, 1, 32>}, {pipeline_mode = #tpu.pipeline_mode<synchronous>, transform_indices = @transform_17, window_bounds = array<i64: 1, 32>}, {pipeline_mode = #tpu.pipeline_mode<synchronous>, transform_indices = @transform_18, window_bounds = array<i64: 1, 32>}, {pipeline_mode = #tpu.pipeline_mode<synchronous>, transform_indices = @transform_19, window_bounds = array<i64: 32, 128>}, {pipeline_mode = #tpu.pipeline_mode<synchronous>, transform_indices = @transform_20, window_bounds = array<i64: 1, 128>}, {pipeline_mode = #tpu.pipeline_mode<synchronous>, transform_indices = @transform_21, window_bounds = array<i64: 8, 128>}]} {
    %c0 = arith.constant 0 : index
    %c0_0 = arith.constant 0 : index
    %0 = vector.load %arg1[%c0, %c0_0] : memref<8x192xf32, #tpu.memory_space<vmem>>, vector<8x192xf32>
    %c0_1 = arith.constant 0 : index
    %c0_2 = arith.constant 0 : index
    %1 = vector.load %arg2[%c0_1, %c0_2] : memref<192x32xf32, #tpu.memory_space<vmem>>, vector<192x32xf32>
    %cst = arith.constant dense<0.000000e+00> : vector<8x32xf32>
    %2 = tpu.matmul %0, %1, %cst {dimension_numbers = #tpu.dot_dimension_numbers<[1], [0], [0], [1], [0, 0, 1, 1], [], []>} : vector<8x192xf32>, vector<192x32xf32>, vector<8x32xf32> -> vector<8x32xf32>
    %c0_3 = arith.constant 0 : index
    %c0_4 = arith.constant 0 : index
    %3 = vector.load %arg3[%c0_3, %c0_4] : memref<1x32xf32, #tpu.memory_space<vmem>>, vector<1x32xf32>
    %4 = vector.broadcast %3 : vector<1x32xf32> to vector<8x32xf32>
    %5 = arith.addf %2, %4 : vector<8x32xf32>
    %c0_5 = arith.constant 0 : index
    %c0_6 = arith.constant 0 : index
    %6 = vector.load %arg4[%c0_5, %c0_6] : memref<1x32xf32, #tpu.memory_space<vmem>>, vector<1x32xf32>
    %c0_7 = arith.constant 0 : index
    %c0_8 = arith.constant 0 : index
    %7 = vector.load %arg5[%c0_7, %c0_8] : memref<5x32xf32, #tpu.memory_space<vmem>>, vector<5x32xf32>
    %8 = vector.extract_strided_slice %7 {offsets = [0, 0], sizes = [1, 32], strides = [1, 1]} : vector<5x32xf32> to vector<1x32xf32>
    %9 = arith.addf %6, %8 : vector<1x32xf32>
    %c0_9 = arith.constant 0 : index
    %c0_10 = arith.constant 0 : index
    %10 = vector.load %arg23[%c0_9, %c0_10] : memref<10x32xf32, #tpu.memory_space<vmem>>, vector<1x32xf32>
    tpu.vector_store %arg23[%c0_9, %c0_10], %9 {strides = array<i32>} : memref<10x32xf32, #tpu.memory_space<vmem>>, vector<1x32xf32>,
    %11 = vector.extract_strided_slice %5 {offsets = [0, 0], sizes = [4, 32], strides = [1, 1]} : vector<8x32xf32> to vector<4x32xf32>
    %12 = vector.extract_strided_slice %7 {offsets = [1, 0], sizes = [4, 32], strides = [1, 1]} : vector<5x32xf32> to vector<4x32xf32>
    %13 = arith.addf %11, %12 : vector<4x32xf32>
    %c1 = arith.constant 1 : index
    %c0_11 = arith.constant 0 : index
    %14 = vector.load %arg23[%c1, %c0_11] : memref<10x32xf32, #tpu.memory_space<vmem>>, vector<4x32xf32>
    tpu.vector_store %arg23[%c1, %c0_11], %13 {strides = array<i32>} : memref<10x32xf32, #tpu.memory_space<vmem>>, vector<4x32xf32>,
    %15 = vector.extract_strided_slice %7 {offsets = [0, 0], sizes = [1, 32], strides = [1, 1]} : vector<5x32xf32> to vector<1x32xf32>
    %16 = arith.addf %6, %15 : vector<1x32xf32>
    %c5 = arith.constant 5 : index
    %c0_12 = arith.constant 0 : index
    %17 = vector.load %arg23[%c5, %c0_12] : memref<10x32xf32, #tpu.memory_space<vmem>>, vector<1x32xf32>
    tpu.vector_store %arg23[%c5, %c0_12], %16 {strides = array<i32>} : memref<10x32xf32, #tpu.memory_space<vmem>>, vector<1x32xf32>,
    %18 = vector.extract_strided_slice %5 {offsets = [4, 0], sizes = [4, 32], strides = [1, 1]} : vector<8x32xf32> to vector<4x32xf32>
    %19 = vector.extract_strided_slice %7 {offsets = [1, 0], sizes = [4, 32], strides = [1, 1]} : vector<5x32xf32> to vector<4x32xf32>
    %20 = arith.addf %18, %19 : vector<4x32xf32>
    %c6 = arith.constant 6 : index
    %c0_13 = arith.constant 0 : index
    %21 = vector.load %arg23[%c6, %c0_13] : memref<10x32xf32, #tpu.memory_space<vmem>>, vector<4x32xf32>
    tpu.vector_store %arg23[%c6, %c0_13], %20 {strides = array<i32>} : memref<10x32xf32, #tpu.memory_space<vmem>>, vector<4x32xf32>,
    %c0_14 = arith.constant 0 : index
    %c0_15 = arith.constant 0 : index
    %22 = vector.load %arg23[%c0_14, %c0_15] : memref<10x32xf32, #tpu.memory_space<vmem>>, vector<10x32xf32>
    %c0_16 = arith.constant 0 : index
    %c0_17 = arith.constant 0 : index
    %c0_18 = arith.constant 0 : index
    %23 = vector.load %arg6[%c0_16, %c0_17, %c0_18] : memref<2x1x32xf32, #tpu.memory_space<vmem>>, vector<1x1x32xf32>
    %24 = vector.shape_cast %23 : vector<1x1x32xf32> to vector<1x32xf32>
    %c0_19 = arith.constant 0 : index
    %c0_20 = arith.constant 0 : index
    %c0_21 = arith.constant 0 : index
    %25 = vector.load %arg7[%c0_19, %c0_20, %c0_21] : memref<2x1x32xf32, #tpu.memory_space<vmem>>, vector<1x1x32xf32>
    %26 = vector.shape_cast %25 : vector<1x1x32xf32> to vector<1x32xf32>
    %cst_22 = arith.constant dense<0.000000e+00> : vector<10xf32>
    %27 = vector.multi_reduction <add>, %22, %cst_22 [1] : vector<10x32xf32> to vector<10xf32>
    %28 = vector.shape_cast %27 : vector<10xf32> to vector<10x1xf32>
    %cst_23 = arith.constant 3.200000e+01 : f32
    %29 = vector.broadcast %cst_23 : f32 to vector<10x1xf32>
    %30 = arith.divf %28, %29 : vector<10x1xf32>
    %31 = vector.broadcast %30 : vector<10x1xf32> to vector<10x32xf32>
    %32 = arith.subf %22, %31 : vector<10x32xf32>
    %33 = arith.mulf %32, %32 : vector<10x32xf32>
    %cst_24 = arith.constant dense<0.000000e+00> : vector<10xf32>
    %34 = vector.multi_reduction <add>, %33, %cst_24 [1] : vector<10x32xf32> to vector<10xf32>
    %35 = vector.shape_cast %34 : vector<10xf32> to vector<10x1xf32>
    %cst_25 = arith.constant 3.200000e+01 : f32
    %36 = vector.broadcast %cst_25 : f32 to vector<10x1xf32>
    %37 = arith.divf %35, %36 : vector<10x1xf32>
    %cst_26 = arith.constant 9.99999996E-13 : f32
    %38 = vector.broadcast %cst_26 : f32 to vector<10x1xf32>
    %39 = arith.addf %37, %38 : vector<10x1xf32>
    %40 = math.rsqrt %39 : vector<10x1xf32>
    %41 = vector.broadcast %40 : vector<10x1xf32> to vector<10x32xf32>
    %42 = arith.mulf %32, %41 : vector<10x32xf32>
    %43 = vector.broadcast %24 : vector<1x32xf32> to vector<10x32xf32>
    %44 = arith.mulf %42, %43 : vector<10x32xf32>
    %45 = vector.broadcast %26 : vector<1x32xf32> to vector<10x32xf32>
    %46 = arith.addf %44, %45 : vector<10x32xf32>
    %c0_27 = arith.constant 0 : index
    %c0_28 = arith.constant 0 : index
    %c0_29 = arith.constant 0 : index
    %47 = vector.load %arg8[%c0_27, %c0_28, %c0_29] : memref<2x32x96xf32, #tpu.memory_space<vmem>>, vector<1x32x96xf32>
    %48 = vector.shape_cast %47 : vector<1x32x96xf32> to vector<32x96xf32>
    %cst_30 = arith.constant dense<0.000000e+00> : vector<10x96xf32>
    %49 = tpu.matmul %46, %48, %cst_30 {dimension_numbers = #tpu.dot_dimension_numbers<[1], [0], [0], [1], [0, 0, 1, 1], [], []>} : vector<10x32xf32>, vector<32x96xf32>, vector<10x96xf32> -> vector<10x96xf32>
    %c0_31 = arith.constant 0 : index
    %c0_32 = arith.constant 0 : index
    %c0_33 = arith.constant 0 : index
    %50 = vector.load %arg9[%c0_31, %c0_32, %c0_33] : memref<2x1x96xf32, #tpu.memory_space<vmem>>, vector<1x1x96xf32>
    %51 = vector.shape_cast %50 : vector<1x1x96xf32> to vector<1x96xf32>
    %52 = vector.broadcast %51 : vector<1x96xf32> to vector<10x96xf32>
    %53 = arith.addf %49, %52 : vector<10x96xf32>
    %c0_34 = arith.constant 0 : index
    %c0_35 = arith.constant 0 : index
    %c0_36 = arith.constant 0 : index
    %54 = vector.load %arg10[%c0_34, %c0_35, %c0_36] : memref<2x32x32xf32, #tpu.memory_space<vmem>>, vector<1x32x32xf32>
    %55 = vector.shape_cast %54 : vector<1x32x32xf32> to vector<32x32xf32>
    %c0_37 = arith.constant 0 : index
    %c0_38 = arith.constant 0 : index
    %c0_39 = arith.constant 0 : index
    %56 = vector.load %arg11[%c0_37, %c0_38, %c0_39] : memref<2x1x32xf32, #tpu.memory_space<vmem>>, vector<1x1x32xf32>
    %57 = vector.shape_cast %56 : vector<1x1x32xf32> to vector<1x32xf32>
    %58 = vector.extract_strided_slice %53 {offsets = [0, 0], sizes = [5, 16], strides = [1, 1]} : vector<10x96xf32> to vector<5x16xf32>
    %59 = vector.extract_strided_slice %53 {offsets = [0, 32], sizes = [5, 16], strides = [1, 1]} : vector<10x96xf32> to vector<5x16xf32>
    %60 = vector.extract_strided_slice %53 {offsets = [0, 64], sizes = [5, 16], strides = [1, 1]} : vector<10x96xf32> to vector<5x16xf32>
    %cst_40 = arith.constant dense<0.000000e+00> : vector<5x5xf32>
    %61 = tpu.matmul %58, %59, %cst_40 {dimension_numbers = #tpu.dot_dimension_numbers<[1], [1], [0], [0], [0, 0, 1, 0], [], []>} : vector<5x16xf32>, vector<5x16xf32>, vector<5x5xf32> -> vector<5x5xf32>
    %cst_41 = arith.constant 2.500000e-01 : f32
    %62 = vector.broadcast %cst_41 : f32 to vector<5x5xf32>
    %63 = arith.mulf %61, %62 : vector<5x5xf32>
    %cst_42 = arith.constant dense<0xFF800000> : vector<5xf32>
    %64 = vector.multi_reduction <maximumf>, %63, %cst_42 [1] : vector<5x5xf32> to vector<5xf32>
    %65 = vector.shape_cast %64 : vector<5xf32> to vector<5x1xf32>
    %66 = vector.broadcast %65 : vector<5x1xf32> to vector<5x5xf32>
    %67 = arith.subf %63, %66 : vector<5x5xf32>
    %68 = math.exp %67 : vector<5x5xf32>
    %cst_43 = arith.constant dense<0.000000e+00> : vector<5xf32>
    %69 = vector.multi_reduction <add>, %68, %cst_43 [1] : vector<5x5xf32> to vector<5xf32>
    %70 = vector.shape_cast %69 : vector<5xf32> to vector<5x1xf32>
    %71 = tpu.reciprocal %70 : vector<5x1xf32> -> vector<5x1xf32>
    %72 = vector.broadcast %71 : vector<5x1xf32> to vector<5x5xf32>
    %73 = arith.mulf %68, %72 : vector<5x5xf32>
    %cst_44 = arith.constant dense<0.000000e+00> : vector<5x16xf32>
    %74 = tpu.matmul %73, %60, %cst_44 {dimension_numbers = #tpu.dot_dimension_numbers<[1], [0], [0], [1], [0, 0, 1, 1], [], []>} : vector<5x5xf32>, vector<5x16xf32>, vector<5x16xf32> -> vector<5x16xf32>
    %75 = vector.extract_strided_slice %55 {offsets = [0, 0], sizes = [16, 32], strides = [1, 1]} : vector<32x32xf32> to vector<16x32xf32>
    %cst_45 = arith.constant dense<0.000000e+00> : vector<5x32xf32>
    %76 = tpu.matmul %74, %75, %cst_45 {dimension_numbers = #tpu.dot_dimension_numbers<[1], [0], [0], [1], [0, 0, 1, 1], [], []>} : vector<5x16xf32>, vector<16x32xf32>, vector<5x32xf32> -> vector<5x32xf32>
    %77 = vector.broadcast %57 : vector<1x32xf32> to vector<5x32xf32>
    %78 = arith.addf %77, %76 : vector<5x32xf32>
    %79 = vector.extract_strided_slice %53 {offsets = [0, 16], sizes = [5, 16], strides = [1, 1]} : vector<10x96xf32> to vector<5x16xf32>
    %80 = vector.extract_strided_slice %53 {offsets = [0, 48], sizes = [5, 16], strides = [1, 1]} : vector<10x96xf32> to vector<5x16xf32>
    %81 = vector.extract_strided_slice %53 {offsets = [0, 80], sizes = [5, 16], strides = [1, 1]} : vector<10x96xf32> to vector<5x16xf32>
    %cst_46 = arith.constant dense<0.000000e+00> : vector<5x5xf32>
    %82 = tpu.matmul %79, %80, %cst_46 {dimension_numbers = #tpu.dot_dimension_numbers<[1], [1], [0], [0], [0, 0, 1, 0], [], []>} : vector<5x16xf32>, vector<5x16xf32>, vector<5x5xf32> -> vector<5x5xf32>
    %cst_47 = arith.constant 2.500000e-01 : f32
    %83 = vector.broadcast %cst_47 : f32 to vector<5x5xf32>
    %84 = arith.mulf %82, %83 : vector<5x5xf32>
    %cst_48 = arith.constant dense<0xFF800000> : vector<5xf32>
    %85 = vector.multi_reduction <maximumf>, %84, %cst_48 [1] : vector<5x5xf32> to vector<5xf32>
    %86 = vector.shape_cast %85 : vector<5xf32> to vector<5x1xf32>
    %87 = vector.broadcast %86 : vector<5x1xf32> to vector<5x5xf32>
    %88 = arith.subf %84, %87 : vector<5x5xf32>
    %89 = math.exp %88 : vector<5x5xf32>
    %cst_49 = arith.constant dense<0.000000e+00> : vector<5xf32>
    %90 = vector.multi_reduction <add>, %89, %cst_49 [1] : vector<5x5xf32> to vector<5xf32>
    %91 = vector.shape_cast %90 : vector<5xf32> to vector<5x1xf32>
    %92 = tpu.reciprocal %91 : vector<5x1xf32> -> vector<5x1xf32>
    %93 = vector.broadcast %92 : vector<5x1xf32> to vector<5x5xf32>
    %94 = arith.mulf %89, %93 : vector<5x5xf32>
    %cst_50 = arith.constant dense<0.000000e+00> : vector<5x16xf32>
    %95 = tpu.matmul %94, %81, %cst_50 {dimension_numbers = #tpu.dot_dimension_numbers<[1], [0], [0], [1], [0, 0, 1, 1], [], []>} : vector<5x5xf32>, vector<5x16xf32>, vector<5x16xf32> -> vector<5x16xf32>
    %96 = vector.extract_strided_slice %55 {offsets = [16, 0], sizes = [16, 32], strides = [1, 1]} : vector<32x32xf32> to vector<16x32xf32>
    %cst_51 = arith.constant dense<0.000000e+00> : vector<5x32xf32>
    %97 = tpu.matmul %95, %96, %cst_51 {dimension_numbers = #tpu.dot_dimension_numbers<[1], [0], [0], [1], [0, 0, 1, 1], [], []>} : vector<5x16xf32>, vector<16x32xf32>, vector<5x32xf32> -> vector<5x32xf32>
    %98 = arith.addf %78, %97 : vector<5x32xf32>
    %c0_52 = arith.constant 0 : index
    %c0_53 = arith.constant 0 : index
    %99 = vector.load %arg23[%c0_52, %c0_53] : memref<10x32xf32, #tpu.memory_space<vmem>>, vector<5x32xf32>
    tpu.vector_store %arg23[%c0_52, %c0_53], %98 {strides = array<i32>} : memref<10x32xf32, #tpu.memory_space<vmem>>, vector<5x32xf32>,
    %100 = vector.extract_strided_slice %53 {offsets = [5, 0], sizes = [5, 16], strides = [1, 1]} : vector<10x96xf32> to vector<5x16xf32>
    %101 = vector.extract_strided_slice %53 {offsets = [5, 32], sizes = [5, 16], strides = [1, 1]} : vector<10x96xf32> to vector<5x16xf32>
    %102 = vector.extract_strided_slice %53 {offsets = [5, 64], sizes = [5, 16], strides = [1, 1]} : vector<10x96xf32> to vector<5x16xf32>
    %cst_54 = arith.constant dense<0.000000e+00> : vector<5x5xf32>
    %103 = tpu.matmul %100, %101, %cst_54 {dimension_numbers = #tpu.dot_dimension_numbers<[1], [1], [0], [0], [0, 0, 1, 0], [], []>} : vector<5x16xf32>, vector<5x16xf32>, vector<5x5xf32> -> vector<5x5xf32>
    %cst_55 = arith.constant 2.500000e-01 : f32
    %104 = vector.broadcast %cst_55 : f32 to vector<5x5xf32>
    %105 = arith.mulf %103, %104 : vector<5x5xf32>
    %cst_56 = arith.constant dense<0xFF800000> : vector<5xf32>
    %106 = vector.multi_reduction <maximumf>, %105, %cst_56 [1] : vector<5x5xf32> to vector<5xf32>
    %107 = vector.shape_cast %106 : vector<5xf32> to vector<5x1xf32>
    %108 = vector.broadcast %107 : vector<5x1xf32> to vector<5x5xf32>
    %109 = arith.subf %105, %108 : vector<5x5xf32>
    %110 = math.exp %109 : vector<5x5xf32>
    %cst_57 = arith.constant dense<0.000000e+00> : vector<5xf32>
    %111 = vector.multi_reduction <add>, %110, %cst_57 [1] : vector<5x5xf32> to vector<5xf32>
    %112 = vector.shape_cast %111 : vector<5xf32> to vector<5x1xf32>
    %113 = tpu.reciprocal %112 : vector<5x1xf32> -> vector<5x1xf32>
    %114 = vector.broadcast %113 : vector<5x1xf32> to vector<5x5xf32>
    %115 = arith.mulf %110, %114 : vector<5x5xf32>
    %cst_58 = arith.constant dense<0.000000e+00> : vector<5x16xf32>
    %116 = tpu.matmul %115, %102, %cst_58 {dimension_numbers = #tpu.dot_dimension_numbers<[1], [0], [0], [1], [0, 0, 1, 1], [], []>} : vector<5x5xf32>, vector<5x16xf32>, vector<5x16xf32> -> vector<5x16xf32>
    %117 = vector.extract_strided_slice %55 {offsets = [0, 0], sizes = [16, 32], strides = [1, 1]} : vector<32x32xf32> to vector<16x32xf32>
    %cst_59 = arith.constant dense<0.000000e+00> : vector<5x32xf32>
    %118 = tpu.matmul %116, %117, %cst_59 {dimension_numbers = #tpu.dot_dimension_numbers<[1], [0], [0], [1], [0, 0, 1, 1], [], []>} : vector<5x16xf32>, vector<16x32xf32>, vector<5x32xf32> -> vector<5x32xf32>
    %119 = vector.broadcast %57 : vector<1x32xf32> to vector<5x32xf32>
    %120 = arith.addf %119, %118 : vector<5x32xf32>
    %121 = vector.extract_strided_slice %53 {offsets = [5, 16], sizes = [5, 16], strides = [1, 1]} : vector<10x96xf32> to vector<5x16xf32>
    %122 = vector.extract_strided_slice %53 {offsets = [5, 48], sizes = [5, 16], strides = [1, 1]} : vector<10x96xf32> to vector<5x16xf32>
    %123 = vector.extract_strided_slice %53 {offsets = [5, 80], sizes = [5, 16], strides = [1, 1]} : vector<10x96xf32> to vector<5x16xf32>
    %cst_60 = arith.constant dense<0.000000e+00> : vector<5x5xf32>
    %124 = tpu.matmul %121, %122, %cst_60 {dimension_numbers = #tpu.dot_dimension_numbers<[1], [1], [0], [0], [0, 0, 1, 0], [], []>} : vector<5x16xf32>, vector<5x16xf32>, vector<5x5xf32> -> vector<5x5xf32>
    %cst_61 = arith.constant 2.500000e-01 : f32
    %125 = vector.broadcast %cst_61 : f32 to vector<5x5xf32>
    %126 = arith.mulf %124, %125 : vector<5x5xf32>
    %cst_62 = arith.constant dense<0xFF800000> : vector<5xf32>
    %127 = vector.multi_reduction <maximumf>, %126, %cst_62 [1] : vector<5x5xf32> to vector<5xf32>
    %128 = vector.shape_cast %127 : vector<5xf32> to vector<5x1xf32>
    %129 = vector.broadcast %128 : vector<5x1xf32> to vector<5x5xf32>
    %130 = arith.subf %126, %129 : vector<5x5xf32>
    %131 = math.exp %130 : vector<5x5xf32>
    %cst_63 = arith.constant dense<0.000000e+00> : vector<5xf32>
    %132 = vector.multi_reduction <add>, %131, %cst_63 [1] : vector<5x5xf32> to vector<5xf32>
    %133 = vector.shape_cast %132 : vector<5xf32> to vector<5x1xf32>
    %134 = tpu.reciprocal %133 : vector<5x1xf32> -> vector<5x1xf32>
    %135 = vector.broadcast %134 : vector<5x1xf32> to vector<5x5xf32>
    %136 = arith.mulf %131, %135 : vector<5x5xf32>
    %cst_64 = arith.constant dense<0.000000e+00> : vector<5x16xf32>
    %137 = tpu.matmul %136, %123, %cst_64 {dimension_numbers = #tpu.dot_dimension_numbers<[1], [0], [0], [1], [0, 0, 1, 1], [], []>} : vector<5x5xf32>, vector<5x16xf32>, vector<5x16xf32> -> vector<5x16xf32>
    %138 = vector.extract_strided_slice %55 {offsets = [16, 0], sizes = [16, 32], strides = [1, 1]} : vector<32x32xf32> to vector<16x32xf32>
    %cst_65 = arith.constant dense<0.000000e+00> : vector<5x32xf32>
    %139 = tpu.matmul %137, %138, %cst_65 {dimension_numbers = #tpu.dot_dimension_numbers<[1], [0], [0], [1], [0, 0, 1, 1], [], []>} : vector<5x16xf32>, vector<16x32xf32>, vector<5x32xf32> -> vector<5x32xf32>
    %140 = arith.addf %120, %139 : vector<5x32xf32>
    %c5_66 = arith.constant 5 : index
    %c0_67 = arith.constant 0 : index
    %141 = vector.load %arg23[%c5_66, %c0_67] : memref<10x32xf32, #tpu.memory_space<vmem>>, vector<5x32xf32>
    tpu.vector_store %arg23[%c5_66, %c0_67], %140 {strides = array<i32>} : memref<10x32xf32, #tpu.memory_space<vmem>>, vector<5x32xf32>,
    %c0_68 = arith.constant 0 : index
    %c0_69 = arith.constant 0 : index
    %142 = vector.load %arg23[%c0_68, %c0_69] : memref<10x32xf32, #tpu.memory_space<vmem>>, vector<10x32xf32>
    %143 = arith.addf %22, %142 : vector<10x32xf32>
    %c0_70 = arith.constant 0 : index
    %c0_71 = arith.constant 0 : index
    %c0_72 = arith.constant 0 : index
    %144 = vector.load %arg12[%c0_70, %c0_71, %c0_72] : memref<2x1x32xf32, #tpu.memory_space<vmem>>, vector<1x1x32xf32>
    %145 = vector.shape_cast %144 : vector<1x1x32xf32> to vector<1x32xf32>
    %c0_73 = arith.constant 0 : index
    %c0_74 = arith.constant 0 : index
    %c0_75 = arith.constant 0 : index
    %146 = vector.load %arg13[%c0_73, %c0_74, %c0_75] : memref<2x1x32xf32, #tpu.memory_space<vmem>>, vector<1x1x32xf32>
    %147 = vector.shape_cast %146 : vector<1x1x32xf32> to vector<1x32xf32>
    %cst_76 = arith.constant dense<0.000000e+00> : vector<10xf32>
    %148 = vector.multi_reduction <add>, %143, %cst_76 [1] : vector<10x32xf32> to vector<10xf32>
    %149 = vector.shape_cast %148 : vector<10xf32> to vector<10x1xf32>
    %cst_77 = arith.constant 3.200000e+01 : f32
    %150 = vector.broadcast %cst_77 : f32 to vector<10x1xf32>
    %151 = arith.divf %149, %150 : vector<10x1xf32>
    %152 = vector.broadcast %151 : vector<10x1xf32> to vector<10x32xf32>
    %153 = arith.subf %143, %152 : vector<10x32xf32>
    %154 = arith.mulf %153, %153 : vector<10x32xf32>
    %cst_78 = arith.constant dense<0.000000e+00> : vector<10xf32>
    %155 = vector.multi_reduction <add>, %154, %cst_78 [1] : vector<10x32xf32> to vector<10xf32>
    %156 = vector.shape_cast %155 : vector<10xf32> to vector<10x1xf32>
    %cst_79 = arith.constant 3.200000e+01 : f32
    %157 = vector.broadcast %cst_79 : f32 to vector<10x1xf32>
    %158 = arith.divf %156, %157 : vector<10x1xf32>
    %cst_80 = arith.constant 9.99999996E-13 : f32
    %159 = vector.broadcast %cst_80 : f32 to vector<10x1xf32>
    %160 = arith.addf %158, %159 : vector<10x1xf32>
    %161 = math.rsqrt %160 : vector<10x1xf32>
    %162 = vector.broadcast %161 : vector<10x1xf32> to vector<10x32xf32>
    %163 = arith.mulf %153, %162 : vector<10x32xf32>
    %164 = vector.broadcast %145 : vector<1x32xf32> to vector<10x32xf32>
    %165 = arith.mulf %163, %164 : vector<10x32xf32>
    %166 = vector.broadcast %147 : vector<1x32xf32> to vector<10x32xf32>
    %167 = arith.addf %165, %166 : vector<10x32xf32>
    %c0_81 = arith.constant 0 : index
    %c0_82 = arith.constant 0 : index
    %c0_83 = arith.constant 0 : index
    %168 = vector.load %arg14[%c0_81, %c0_82, %c0_83] : memref<2x32x64xf32, #tpu.memory_space<vmem>>, vector<1x32x64xf32>
    %169 = vector.shape_cast %168 : vector<1x32x64xf32> to vector<32x64xf32>
    %cst_84 = arith.constant dense<0.000000e+00> : vector<10x64xf32>
    %170 = tpu.matmul %167, %169, %cst_84 {dimension_numbers = #tpu.dot_dimension_numbers<[1], [0], [0], [1], [0, 0, 1, 1], [], []>} : vector<10x32xf32>, vector<32x64xf32>, vector<10x64xf32> -> vector<10x64xf32>
    %c0_85 = arith.constant 0 : index
    %c0_86 = arith.constant 0 : index
    %c0_87 = arith.constant 0 : index
    %171 = vector.load %arg15[%c0_85, %c0_86, %c0_87] : memref<2x1x64xf32, #tpu.memory_space<vmem>>, vector<1x1x64xf32>
    %172 = vector.shape_cast %171 : vector<1x1x64xf32> to vector<1x64xf32>
    %173 = vector.broadcast %172 : vector<1x64xf32> to vector<10x64xf32>
    %174 = arith.addf %170, %173 : vector<10x64xf32>
    %cst_88 = arith.constant 5.000000e-01 : f32
    %175 = vector.broadcast %cst_88 : f32 to vector<10x64xf32>
    %176 = arith.mulf %175, %174 : vector<10x64xf32>
    %cst_89 = arith.constant 0.707106769 : f32
    %177 = vector.broadcast %cst_89 : f32 to vector<10x64xf32>
    %178 = arith.mulf %174, %177 : vector<10x64xf32>
    %179 = math.erf %178 : vector<10x64xf32>
    %cst_90 = arith.constant 1.000000e+00 : f32
    %180 = vector.broadcast %cst_90 : f32 to vector<10x64xf32>
    %181 = arith.addf %180, %179 : vector<10x64xf32>
    %182 = arith.mulf %176, %181 : vector<10x64xf32>
    %c0_91 = arith.constant 0 : index
    %c0_92 = arith.constant 0 : index
    %c0_93 = arith.constant 0 : index
    %183 = vector.load %arg16[%c0_91, %c0_92, %c0_93] : memref<2x64x32xf32, #tpu.memory_space<vmem>>, vector<1x64x32xf32>
    %184 = vector.shape_cast %183 : vector<1x64x32xf32> to vector<64x32xf32>
    %cst_94 = arith.constant dense<0.000000e+00> : vector<10x32xf32>
    %185 = tpu.matmul %182, %184, %cst_94 {dimension_numbers = #tpu.dot_dimension_numbers<[1], [0], [0], [1], [0, 0, 1, 1], [], []>} : vector<10x64xf32>, vector<64x32xf32>, vector<10x32xf32> -> vector<10x32xf32>
    %c0_95 = arith.constant 0 : index
    %c0_96 = arith.constant 0 : index
    %c0_97 = arith.constant 0 : index
    %186 = vector.load %arg17[%c0_95, %c0_96, %c0_97] : memref<2x1x32xf32, #tpu.memory_space<vmem>>, vector<1x1x32xf32>
    %187 = vector.shape_cast %186 : vector<1x1x32xf32> to vector<1x32xf32>
    %188 = vector.broadcast %187 : vector<1x32xf32> to vector<10x32xf32>
    %189 = arith.addf %185, %188 : vector<10x32xf32>
    %190 = arith.addf %143, %189 : vector<10x32xf32>
    %c1_98 = arith.constant 1 : index
    %c0_99 = arith.constant 0 : index
    %c0_100 = arith.constant 0 : index
    %191 = vector.load %arg6[%c1_98, %c0_99, %c0_100] : memref<2x1x32xf32, #tpu.memory_space<vmem>>, vector<1x1x32xf32>
    %192 = vector.shape_cast %191 : vector<1x1x32xf32> to vector<1x32xf32>
    %c1_101 = arith.constant 1 : index
    %c0_102 = arith.constant 0 : index
    %c0_103 = arith.constant 0 : index
    %193 = vector.load %arg7[%c1_101, %c0_102, %c0_103] : memref<2x1x32xf32, #tpu.memory_space<vmem>>, vector<1x1x32xf32>
    %194 = vector.shape_cast %193 : vector<1x1x32xf32> to vector<1x32xf32>
    %cst_104 = arith.constant dense<0.000000e+00> : vector<10xf32>
    %195 = vector.multi_reduction <add>, %190, %cst_104 [1] : vector<10x32xf32> to vector<10xf32>
    %196 = vector.shape_cast %195 : vector<10xf32> to vector<10x1xf32>
    %cst_105 = arith.constant 3.200000e+01 : f32
    %197 = vector.broadcast %cst_105 : f32 to vector<10x1xf32>
    %198 = arith.divf %196, %197 : vector<10x1xf32>
    %199 = vector.broadcast %198 : vector<10x1xf32> to vector<10x32xf32>
    %200 = arith.subf %190, %199 : vector<10x32xf32>
    %201 = arith.mulf %200, %200 : vector<10x32xf32>
    %cst_106 = arith.constant dense<0.000000e+00> : vector<10xf32>
    %202 = vector.multi_reduction <add>, %201, %cst_106 [1] : vector<10x32xf32> to vector<10xf32>
    %203 = vector.shape_cast %202 : vector<10xf32> to vector<10x1xf32>
    %cst_107 = arith.constant 3.200000e+01 : f32
    %204 = vector.broadcast %cst_107 : f32 to vector<10x1xf32>
    %205 = arith.divf %203, %204 : vector<10x1xf32>
    %cst_108 = arith.constant 9.99999996E-13 : f32
    %206 = vector.broadcast %cst_108 : f32 to vector<10x1xf32>
    %207 = arith.addf %205, %206 : vector<10x1xf32>
    %208 = math.rsqrt %207 : vector<10x1xf32>
    %209 = vector.broadcast %208 : vector<10x1xf32> to vector<10x32xf32>
    %210 = arith.mulf %200, %209 : vector<10x32xf32>
    %211 = vector.broadcast %192 : vector<1x32xf32> to vector<10x32xf32>
    %212 = arith.mulf %210, %211 : vector<10x32xf32>
    %213 = vector.broadcast %194 : vector<1x32xf32> to vector<10x32xf32>
    %214 = arith.addf %212, %213 : vector<10x32xf32>
    %c1_109 = arith.constant 1 : index
    %c0_110 = arith.constant 0 : index
    %c0_111 = arith.constant 0 : index
    %215 = vector.load %arg8[%c1_109, %c0_110, %c0_111] : memref<2x32x96xf32, #tpu.memory_space<vmem>>, vector<1x32x96xf32>
    %216 = vector.shape_cast %215 : vector<1x32x96xf32> to vector<32x96xf32>
    %cst_112 = arith.constant dense<0.000000e+00> : vector<10x96xf32>
    %217 = tpu.matmul %214, %216, %cst_112 {dimension_numbers = #tpu.dot_dimension_numbers<[1], [0], [0], [1], [0, 0, 1, 1], [], []>} : vector<10x32xf32>, vector<32x96xf32>, vector<10x96xf32> -> vector<10x96xf32>
    %c1_113 = arith.constant 1 : index
    %c0_114 = arith.constant 0 : index
    %c0_115 = arith.constant 0 : index
    %218 = vector.load %arg9[%c1_113, %c0_114, %c0_115] : memref<2x1x96xf32, #tpu.memory_space<vmem>>, vector<1x1x96xf32>
    %219 = vector.shape_cast %218 : vector<1x1x96xf32> to vector<1x96xf32>
    %220 = vector.broadcast %219 : vector<1x96xf32> to vector<10x96xf32>
    %221 = arith.addf %217, %220 : vector<10x96xf32>
    %c1_116 = arith.constant 1 : index
    %c0_117 = arith.constant 0 : index
    %c0_118 = arith.constant 0 : index
    %222 = vector.load %arg10[%c1_116, %c0_117, %c0_118] : memref<2x32x32xf32, #tpu.memory_space<vmem>>, vector<1x32x32xf32>
    %223 = vector.shape_cast %222 : vector<1x32x32xf32> to vector<32x32xf32>
    %c1_119 = arith.constant 1 : index
    %c0_120 = arith.constant 0 : index
    %c0_121 = arith.constant 0 : index
    %224 = vector.load %arg11[%c1_119, %c0_120, %c0_121] : memref<2x1x32xf32, #tpu.memory_space<vmem>>, vector<1x1x32xf32>
    %225 = vector.shape_cast %224 : vector<1x1x32xf32> to vector<1x32xf32>
    %226 = vector.extract_strided_slice %221 {offsets = [0, 0], sizes = [5, 16], strides = [1, 1]} : vector<10x96xf32> to vector<5x16xf32>
    %227 = vector.extract_strided_slice %221 {offsets = [0, 32], sizes = [5, 16], strides = [1, 1]} : vector<10x96xf32> to vector<5x16xf32>
    %228 = vector.extract_strided_slice %221 {offsets = [0, 64], sizes = [5, 16], strides = [1, 1]} : vector<10x96xf32> to vector<5x16xf32>
    %cst_122 = arith.constant dense<0.000000e+00> : vector<5x5xf32>
    %229 = tpu.matmul %226, %227, %cst_122 {dimension_numbers = #tpu.dot_dimension_numbers<[1], [1], [0], [0], [0, 0, 1, 0], [], []>} : vector<5x16xf32>, vector<5x16xf32>, vector<5x5xf32> -> vector<5x5xf32>
    %cst_123 = arith.constant 2.500000e-01 : f32
    %230 = vector.broadcast %cst_123 : f32 to vector<5x5xf32>
    %231 = arith.mulf %229, %230 : vector<5x5xf32>
    %cst_124 = arith.constant dense<0xFF800000> : vector<5xf32>
    %232 = vector.multi_reduction <maximumf>, %231, %cst_124 [1] : vector<5x5xf32> to vector<5xf32>
    %233 = vector.shape_cast %232 : vector<5xf32> to vector<5x1xf32>
    %234 = vector.broadcast %233 : vector<5x1xf32> to vector<5x5xf32>
    %235 = arith.subf %231, %234 : vector<5x5xf32>
    %236 = math.exp %235 : vector<5x5xf32>
    %cst_125 = arith.constant dense<0.000000e+00> : vector<5xf32>
    %237 = vector.multi_reduction <add>, %236, %cst_125 [1] : vector<5x5xf32> to vector<5xf32>
    %238 = vector.shape_cast %237 : vector<5xf32> to vector<5x1xf32>
    %239 = tpu.reciprocal %238 : vector<5x1xf32> -> vector<5x1xf32>
    %240 = vector.broadcast %239 : vector<5x1xf32> to vector<5x5xf32>
    %241 = arith.mulf %236, %240 : vector<5x5xf32>
    %cst_126 = arith.constant dense<0.000000e+00> : vector<5x16xf32>
    %242 = tpu.matmul %241, %228, %cst_126 {dimension_numbers = #tpu.dot_dimension_numbers<[1], [0], [0], [1], [0, 0, 1, 1], [], []>} : vector<5x5xf32>, vector<5x16xf32>, vector<5x16xf32> -> vector<5x16xf32>
    %243 = vector.extract_strided_slice %223 {offsets = [0, 0], sizes = [16, 32], strides = [1, 1]} : vector<32x32xf32> to vector<16x32xf32>
    %cst_127 = arith.constant dense<0.000000e+00> : vector<5x32xf32>
    %244 = tpu.matmul %242, %243, %cst_127 {dimension_numbers = #tpu.dot_dimension_numbers<[1], [0], [0], [1], [0, 0, 1, 1], [], []>} : vector<5x16xf32>, vector<16x32xf32>, vector<5x32xf32> -> vector<5x32xf32>
    %245 = vector.broadcast %225 : vector<1x32xf32> to vector<5x32xf32>
    %246 = arith.addf %245, %244 : vector<5x32xf32>
    %247 = vector.extract_strided_slice %221 {offsets = [0, 16], sizes = [5, 16], strides = [1, 1]} : vector<10x96xf32> to vector<5x16xf32>
    %248 = vector.extract_strided_slice %221 {offsets = [0, 48], sizes = [5, 16], strides = [1, 1]} : vector<10x96xf32> to vector<5x16xf32>
    %249 = vector.extract_strided_slice %221 {offsets = [0, 80], sizes = [5, 16], strides = [1, 1]} : vector<10x96xf32> to vector<5x16xf32>
    %cst_128 = arith.constant dense<0.000000e+00> : vector<5x5xf32>
    %250 = tpu.matmul %247, %248, %cst_128 {dimension_numbers = #tpu.dot_dimension_numbers<[1], [1], [0], [0], [0, 0, 1, 0], [], []>} : vector<5x16xf32>, vector<5x16xf32>, vector<5x5xf32> -> vector<5x5xf32>
    %cst_129 = arith.constant 2.500000e-01 : f32
    %251 = vector.broadcast %cst_129 : f32 to vector<5x5xf32>
    %252 = arith.mulf %250, %251 : vector<5x5xf32>
    %cst_130 = arith.constant dense<0xFF800000> : vector<5xf32>
    %253 = vector.multi_reduction <maximumf>, %252, %cst_130 [1] : vector<5x5xf32> to vector<5xf32>
    %254 = vector.shape_cast %253 : vector<5xf32> to vector<5x1xf32>
    %255 = vector.broadcast %254 : vector<5x1xf32> to vector<5x5xf32>
    %256 = arith.subf %252, %255 : vector<5x5xf32>
    %257 = math.exp %256 : vector<5x5xf32>
    %cst_131 = arith.constant dense<0.000000e+00> : vector<5xf32>
    %258 = vector.multi_reduction <add>, %257, %cst_131 [1] : vector<5x5xf32> to vector<5xf32>
    %259 = vector.shape_cast %258 : vector<5xf32> to vector<5x1xf32>
    %260 = tpu.reciprocal %259 : vector<5x1xf32> -> vector<5x1xf32>
    %261 = vector.broadcast %260 : vector<5x1xf32> to vector<5x5xf32>
    %262 = arith.mulf %257, %261 : vector<5x5xf32>
    %cst_132 = arith.constant dense<0.000000e+00> : vector<5x16xf32>
    %263 = tpu.matmul %262, %249, %cst_132 {dimension_numbers = #tpu.dot_dimension_numbers<[1], [0], [0], [1], [0, 0, 1, 1], [], []>} : vector<5x5xf32>, vector<5x16xf32>, vector<5x16xf32> -> vector<5x16xf32>
    %264 = vector.extract_strided_slice %223 {offsets = [16, 0], sizes = [16, 32], strides = [1, 1]} : vector<32x32xf32> to vector<16x32xf32>
    %cst_133 = arith.constant dense<0.000000e+00> : vector<5x32xf32>
    %265 = tpu.matmul %263, %264, %cst_133 {dimension_numbers = #tpu.dot_dimension_numbers<[1], [0], [0], [1], [0, 0, 1, 1], [], []>} : vector<5x16xf32>, vector<16x32xf32>, vector<5x32xf32> -> vector<5x32xf32>
    %266 = arith.addf %246, %265 : vector<5x32xf32>
    %c0_134 = arith.constant 0 : index
    %c0_135 = arith.constant 0 : index
    %267 = vector.load %arg23[%c0_134, %c0_135] : memref<10x32xf32, #tpu.memory_space<vmem>>, vector<5x32xf32>
    tpu.vector_store %arg23[%c0_134, %c0_135], %266 {strides = array<i32>} : memref<10x32xf32, #tpu.memory_space<vmem>>, vector<5x32xf32>,
    %268 = vector.extract_strided_slice %221 {offsets = [5, 0], sizes = [5, 16], strides = [1, 1]} : vector<10x96xf32> to vector<5x16xf32>
    %269 = vector.extract_strided_slice %221 {offsets = [5, 32], sizes = [5, 16], strides = [1, 1]} : vector<10x96xf32> to vector<5x16xf32>
    %270 = vector.extract_strided_slice %221 {offsets = [5, 64], sizes = [5, 16], strides = [1, 1]} : vector<10x96xf32> to vector<5x16xf32>
    %cst_136 = arith.constant dense<0.000000e+00> : vector<5x5xf32>
    %271 = tpu.matmul %268, %269, %cst_136 {dimension_numbers = #tpu.dot_dimension_numbers<[1], [1], [0], [0], [0, 0, 1, 0], [], []>} : vector<5x16xf32>, vector<5x16xf32>, vector<5x5xf32> -> vector<5x5xf32>
    %cst_137 = arith.constant 2.500000e-01 : f32
    %272 = vector.broadcast %cst_137 : f32 to vector<5x5xf32>
    %273 = arith.mulf %271, %272 : vector<5x5xf32>
    %cst_138 = arith.constant dense<0xFF800000> : vector<5xf32>
    %274 = vector.multi_reduction <maximumf>, %273, %cst_138 [1] : vector<5x5xf32> to vector<5xf32>
    %275 = vector.shape_cast %274 : vector<5xf32> to vector<5x1xf32>
    %276 = vector.broadcast %275 : vector<5x1xf32> to vector<5x5xf32>
    %277 = arith.subf %273, %276 : vector<5x5xf32>
    %278 = math.exp %277 : vector<5x5xf32>
    %cst_139 = arith.constant dense<0.000000e+00> : vector<5xf32>
    %279 = vector.multi_reduction <add>, %278, %cst_139 [1] : vector<5x5xf32> to vector<5xf32>
    %280 = vector.shape_cast %279 : vector<5xf32> to vector<5x1xf32>
    %281 = tpu.reciprocal %280 : vector<5x1xf32> -> vector<5x1xf32>
    %282 = vector.broadcast %281 : vector<5x1xf32> to vector<5x5xf32>
    %283 = arith.mulf %278, %282 : vector<5x5xf32>
    %cst_140 = arith.constant dense<0.000000e+00> : vector<5x16xf32>
    %284 = tpu.matmul %283, %270, %cst_140 {dimension_numbers = #tpu.dot_dimension_numbers<[1], [0], [0], [1], [0, 0, 1, 1], [], []>} : vector<5x5xf32>, vector<5x16xf32>, vector<5x16xf32> -> vector<5x16xf32>
    %285 = vector.extract_strided_slice %223 {offsets = [0, 0], sizes = [16, 32], strides = [1, 1]} : vector<32x32xf32> to vector<16x32xf32>
    %cst_141 = arith.constant dense<0.000000e+00> : vector<5x32xf32>
    %286 = tpu.matmul %284, %285, %cst_141 {dimension_numbers = #tpu.dot_dimension_numbers<[1], [0], [0], [1], [0, 0, 1, 1], [], []>} : vector<5x16xf32>, vector<16x32xf32>, vector<5x32xf32> -> vector<5x32xf32>
    %287 = vector.broadcast %225 : vector<1x32xf32> to vector<5x32xf32>
    %288 = arith.addf %287, %286 : vector<5x32xf32>
    %289 = vector.extract_strided_slice %221 {offsets = [5, 16], sizes = [5, 16], strides = [1, 1]} : vector<10x96xf32> to vector<5x16xf32>
    %290 = vector.extract_strided_slice %221 {offsets = [5, 48], sizes = [5, 16], strides = [1, 1]} : vector<10x96xf32> to vector<5x16xf32>
    %291 = vector.extract_strided_slice %221 {offsets = [5, 80], sizes = [5, 16], strides = [1, 1]} : vector<10x96xf32> to vector<5x16xf32>
    %cst_142 = arith.constant dense<0.000000e+00> : vector<5x5xf32>
    %292 = tpu.matmul %289, %290, %cst_142 {dimension_numbers = #tpu.dot_dimension_numbers<[1], [1], [0], [0], [0, 0, 1, 0], [], []>} : vector<5x16xf32>, vector<5x16xf32>, vector<5x5xf32> -> vector<5x5xf32>
    %cst_143 = arith.constant 2.500000e-01 : f32
    %293 = vector.broadcast %cst_143 : f32 to vector<5x5xf32>
    %294 = arith.mulf %292, %293 : vector<5x5xf32>
    %cst_144 = arith.constant dense<0xFF800000> : vector<5xf32>
    %295 = vector.multi_reduction <maximumf>, %294, %cst_144 [1] : vector<5x5xf32> to vector<5xf32>
    %296 = vector.shape_cast %295 : vector<5xf32> to vector<5x1xf32>
    %297 = vector.broadcast %296 : vector<5x1xf32> to vector<5x5xf32>
    %298 = arith.subf %294, %297 : vector<5x5xf32>
    %299 = math.exp %298 : vector<5x5xf32>
    %cst_145 = arith.constant dense<0.000000e+00> : vector<5xf32>
    %300 = vector.multi_reduction <add>, %299, %cst_145 [1] : vector<5x5xf32> to vector<5xf32>
    %301 = vector.shape_cast %300 : vector<5xf32> to vector<5x1xf32>
    %302 = tpu.reciprocal %301 : vector<5x1xf32> -> vector<5x1xf32>
    %303 = vector.broadcast %302 : vector<5x1xf32> to vector<5x5xf32>
    %304 = arith.mulf %299, %303 : vector<5x5xf32>
    %cst_146 = arith.constant dense<0.000000e+00> : vector<5x16xf32>
    %305 = tpu.matmul %304, %291, %cst_146 {dimension_numbers = #tpu.dot_dimension_numbers<[1], [0], [0], [1], [0, 0, 1, 1], [], []>} : vector<5x5xf32>, vector<5x16xf32>, vector<5x16xf32> -> vector<5x16xf32>
    %306 = vector.extract_strided_slice %223 {offsets = [16, 0], sizes = [16, 32], strides = [1, 1]} : vector<32x32xf32> to vector<16x32xf32>
    %cst_147 = arith.constant dense<0.000000e+00> : vector<5x32xf32>
    %307 = tpu.matmul %305, %306, %cst_147 {dimension_numbers = #tpu.dot_dimension_numbers<[1], [0], [0], [1], [0, 0, 1, 1], [], []>} : vector<5x16xf32>, vector<16x32xf32>, vector<5x32xf32> -> vector<5x32xf32>
    %308 = arith.addf %288, %307 : vector<5x32xf32>
    %c5_148 = arith.constant 5 : index
    %c0_149 = arith.constant 0 : index
    %309 = vector.load %arg23[%c5_148, %c0_149] : memref<10x32xf32, #tpu.memory_space<vmem>>, vector<5x32xf32>
    tpu.vector_store %arg23[%c5_148, %c0_149], %308 {strides = array<i32>} : memref<10x32xf32, #tpu.memory_space<vmem>>, vector<5x32xf32>,
    %c0_150 = arith.constant 0 : index
    %c0_151 = arith.constant 0 : index
    %310 = vector.load %arg23[%c0_150, %c0_151] : memref<10x32xf32, #tpu.memory_space<vmem>>, vector<10x32xf32>
    %311 = arith.addf %190, %310 : vector<10x32xf32>
    %c1_152 = arith.constant 1 : index
    %c0_153 = arith.constant 0 : index
    %c0_154 = arith.constant 0 : index
    %312 = vector.load %arg12[%c1_152, %c0_153, %c0_154] : memref<2x1x32xf32, #tpu.memory_space<vmem>>, vector<1x1x32xf32>
    %313 = vector.shape_cast %312 : vector<1x1x32xf32> to vector<1x32xf32>
    %c1_155 = arith.constant 1 : index
    %c0_156 = arith.constant 0 : index
    %c0_157 = arith.constant 0 : index
    %314 = vector.load %arg13[%c1_155, %c0_156, %c0_157] : memref<2x1x32xf32, #tpu.memory_space<vmem>>, vector<1x1x32xf32>
    %315 = vector.shape_cast %314 : vector<1x1x32xf32> to vector<1x32xf32>
    %cst_158 = arith.constant dense<0.000000e+00> : vector<10xf32>
    %316 = vector.multi_reduction <add>, %311, %cst_158 [1] : vector<10x32xf32> to vector<10xf32>
    %317 = vector.shape_cast %316 : vector<10xf32> to vector<10x1xf32>
    %cst_159 = arith.constant 3.200000e+01 : f32
    %318 = vector.broadcast %cst_159 : f32 to vector<10x1xf32>
    %319 = arith.divf %317, %318 : vector<10x1xf32>
    %320 = vector.broadcast %319 : vector<10x1xf32> to vector<10x32xf32>
    %321 = arith.subf %311, %320 : vector<10x32xf32>
    %322 = arith.mulf %321, %321 : vector<10x32xf32>
    %cst_160 = arith.constant dense<0.000000e+00> : vector<10xf32>
    %323 = vector.multi_reduction <add>, %322, %cst_160 [1] : vector<10x32xf32> to vector<10xf32>
    %324 = vector.shape_cast %323 : vector<10xf32> to vector<10x1xf32>
    %cst_161 = arith.constant 3.200000e+01 : f32
    %325 = vector.broadcast %cst_161 : f32 to vector<10x1xf32>
    %326 = arith.divf %324, %325 : vector<10x1xf32>
    %cst_162 = arith.constant 9.99999996E-13 : f32
    %327 = vector.broadcast %cst_162 : f32 to vector<10x1xf32>
    %328 = arith.addf %326, %327 : vector<10x1xf32>
    %329 = math.rsqrt %328 : vector<10x1xf32>
    %330 = vector.broadcast %329 : vector<10x1xf32> to vector<10x32xf32>
    %331 = arith.mulf %321, %330 : vector<10x32xf32>
    %332 = vector.broadcast %313 : vector<1x32xf32> to vector<10x32xf32>
    %333 = arith.mulf %331, %332 : vector<10x32xf32>
    %334 = vector.broadcast %315 : vector<1x32xf32> to vector<10x32xf32>
    %335 = arith.addf %333, %334 : vector<10x32xf32>
    %c1_163 = arith.constant 1 : index
    %c0_164 = arith.constant 0 : index
    %c0_165 = arith.constant 0 : index
    %336 = vector.load %arg14[%c1_163, %c0_164, %c0_165] : memref<2x32x64xf32, #tpu.memory_space<vmem>>, vector<1x32x64xf32>
    %337 = vector.shape_cast %336 : vector<1x32x64xf32> to vector<32x64xf32>
    %cst_166 = arith.constant dense<0.000000e+00> : vector<10x64xf32>
    %338 = tpu.matmul %335, %337, %cst_166 {dimension_numbers = #tpu.dot_dimension_numbers<[1], [0], [0], [1], [0, 0, 1, 1], [], []>} : vector<10x32xf32>, vector<32x64xf32>, vector<10x64xf32> -> vector<10x64xf32>
    %c1_167 = arith.constant 1 : index
    %c0_168 = arith.constant 0 : index
    %c0_169 = arith.constant 0 : index
    %339 = vector.load %arg15[%c1_167, %c0_168, %c0_169] : memref<2x1x64xf32, #tpu.memory_space<vmem>>, vector<1x1x64xf32>
    %340 = vector.shape_cast %339 : vector<1x1x64xf32> to vector<1x64xf32>
    %341 = vector.broadcast %340 : vector<1x64xf32> to vector<10x64xf32>
    %342 = arith.addf %338, %341 : vector<10x64xf32>
    %cst_170 = arith.constant 5.000000e-01 : f32
    %343 = vector.broadcast %cst_170 : f32 to vector<10x64xf32>
    %344 = arith.mulf %343, %342 : vector<10x64xf32>
    %cst_171 = arith.constant 0.707106769 : f32
    %345 = vector.broadcast %cst_171 : f32 to vector<10x64xf32>
    %346 = arith.mulf %342, %345 : vector<10x64xf32>
    %347 = math.erf %346 : vector<10x64xf32>
    %cst_172 = arith.constant 1.000000e+00 : f32
    %348 = vector.broadcast %cst_172 : f32 to vector<10x64xf32>
    %349 = arith.addf %348, %347 : vector<10x64xf32>
    %350 = arith.mulf %344, %349 : vector<10x64xf32>
    %c1_173 = arith.constant 1 : index
    %c0_174 = arith.constant 0 : index
    %c0_175 = arith.constant 0 : index
    %351 = vector.load %arg16[%c1_173, %c0_174, %c0_175] : memref<2x64x32xf32, #tpu.memory_space<vmem>>, vector<1x64x32xf32>
    %352 = vector.shape_cast %351 : vector<1x64x32xf32> to vector<64x32xf32>
    %cst_176 = arith.constant dense<0.000000e+00> : vector<10x32xf32>
    %353 = tpu.matmul %350, %352, %cst_176 {dimension_numbers = #tpu.dot_dimension_numbers<[1], [0], [0], [1], [0, 0, 1, 1], [], []>} : vector<10x64xf32>, vector<64x32xf32>, vector<10x32xf32> -> vector<10x32xf32>
    %c1_177 = arith.constant 1 : index
    %c0_178 = arith.constant 0 : index
    %c0_179 = arith.constant 0 : index
    %354 = vector.load %arg17[%c1_177, %c0_178, %c0_179] : memref<2x1x32xf32, #tpu.memory_space<vmem>>, vector<1x1x32xf32>
    %355 = vector.shape_cast %354 : vector<1x1x32xf32> to vector<1x32xf32>
    %356 = vector.broadcast %355 : vector<1x32xf32> to vector<10x32xf32>
    %357 = arith.addf %353, %356 : vector<10x32xf32>
    %358 = arith.addf %311, %357 : vector<10x32xf32>
    %c0_180 = arith.constant 0 : index
    %c0_181 = arith.constant 0 : index
    %359 = vector.load %arg18[%c0_180, %c0_181] : memref<1x32xf32, #tpu.memory_space<vmem>>, vector<1x32xf32>
    %c0_182 = arith.constant 0 : index
    %c0_183 = arith.constant 0 : index
    %360 = vector.load %arg19[%c0_182, %c0_183] : memref<1x32xf32, #tpu.memory_space<vmem>>, vector<1x32xf32>
    %cst_184 = arith.constant dense<0.000000e+00> : vector<10xf32>
    %361 = vector.multi_reduction <add>, %358, %cst_184 [1] : vector<10x32xf32> to vector<10xf32>
    %362 = vector.shape_cast %361 : vector<10xf32> to vector<10x1xf32>
    %cst_185 = arith.constant 3.200000e+01 : f32
    %363 = vector.broadcast %cst_185 : f32 to vector<10x1xf32>
    %364 = arith.divf %362, %363 : vector<10x1xf32>
    %365 = vector.broadcast %364 : vector<10x1xf32> to vector<10x32xf32>
    %366 = arith.subf %358, %365 : vector<10x32xf32>
    %367 = arith.mulf %366, %366 : vector<10x32xf32>
    %cst_186 = arith.constant dense<0.000000e+00> : vector<10xf32>
    %368 = vector.multi_reduction <add>, %367, %cst_186 [1] : vector<10x32xf32> to vector<10xf32>
    %369 = vector.shape_cast %368 : vector<10xf32> to vector<10x1xf32>
    %cst_187 = arith.constant 3.200000e+01 : f32
    %370 = vector.broadcast %cst_187 : f32 to vector<10x1xf32>
    %371 = arith.divf %369, %370 : vector<10x1xf32>
    %cst_188 = arith.constant 9.99999996E-13 : f32
    %372 = vector.broadcast %cst_188 : f32 to vector<10x1xf32>
    %373 = arith.addf %371, %372 : vector<10x1xf32>
    %374 = math.rsqrt %373 : vector<10x1xf32>
    %375 = vector.broadcast %374 : vector<10x1xf32> to vector<10x32xf32>
    %376 = arith.mulf %366, %375 : vector<10x32xf32>
    %377 = vector.broadcast %359 : vector<1x32xf32> to vector<10x32xf32>
    %378 = arith.mulf %376, %377 : vector<10x32xf32>
    %379 = vector.broadcast %360 : vector<1x32xf32> to vector<10x32xf32>
    %380 = arith.addf %378, %379 : vector<10x32xf32>
    %cst_189 = arith.constant 0.000000e+00 : f32
    %381 = vector.broadcast %cst_189 : f32 to vector<8x32xf32>
    %c0_190 = arith.constant 0 : index
    %c0_191 = arith.constant 0 : index
    %382 = vector.load %arg24[%c0_190, %c0_191] : memref<8x32xf32, #tpu.memory_space<vmem>>, vector<8x32xf32>
    tpu.vector_store %arg24[%c0_190, %c0_191], %381 {strides = array<i32>} : memref<8x32xf32, #tpu.memory_space<vmem>>, vector<8x32xf32>,
    %383 = vector.extract_strided_slice %380 {offsets = [0, 0], sizes = [1, 32], strides = [1, 1]} : vector<10x32xf32> to vector<1x32xf32>
    %c0_192 = arith.constant 0 : index
    %c0_193 = arith.constant 0 : index
    %384 = vector.load %arg24[%c0_192, %c0_193] : memref<8x32xf32, #tpu.memory_space<vmem>>, vector<1x32xf32>
    tpu.vector_store %arg24[%c0_192, %c0_193], %383 {strides = array<i32>} : memref<8x32xf32, #tpu.memory_space<vmem>>, vector<1x32xf32>,
    %385 = vector.extract_strided_slice %380 {offsets = [5, 0], sizes = [1, 32], strides = [1, 1]} : vector<10x32xf32> to vector<1x32xf32>
    %c1_194 = arith.constant 1 : index
    %c0_195 = arith.constant 0 : index
    %386 = vector.load %arg24[%c1_194, %c0_195] : memref<8x32xf32, #tpu.memory_space<vmem>>, vector<1x32xf32>
    tpu.vector_store %arg24[%c1_194, %c0_195], %385 {strides = array<i32>} : memref<8x32xf32, #tpu.memory_space<vmem>>, vector<1x32xf32>,
    %c0_196 = arith.constant 0 : index
    %c0_197 = arith.constant 0 : index
    %387 = vector.load %arg24[%c0_196, %c0_197] : memref<8x32xf32, #tpu.memory_space<vmem>>, vector<8x32xf32>
    %c0_198 = arith.constant 0 : index
    %c0_199 = arith.constant 0 : index
    %388 = vector.load %arg20[%c0_198, %c0_199] : memref<32x128xf32, #tpu.memory_space<vmem>>, vector<32x128xf32>
    %cst_200 = arith.constant dense<0.000000e+00> : vector<8x128xf32>
    %389 = tpu.matmul %387, %388, %cst_200 {dimension_numbers = #tpu.dot_dimension_numbers<[1], [0], [0], [1], [0, 0, 1, 1], [], []>} : vector<8x32xf32>, vector<32x128xf32>, vector<8x128xf32> -> vector<8x128xf32>
    %c0_201 = arith.constant 0 : index
    %c0_202 = arith.constant 0 : index
    %390 = vector.load %arg21[%c0_201, %c0_202] : memref<1x128xf32, #tpu.memory_space<vmem>>, vector<1x128xf32>
    %391 = vector.broadcast %390 : vector<1x128xf32> to vector<8x128xf32>
    %392 = arith.addf %389, %391 : vector<8x128xf32>
    %c0_203 = arith.constant 0 : index
    %c0_204 = arith.constant 0 : index
    %393 = vector.load %arg22[%c0_203, %c0_204] : memref<8x128xf32, #tpu.memory_space<vmem>>, vector<8x128xf32>
    tpu.vector_store %arg22[%c0_203, %c0_204], %392 {strides = array<i32>} : memref<8x128xf32, #tpu.memory_space<vmem>>, vector<8x128xf32>,
    return
  }
  func.func @transform_0(%arg0: i32) -> (i32, i32) {
    %c0_i32 = arith.constant 0 : i32
    %c0_i32_0 = arith.constant 0 : i32
    %c0_i32_1 = arith.constant 0 : i32
    return %c0_i32, %c0_i32_0 : i32, i32
  }
  func.func @transform_1(%arg0: i32) -> (i32, i32) {
    %c0_i32 = arith.constant 0 : i32
    %c0_i32_0 = arith.constant 0 : i32
    %c0_i32_1 = arith.constant 0 : i32
    return %c0_i32, %c0_i32_0 : i32, i32
  }
  func.func @transform_2(%arg0: i32) -> (i32, i32) {
    %c0_i32 = arith.constant 0 : i32
    %c0_i32_0 = arith.constant 0 : i32
    %c0_i32_1 = arith.constant 0 : i32
    return %c0_i32, %c0_i32_0 : i32, i32
  }
  func.func @transform_3(%arg0: i32) -> (i32, i32) {
    %c0_i32 = arith.constant 0 : i32
    %c0_i32_0 = arith.constant 0 : i32
    %c0_i32_1 = arith.constant 0 : i32
    return %c0_i32, %c0_i32_0 : i32, i32
  }
  func.func @transform_4(%arg0: i32) -> (i32, i32) {
    %c0_i32 = arith.constant 0 : i32
    %c0_i32_0 = arith.constant 0 : i32
    %c0_i32_1 = arith.constant 0 : i32
    return %c0_i32, %c0_i32_0 : i32, i32
  }
  func.func @transform_5(%arg0: i32) -> (i32, i32, i32) {
    %c0_i32 = arith.constant 0 : i32
    %c0_i32_0 = arith.constant 0 : i32
    %c0_i32_1 = arith.constant 0 : i32
    %c0_i32_2 = arith.constant 0 : i32
    return %c0_i32, %c0_i32_0, %c0_i32_1 : i32, i32, i32
  }
  func.func @transform_6(%arg0: i32) -> (i32, i32, i32) {
    %c0_i32 = arith.constant 0 : i32
    %c0_i32_0 = arith.constant 0 : i32
    %c0_i32_1 = arith.constant 0 : i32
    %c0_i32_2 = arith.constant 0 : i32
    return %c0_i32, %c0_i32_0, %c0_i32_1 : i32, i32, i32
  }
  func.func @transform_7(%arg0: i32) -> (i32, i32, i32) {
    %c0_i32 = arith.constant 0 : i32
    %c0_i32_0 = arith.constant 0 : i32
    %c0_i32_1 = arith.constant 0 : i32
    %c0_i32_2 = arith.constant 0 : i32
    return %c0_i32, %c0_i32_0, %c0_i32_1 : i32, i32, i32
  }
  func.func @transform_8(%arg0: i32) -> (i32, i32, i32) {
    %c0_i32 = arith.constant 0 : i32
    %c0_i32_0 = arith.constant 0 : i32
    %c0_i32_1 = arith.constant 0 : i32
    %c0_i32_2 = arith.constant 0 : i32
    return %c0_i32, %c0_i32_0, %c0_i32_1 : i32, i32, i32
  }
  func.func @transform_9(%arg0: i32) -> (i32, i32, i32) {
    %c0_i32 = arith.constant 0 : i32
    %c0_i32_0 = arith.constant 0 : i32
    %c0_i32_1 = arith.constant 0 : i32
    %c0_i32_2 = arith.constant 0 : i32
    return %c0_i32, %c0_i32_0, %c0_i32_1 : i32, i32, i32
  }
  func.func @transform_10(%arg0: i32) -> (i32, i32, i32) {
    %c0_i32 = arith.constant 0 : i32
    %c0_i32_0 = arith.constant 0 : i32
    %c0_i32_1 = arith.constant 0 : i32
    %c0_i32_2 = arith.constant 0 : i32
    return %c0_i32, %c0_i32_0, %c0_i32_1 : i32, i32, i32
  }
  func.func @transform_11(%arg0: i32) -> (i32, i32, i32) {
    %c0_i32 = arith.constant 0 : i32
    %c0_i32_0 = arith.constant 0 : i32
    %c0_i32_1 = arith.constant 0 : i32
    %c0_i32_2 = arith.constant 0 : i32
    return %c0_i32, %c0_i32_0, %c0_i32_1 : i32, i32, i32
  }
  func.func @transform_12(%arg0: i32) -> (i32, i32, i32) {
    %c0_i32 = arith.constant 0 : i32
    %c0_i32_0 = arith.constant 0 : i32
    %c0_i32_1 = arith.constant 0 : i32
    %c0_i32_2 = arith.constant 0 : i32
    return %c0_i32, %c0_i32_0, %c0_i32_1 : i32, i32, i32
  }
  func.func @transform_13(%arg0: i32) -> (i32, i32, i32) {
    %c0_i32 = arith.constant 0 : i32
    %c0_i32_0 = arith.constant 0 : i32
    %c0_i32_1 = arith.constant 0 : i32
    %c0_i32_2 = arith.constant 0 : i32
    return %c0_i32, %c0_i32_0, %c0_i32_1 : i32, i32, i32
  }
  func.func @transform_14(%arg0: i32) -> (i32, i32, i32) {
    %c0_i32 = arith.constant 0 : i32
    %c0_i32_0 = arith.constant 0 : i32
    %c0_i32_1 = arith.constant 0 : i32
    %c0_i32_2 = arith.constant 0 : i32
    return %c0_i32, %c0_i32_0, %c0_i32_1 : i32, i32, i32
  }
  func.func @transform_15(%arg0: i32) -> (i32, i32, i32) {
    %c0_i32 = arith.constant 0 : i32
    %c0_i32_0 = arith.constant 0 : i32
    %c0_i32_1 = arith.constant 0 : i32
    %c0_i32_2 = arith.constant 0 : i32
    return %c0_i32, %c0_i32_0, %c0_i32_1 : i32, i32, i32
  }
  func.func @transform_16(%arg0: i32) -> (i32, i32, i32) {
    %c0_i32 = arith.constant 0 : i32
    %c0_i32_0 = arith.constant 0 : i32
    %c0_i32_1 = arith.constant 0 : i32
    %c0_i32_2 = arith.constant 0 : i32
    return %c0_i32, %c0_i32_0, %c0_i32_1 : i32, i32, i32
  }
  func.func @transform_17(%arg0: i32) -> (i32, i32) {
    %c0_i32 = arith.constant 0 : i32
    %c0_i32_0 = arith.constant 0 : i32
    %c0_i32_1 = arith.constant 0 : i32
    return %c0_i32, %c0_i32_0 : i32, i32
  }
  func.func @transform_18(%arg0: i32) -> (i32, i32) {
    %c0_i32 = arith.constant 0 : i32
    %c0_i32_0 = arith.constant 0 : i32
    %c0_i32_1 = arith.constant 0 : i32
    return %c0_i32, %c0_i32_0 : i32, i32
  }
  func.func @transform_19(%arg0: i32) -> (i32, i32) {
    %c0_i32 = arith.constant 0 : i32
    %c0_i32_0 = arith.constant 0 : i32
    %c0_i32_1 = arith.constant 0 : i32
    return %c0_i32, %c0_i32_0 : i32, i32
  }
  func.func @transform_20(%arg0: i32) -> (i32, i32) {
    %c0_i32 = arith.constant 0 : i32
    %c0_i32_0 = arith.constant 0 : i32
    %c0_i32_1 = arith.constant 0 : i32
    return %c0_i32, %c0_i32_0 : i32, i32
  }
  func.func @transform_21(%arg0: i32) -> (i32, i32) {
    %c0_i32 = arith.constant 0 : i32
    %c0_i32_0 = arith.constant 0 : i32
    %c0_i32_1 = arith.constant 0 : i32
    return %c0_i32, %c0_i32_0 : i32, i32
  }
}

</mosaic_0001>

<llo_original>
// kernel: vit_forward.1
$region0: #{vit_forward.1}
  #allocation0 [shape = 'u32[]', space=smem, size = 0x4, offset = 0x4, fixed_abs, tag = 'smem constant byte address 0x4 - core index']
  #allocation1 [shape = 'u32[144,128]{1,0:T(1,128)}', space=vmem, size = 0x12000, scoped, tag = 'internal scratch']
  #allocation2 [shape = 'f32[10,32]{1,0:T(8,128)}', space=vmem, size = 0x2000, scoped, tag = 'scratch operand']
  #allocation3 [shape = 'f32[8,32]{1,0:T(8,128)}', space=vmem, size = 0x1000, scoped, tag = 'scratch operand']
  %s0 = inlined_call_operand.vmem [shape: f32[8,192], index: 0, kind: input, shape index: {}]
  %s1 = inlined_call_operand.vmem [shape: f32[192,32], index: 1, kind: input, shape index: {}]
  %s2 = inlined_call_operand.vmem [shape: f32[1,32], index: 2, kind: input, shape index: {}]
  %s3 = inlined_call_operand.vmem [shape: f32[1,32], index: 3, kind: input, shape index: {}]
  %s4 = inlined_call_operand.vmem [shape: f32[5,32], index: 4, kind: input, shape index: {}]
  %s5 = inlined_call_operand.vmem [shape: f32[2,1,32], index: 5, kind: input, shape index: {}]
  %s6 = inlined_call_operand.vmem [shape: f32[2,1,32], index: 6, kind: input, shape index: {}]
  %s7 = inlined_call_operand.vmem [shape: f32[2,32,96], index: 7, kind: input, shape index: {}]
  %s8 = inlined_call_operand.vmem [shape: f32[2,1,96], index: 8, kind: input, shape index: {}]
  %s9 = inlined_call_operand.vmem [shape: f32[2,32,32], index: 9, kind: input, shape index: {}]
  %s10 = inlined_call_operand.vmem [shape: f32[2,1,32], index: 10, kind: input, shape index: {}]
  %s11 = inlined_call_operand.vmem [shape: f32[2,1,32], index: 11, kind: input, shape index: {}]
  %s12 = inlined_call_operand.vmem [shape: f32[2,1,32], index: 12, kind: input, shape index: {}]
  %s13 = inlined_call_operand.vmem [shape: f32[2,32,64], index: 13, kind: input, shape index: {}]
  %s14 = inlined_call_operand.vmem [shape: f32[2,1,64], index: 14, kind: input, shape index: {}]
  %s15 = inlined_call_operand.vmem [shape: f32[2,64,32], index: 15, kind: input, shape index: {}]
  %s16 = inlined_call_operand.vmem [shape: f32[2,1,32], index: 16, kind: input, shape index: {}]
  %s17 = inlined_call_operand.vmem [shape: f32[1,32], index: 17, kind: input, shape index: {}]
  %s18 = inlined_call_operand.vmem [shape: f32[1,32], index: 18, kind: input, shape index: {}]
  %s19 = inlined_call_operand.vmem [shape: f32[32,128], index: 19, kind: input, shape index: {}]
  %s20 = inlined_call_operand.vmem [shape: f32[1,128], index: 20, kind: input, shape index: {}]
  %s21 = inlined_call_operand.vmem [shape: f32[8,128], index: 21, kind: output, shape index: {}]
  %s22 = sld [smem:[#allocation0]]
  $region94: #{vit_forward.1} parent=0
    _
  %s24 = ssub.s32 1, %s22
  %s25 = scalar_select 0, %s24, %s22
  // Predicated region
  $region2: #{vit_forward.1} parent=0 // pred_check
    _
  $region3: #{vit_forward.1} parent=0 // pred_check_branch
    %27 = sbr.rel (0) target = $region5
  $region4: #{vit_forward.1} parent=0 // pred_region
    _
  $region5: #{vit_forward.1} parent=0 // pred_fallthru
    _
  // Predicated region
  $region6: #{vit_forward.1} parent=0 // pred_check
    _
  $region7: #{vit_forward.1} parent=0 // pred_check_branch
    %29 = sbr.rel (0) target = $region9
  $region8: #{vit_forward.1} parent=0 // pred_region
    _
  $region9: #{vit_forward.1} parent=0 // pred_fallthru
    _
  // Predicated region
  $region10: #{vit_forward.1} parent=0 // pred_check
    _
  $region11: #{vit_forward.1} parent=0 // pred_check_branch
    %31 = sbr.rel (0) target = $region13
  $region12: #{vit_forward.1} parent=0 // pred_region
    _
  $region13: #{vit_forward.1} parent=0 // pred_fallthru
    _
  // Predicated region
  $region14: #{vit_forward.1} parent=0 // pred_check
    _
  $region15: #{vit_forward.1} parent=0 // pred_check_branch
    %33 = sbr.rel (0) target = $region17
  $region16: #{vit_forward.1} parent=0 // pred_region
    _
  $region17: #{vit_forward.1} parent=0 // pred_fallthru
    _
  // Predicated region
  $region18: #{vit_forward.1} parent=0 // pred_check
    _
  $region19: #{vit_forward.1} parent=0 // pred_check_branch
    %35 = sbr.rel (0) target = $region21
  $region20: #{vit_forward.1} parent=0 // pred_region
    _
  $region21: #{vit_forward.1} parent=0 // pred_fallthru
    _
  // Predicated region
  $region22: #{vit_forward.1} parent=0 // pred_check
    _
  $region23: #{vit_forward.1} parent=0 // pred_check_branch
    %37 = sbr.rel (0) target = $region25
  $region24: #{vit_forward.1} parent=0 // pred_region
    _
  $region25: #{vit_forward.1} parent=0 // pred_fallthru
    _
  // Predicated region
  $region26: #{vit_forward.1} parent=0 // pred_check
    _
  $region27: #{vit_forward.1} parent=0 // pred_check_branch
    %39 = sbr.rel (0) target = $region29
  $region28: #{vit_forward.1} parent=0 // pred_region
    _
  $region29: #{vit_forward.1} parent=0 // pred_fallthru
    _
  // Predicated region
  $region30: #{vit_forward.1} parent=0 // pred_check
    _
  $region31: #{vit_forward.1} parent=0 // pred_check_branch
    %41 = sbr.rel (0) target = $region33
  $region32: #{vit_forward.1} parent=0 // pred_region
    _
  $region33: #{vit_forward.1} parent=0 // pred_fallthru
    _
  // Predicated region
  $region34: #{vit_forward.1} parent=0 // pred_check
    _
  $region35: #{vit_forward.1} parent=0 // pred_check_branch
    %43 = sbr.rel (0) target = $region37
  $region36: #{vit_forward.1} parent=0 // pred_region
    _
  $region37: #{vit_forward.1} parent=0 // pred_fallthru
    _
  // Predicated region
  $region38: #{vit_forward.1} parent=0 // pred_check
    _
  $region39: #{vit_forward.1} parent=0 // pred_check_branch
    %45 = sbr.rel (0) target = $region41
  $region40: #{vit_forward.1} parent=0 // pred_region
    _
  $region41: #{vit_forward.1} parent=0 // pred_fallthru
    _
  // Predicated region
  $region42: #{vit_forward.1} parent=0 // pred_check
    _
  $region43: #{vit_forward.1} parent=0 // pred_check_branch
    %47 = sbr.rel (0) target = $region45
  $region44: #{vit_forward.1} parent=0 // pred_region
    _
  $region45: #{vit_forward.1} parent=0 // pred_fallthru
    _
  // Predicated region
  $region46: #{vit_forward.1} parent=0 // pred_check
    _
  $region47: #{vit_forward.1} parent=0 // pred_check_branch
    %49 = sbr.rel (0) target = $region49
  $region48: #{vit_forward.1} parent=0 // pred_region
    _
  $region49: #{vit_forward.1} parent=0 // pred_fallthru
    _
  // Predicated region
  $region50: #{vit_forward.1} parent=0 // pred_check
    _
  $region51: #{vit_forward.1} parent=0 // pred_check_branch
    %51 = sbr.rel (0) target = $region53
  $region52: #{vit_forward.1} parent=0 // pred_region
    _
  $region53: #{vit_forward.1} parent=0 // pred_fallthru
    _
  // Predicated region
  $region54: #{vit_forward.1} parent=0 // pred_check
    _
  $region55: #{vit_forward.1} parent=0 // pred_check_branch
    %53 = sbr.rel (0) target = $region57
  $region56: #{vit_forward.1} parent=0 // pred_region
    _
  $region57: #{vit_forward.1} parent=0 // pred_fallthru
    _
  // Predicated region
  $region58: #{vit_forward.1} parent=0 // pred_check
    _
  $region59: #{vit_forward.1} parent=0 // pred_check_branch
    %55 = sbr.rel (0) target = $region61
  $region60: #{vit_forward.1} parent=0 // pred_region
    _
  $region61: #{vit_forward.1} parent=0 // pred_fallthru
    _
  // Predicated region
  $region62: #{vit_forward.1} parent=0 // pred_check
    _
  $region63: #{vit_forward.1} parent=0 // pred_check_branch
    %57 = sbr.rel (0) target = $region65
  $region64: #{vit_forward.1} parent=0 // pred_region
    _
  $region65: #{vit_forward.1} parent=0 // pred_fallthru
    _
  // Predicated region
  $region66: #{vit_forward.1} parent=0 // pred_check
    _
  $region67: #{vit_forward.1} parent=0 // pred_check_branch
    %59 = sbr.rel (0) target = $region69
  $region68: #{vit_forward.1} parent=0 // pred_region
    _
  $region69: #{vit_forward.1} parent=0 // pred_fallthru
    _
  // Predicated region
  $region70: #{vit_forward.1} parent=0 // pred_check
    _
  $region71: #{vit_forward.1} parent=0 // pred_check_branch
    %61 = sbr.rel (0) target = $region73
  $region72: #{vit_forward.1} parent=0 // pred_region
    _
  $region73: #{vit_forward.1} parent=0 // pred_fallthru
    _
  // Predicated region
  $region74: #{vit_forward.1} parent=0 // pred_check
    _
  $region75: #{vit_forward.1} parent=0 // pred_check_branch
    %63 = sbr.rel (0) target = $region77
  $region76: #{vit_forward.1} parent=0 // pred_region
    _
  $region77: #{vit_forward.1} parent=0 // pred_fallthru
    _
  // Predicated region
  $region78: #{vit_forward.1} parent=0 // pred_check
    _
  $region79: #{vit_forward.1} parent=0 // pred_check_branch
    %65 = sbr.rel (0) target = $region81
  $region80: #{vit_forward.1} parent=0 // pred_region
    _
  $region81: #{vit_forward.1} parent=0 // pred_fallthru
    _
  // Predicated region
  $region82: #{vit_forward.1} parent=0 // pred_check
    _
  $region83: #{vit_forward.1} parent=0 // pred_check_branch
    %67 = sbr.rel (0) target = $region85
  $region84: #{vit_forward.1} parent=0 // pred_region
    _
  $region85: #{vit_forward.1} parent=0 // pred_fallthru
    _
  %v68 = vld [vmem:[%s0] sm:$0xff]
  %v69 = vld [vmem:[%s0 + $0x8] sm:$0xff]
  %v70 = vld [vmem:[%s1] sm:$0xff]
  %v71 = vld [vmem:[%s1 + $0x8] sm:$0xff]
  %v72 = vld [vmem:[%s1 + $0x10] sm:$0xff]
  %v73 = vld [vmem:[%s1 + $0x18] sm:$0xff]
  %v74 = vld [vmem:[%s1 + $0x20] sm:$0xff]
  %v75 = vld [vmem:[%s1 + $0x28] sm:$0xff]
  %v76 = vld [vmem:[%s1 + $0x30] sm:$0xff]
  %v77 = vld [vmem:[%s1 + $0x38] sm:$0xff]
  %v78 = vld [vmem:[%s1 + $0x40] sm:$0xff]
  %v79 = vld [vmem:[%s1 + $0x48] sm:$0xff]
  %v80 = vld [vmem:[%s1 + $0x50] sm:$0xff]
  %v81 = vld [vmem:[%s1 + $0x58] sm:$0xff]
  %v82 = vld [vmem:[%s1 + $0x60] sm:$0xff]
  %v83 = vld [vmem:[%s1 + $0x68] sm:$0xff]
  %v84 = vld [vmem:[%s1 + $0x70] sm:$0xff]
  %v85 = vld [vmem:[%s1 + $0x78] sm:$0xff]
  %v86 = vld [vmem:[%s1 + $0x80] sm:$0xff]
  %v87 = vld [vmem:[%s1 + $0x88] sm:$0xff]
  %v88 = vld [vmem:[%s1 + $0x90] sm:$0xff]
  %v89 = vld [vmem:[%s1 + $0x98] sm:$0xff]
  %v90 = vld [vmem:[%s1 + $0xa0] sm:$0xff]
  %v91 = vld [vmem:[%s1 + $0xa8] sm:$0xff]
  %v92 = vld [vmem:[%s1 + $0xb0] sm:$0xff]
  %v93 = vld [vmem:[%s1 + $0xb8] sm:$0xff]
  %v94 = vld [vmem:[%s2] sm:$0x1]
  %v96 = vlaneseq
  %v97 = vshrl.u32 %v96, 7
  %v98 = vsub.s32 0, %v97
  %v99 = vrot.slane %v94, %v98
  %vm101 = vcmask 523264
  %v103 = vsel %vm101, %v69, 0
  %105 = vmatprep.subr.mxu0 0.0
  %106 = vmatpush1.msra.mxu0 %v70
  %107 = vmatprep.subr.mxu0 0.0
  %108 = vmatpush1.msra.mxu0 %v71
  %109 = vmatprep.subr.mxu0 0.0
  %110 = vmatpush1.msra.mxu0 %v72
  %111 = vmatprep.subr.mxu0 0.0
  %112 = vmatpush1.msra.mxu0 %v73
  %113 = vmatprep.subr.mxu0 0.0
  %114 = vmatpush1.msra.mxu0 %v74
  %115 = vmatprep.subr.mxu0 0.0
  %116 = vmatpush1.msra.mxu0 %v75
  %117 = vmatprep.subr.mxu0 0.0
  %118 = vmatpush1.msra.mxu0 %v76
  %119 = vmatprep.subr.mxu0 0.0
  %120 = vmatpush1.msra.mxu0 %v77
  %121 = vmatprep.subr.mxu0 0.0
  %122 = vmatpush1.msra.mxu0 %v78
  %123 = vmatprep.subr.mxu0 0.0
  %124 = vmatpush1.msra.mxu0 %v79
  %125 = vmatprep.subr.mxu0 0.0
  %126 = vmatpush1.msra.mxu0 %v80
  %127 = vmatprep.subr.mxu0 0.0
  %128 = vmatpush1.msra.mxu0 %v81
  %129 = vmatprep.subr.mxu0 0.0
  %130 = vmatpush1.msra.mxu0 %v82
  %131 = vmatprep.subr.mxu0 0.0
  %132 = vmatpush1.msra.mxu0 %v83
  %133 = vmatprep.subr.mxu0 0.0
  %134 = vmatpush1.msra.mxu0 %v84
  %135 = vmatprep.subr.mxu0 0.0
  %136 = vmatpush1.msra.mxu0 %v85
  %137 = vmatprep.subr.mxu0 0.0
  %138 = vmatpush1.msra.mxu0 %v86
  %139 = vmatprep.subr.mxu0 0.0
  %140 = vmatpush1.msra.mxu0 %v87
  %141 = vmatprep.subr.mxu0 0.0
  %142 = vmatpush1.msra.mxu0 %v88
  %143 = vmatprep.subr.mxu0 0.0
  %144 = vmatpush1.msra.mxu0 %v89
  %145 = vmatprep.subr.mxu0 0.0
  %146 = vmatpush1.msra.mxu0 %v90
  %147 = vmatprep.subr.mxu0 0.0
  %148 = vmatpush1.msra.mxu0 %v91
  %149 = vmatprep.subr.mxu0 0.0
  %150 = vmatpush1.msra.mxu0 %v92
  %151 = vmatprep.subr.mxu0 0.0
  %152 = vmatpush1.msra.mxu0 %v93
  %153 = vmatprep.subr.mxu0 0.0
  %154 = vmatpush1.msra.mxu0 0.0
  %155 = vmatprep.subr.mxu0 0.0
  %156 = vmatpush1.msra.mxu0 0.0
  %157 = vmatprep.subr.mxu0 0.0
  %158 = vmatpush1.msra.mxu0 0.0
  %159 = vmatprep.subr.mxu0 0.0
  %160 = vmatpush1.msra.mxu0 0.0
  %161 = vmatprep.subr.mxu0 0.0
  %162 = vmatpush1.msra.mxu0 0.0
  %163 = vmatprep.subr.mxu0 0.0
  %164 = vmatpush1.msra.mxu0 0.0
  %165 = vmatprep.subr.mxu0 0.0
  %166 = vmatpush1.msra.mxu0 0.0
  %167 = vmatprep.subr.mxu0 0.0
  %168 = vmatpush1.msra.mxu0 0.0
  %169 = vmatprep.mubr.f32.mxu0 %v103
  %170 = vmatmul.mubr.f32.gmra.mrb[0].mxu0 %v68
  %v171 = vpop.f32.mrb[0].mxu0
  %v172 = vadd.f32 %v99, %v171
  %v173 = vpop.f32.mrb[0].mxu0
  %174 = vdwg.mxu0
  %v175 = vld [vmem:[%s3] sm:$0x1]
  %v176 = vld [vmem:[%s4] sm:$0x1f]
  %v177 = vadd.f32 %v175, %v176
  %vm178 = vcmask 253952
  %179 = vst.msk [vmem:[#allocation2] sm:$0x1] %vm178, %v177
  %v181 = vrot.slane %v176, 1
  %v183 = vadd.f32 %v172, %v181
  %vm184 = vcmask 257024
  %185 = vst.msk [vmem:[#allocation2 + $0x1] sm:$0xf] %vm184, %v183
  %186 = vst.msk [vmem:[#allocation2 + $0x5] sm:$0x1] %vm178, %v177
  %v187 = vrot.slane %v176, 5
  %v189 = vadd.f32 %v172, %v187
  %vm190 = vcmask 261124
  %191 = vst.msk [vmem:[#allocation2 + $0x2] sm:$0xf0] %vm190, %v189
  %v192 = vld [vmem:[#allocation2] sm:$0xff]
  %v193 = vld [vmem:[#allocation2 + $0x8] sm:$0x3]
  %v194 = vld [vmem:[%s5] sm:$0x1]
  %v195 = vld [vmem:[%s6] sm:$0x1]
  %vm196 = vcmask 261120
  %v197 = vsel %vm196, %v192, 0.0
  %198 = vadd.xlane.f32.xlu0 %v197
  %v199 = vpop.xlane.xlu0 %198
  %vm200 = vcmask 254976
  %v201 = vsel %vm200, %v193, 0.0
  %202 = vadd.xlane.f32.xlu0 %v201
  %v203 = vpop.xlane.xlu0 %202
  %v204 = vrcp.pop 32.0
  %v205 = vmul.f32 %v199, %v204
  %v206 = vmul.f32 %v203, %v204
  %v207 = vsub.f32 %v192, %v205
  %v208 = vsub.f32 %v193, %v206
  %v209 = vmul.f32 %v207, %v207
  %v210 = vmul.f32 %v208, %v208
  %v211 = vsel %vm196, %v209, 0.0
  %212 = vadd.xlane.f32.xlu0 %v211
  %v213 = vpop.xlane.xlu0 %212
  %v214 = vsel %vm200, %v210, 0.0
  %215 = vadd.xlane.f32.xlu0 %v214
  %v216 = vpop.xlane.xlu0 %215
  %v217 = vmul.f32 %v213, %v204
  %v218 = vmul.f32 %v216, %v204
  %v219 = vadd.f32 %v217, 1e-12
  %v220 = vadd.f32 %v218, 1e-12
  %v221 = vrsqrt.pop %v219
  %v222 = vrsqrt.pop %v220
  %v223 = vmul.f32 %v207, %v221
  %v224 = vmul.f32 %v208, %v222
  %v226 = vlaneseq
  %v227 = vshrl.u32 %v226, 7
  %v228 = vsub.s32 0, %v227
  %v229 = vrot.slane %v194, %v228
  %v231 = vmul.f32 %v223, %v229
  %v232 = vmul.f32 %v224, %v229
  %v234 = vlaneseq
  %v235 = vshrl.u32 %v234, 7
  %v236 = vsub.s32 0, %v235
  %v237 = vrot.slane %v195, %v236
  %v239 = vadd.f32 %v231, %v237
  %v240 = vadd.f32 %v232, %v237
  %v241 = vld [vmem:[%s7] sm:$0xff]
  %v242 = vld [vmem:[%s7 + $0x8] sm:$0xff]
  %v243 = vld [vmem:[%s7 + $0x10] sm:$0xff]
  %v244 = vld [vmem:[%s7 + $0x18] sm:$0xff]
  %v245 = vld [vmem:[%s8] sm:$0x1]
  %v247 = vlaneseq
  %v248 = vshrl.u32 %v247, 7
  %v249 = vsub.s32 0, %v248
  %v250 = vrot.slane %v245, %v249
  %v253 = vsel %vm196, %v239, 0
  %v256 = vsel %vm196, %v240, 0
  %258 = vmatprep.subr.mxu0 0.0
  %259 = vmatpush1.msra.mxu0 %v241
  %260 = vmatprep.subr.mxu0 0.0
  %261 = vmatpush1.msra.mxu0 %v242
  %262 = vmatprep.subr.mxu0 0.0
  %263 = vmatpush1.msra.mxu0 %v243
  %264 = vmatprep.subr.mxu0 0.0
  %265 = vmatpush1.msra.mxu0 %v244
  %266 = vmatprep.subr.mxu0 0.0
  %267 = vmatpush1.msra.mxu0 0.0
  %268 = vmatprep.subr.mxu0 0.0
  %269 = vmatpush1.msra.mxu0 0.0
  %270 = vmatprep.subr.mxu0 0.0
  %271 = vmatpush1.msra.mxu0 0.0
  %272 = vmatprep.subr.mxu0 0.0
  %273 = vmatpush1.msra.mxu0 0.0
  %274 = vmatprep.subr.mxu0 0.0
  %275 = vmatpush1.msra.mxu0 0.0
  %276 = vmatprep.subr.mxu0 0.0
  %277 = vmatpush1.msra.mxu0 0.0
  %278 = vmatprep.subr.mxu0 0.0
  %279 = vmatpush1.msra.mxu0 0.0
  %280 = vmatprep.subr.mxu0 0.0
  %281 = vmatpush1.msra.mxu0 0.0
  %282 = vmatprep.subr.mxu0 0.0
  %283 = vmatpush1.msra.mxu0 0.0
  %284 = vmatprep.subr.mxu0 0.0
  %285 = vmatpush1.msra.mxu0 0.0
  %286 = vmatprep.subr.mxu0 0.0
  %287 = vmatpush1.msra.mxu0 0.0
  %288 = vmatprep.subr.mxu0 0.0
  %289 = vmatpush1.msra.mxu0 0.0
  %290 = vmatprep.subr.mxu0 0.0
  %291 = vmatpush1.msra.mxu0 0.0
  %292 = vmatprep.subr.mxu0 0.0
  %293 = vmatpush1.msra.mxu0 0.0
  %294 = vmatprep.subr.mxu0 0.0
  %295 = vmatpush1.msra.mxu0 0.0
  %296 = vmatprep.subr.mxu0 0.0
  %297 = vmatpush1.msra.mxu0 0.0
  %298 = vmatprep.subr.mxu0 0.0
  %299 = vmatpush1.msra.mxu0 0.0
  %300 = vmatprep.subr.mxu0 0.0
  %301 = vmatpush1.msra.mxu0 0.0
  %302 = vmatprep.subr.mxu0 0.0
  %303 = vmatpush1.msra.mxu0 0.0
  %304 = vmatprep.subr.mxu0 0.0
  %305 = vmatpush1.msra.mxu0 0.0
  %306 = vmatprep.subr.mxu0 0.0
  %307 = vmatpush1.msra.mxu0 0.0
  %308 = vmatprep.subr.mxu0 0.0
  %309 = vmatpush1.msra.mxu0 0.0
  %310 = vmatprep.subr.mxu0 0.0
  %311 = vmatpush1.msra.mxu0 0.0
  %312 = vmatprep.subr.mxu0 0.0
  %313 = vmatpush1.msra.mxu0 0.0
  %314 = vmatprep.subr.mxu0 0.0
  %315 = vmatpush1.msra.mxu0 0.0
  %316 = vmatprep.subr.mxu0 0.0
  %317 = vmatpush1.msra.mxu0 0.0
  %318 = vmatprep.subr.mxu0 0.0
  %319 = vmatpush1.msra.mxu0 0.0
  %320 = vmatprep.subr.mxu0 0.0
  %321 = vmatpush1.msra.mxu0 0.0
  %322 = vmatprep.mubr.f32.mxu0 0.0
  %323 = vmatmul.mubr.f32.gmra.mrb[0].mxu0 %v253
  %v324 = vpop.f32.mrb[0].mxu0
  %v325 = vadd.f32 %v250, %v324
  %v326 = vpop.f32.mrb[0].mxu0
  %327 = vmatprep.mubr.f32.mxu0 0.0
  %328 = vmatmul.mubr.f32.gmra.mrb[0].mxu0 %v256
  %v329 = vpop.f32.mrb[0].mxu0
  %v330 = vadd.f32 %v250, %v329
  %v331 = vpop.f32.mrb[0].mxu0
  %332 = vdwg.mxu0
  %v333 = vld [vmem:[%s9] sm:$0xff]
  %v334 = vld [vmem:[%s9 + $0x8] sm:$0xff]
  %v335 = vld [vmem:[%s9 + $0x10] sm:$0xff]
  %v336 = vld [vmem:[%s9 + $0x18] sm:$0xff]
  %v337 = vld [vmem:[%s10] sm:$0x1]
  %339 = vrot.lane.b32.xlu0 %v325, 96
  %v340 = vpop.permute.xlu0 %339
  %vm341 = vcmask 130048
  %v342 = vsel %vm341, %v325, 0
  %v344 = vsel %vm341, %v340, 0
  %346 = vmatprep.subr.mxu0 0.0
  %347 = vmatpush1.xpose.msra.mxu0 %v344
  %348 = vmatprep.subr.mxu0 0.0
  %349 = vmatpush1.xpose.msra.mxu0 0.0
  %350 = vmatprep.subr.mxu0 0.0
  %351 = vmatpush1.xpose.msra.mxu0 0.0
  %352 = vmatprep.subr.mxu0 0.0
  %353 = vmatpush1.xpose.msra.mxu0 0.0
  %354 = vmatprep.subr.mxu0 0.0
  %355 = vmatpush1.xpose.msra.mxu0 0.0
  %356 = vmatprep.subr.mxu0 0.0
  %357 = vmatpush1.xpose.msra.mxu0 0.0
  %358 = vmatprep.subr.mxu0 0.0
  %359 = vmatpush1.xpose.msra.mxu0 0.0
  %360 = vmatprep.subr.mxu0 0.0
  %361 = vmatpush1.xpose.msra.mxu0 0.0
  %362 = vmatprep.subr.mxu0 0.0
  %363 = vmatpush1.xpose.msra.mxu0 0.0
  %364 = vmatprep.subr.mxu0 0.0
  %365 = vmatpush1.xpose.msra.mxu0 0.0
  %366 = vmatprep.subr.mxu0 0.0
  %367 = vmatpush1.xpose.msra.mxu0 0.0
  %368 = vmatprep.subr.mxu0 0.0
  %369 = vmatpush1.xpose.msra.mxu0 0.0
  %370 = vmatprep.subr.mxu0 0.0
  %371 = vmatpush1.xpose.msra.mxu0 0.0
  %372 = vmatprep.subr.mxu0 0.0
  %373 = vmatpush1.xpose.msra.mxu0 0.0
  %374 = vmatprep.subr.mxu0 0.0
  %375 = vmatpush1.xpose.msra.mxu0 0.0
  %376 = vmatprep.subr.mxu0 0.0
  %377 = vmatpush1.xpose.msra.mxu0 0.0
  %378 = vmatprep.subr.mxu0 0.0
  %379 = vmatpush1.xpose.msra.mxu0 0.0
  %380 = vmatprep.subr.mxu0 0.0
  %381 = vmatpush1.xpose.msra.mxu0 0.0
  %382 = vmatprep.subr.mxu0 0.0
  %383 = vmatpush1.xpose.msra.mxu0 0.0
  %384 = vmatprep.subr.mxu0 0.0
  %385 = vmatpush1.xpose.msra.mxu0 0.0
  %386 = vmatprep.subr.mxu0 0.0
  %387 = vmatpush1.xpose.msra.mxu0 0.0
  %388 = vmatprep.subr.mxu0 0.0
  %389 = vmatpush1.xpose.msra.mxu0 0.0
  %390 = vmatprep.subr.mxu0 0.0
  %391 = vmatpush1.xpose.msra.mxu0 0.0
  %392 = vmatprep.subr.mxu0 0.0
  %393 = vmatpush1.xpose.msra.mxu0 0.0
  %394 = vmatprep.subr.mxu0 0.0
  %395 = vmatpush1.xpose.msra.mxu0 0.0
  %396 = vmatprep.subr.mxu0 0.0
  %397 = vmatpush1.xpose.msra.mxu0 0.0
  %398 = vmatprep.subr.mxu0 0.0
  %399 = vmatpush1.xpose.msra.mxu0 0.0
  %400 = vmatprep.subr.mxu0 0.0
  %401 = vmatpush1.xpose.msra.mxu0 0.0
  %402 = vmatprep.subr.mxu0 0.0
  %403 = vmatpush1.xpose.msra.mxu0 0.0
  %404 = vmatprep.subr.mxu0 0.0
  %405 = vmatpush1.xpose.msra.mxu0 0.0
  %406 = vmatprep.subr.mxu0 0.0
  %407 = vmatpush1.xpose.msra.mxu0 0.0
  %408 = vmatprep.subr.mxu0 0.0
  %409 = vmatpush1.xpose.msra.mxu0 0.0
  %410 = vmatprep.mubr.f32.mxu0 0.0
  %411 = vmatmul.mubr.f32.gmra.mrb[0].mxu0 %v342
  %v412 = vpop.f32.mrb[0].mxu0
  %v413 = vadd.f32 0.0, %v412
  %v414 = vpop.f32.mrb[0].mxu0
  %415 = vdwg.mxu0
  %v416 = vmul.f32 %v413, 0.25
  %vm417 = vcmask 36864
  %v418 = vsel %vm417, %v416, -inf
  %419 = vmax.xlane.f32.xlu0 %v418
  %v420 = vpop.xlane.xlu0 %419
  %v421 = vsub.f32 %v416, %v420
  %v422 = vmul.f32 %v421, 1.442695
  %v423 = vpow.pop %v422
  %v424 = vsel %vm417, %v423, 0.0
  %425 = vadd.xlane.f32.xlu0 %v424
  %v426 = vpop.xlane.xlu0 %425
  %v427 = vrcp.pop %v426
  %v428 = vmul.f32 %v423, %v427
  %429 = vrot.lane.b32.xlu0 %v325, 64
  %v430 = vpop.permute.xlu0 %429
  %vm431 = vcmask 39936
  %v433 = vsel %vm431, %v428, 0
  %vm435 = vcmask 1044480
  %v436 = vsel %vm435, %v430, 0
  %438 = vmatprep.subr.mxu0 0.0
  %439 = vmatpush1.msra.mxu0 %v436
  %440 = vmatprep.subr.mxu0 0.0
  %441 = vmatpush1.msra.mxu0 0.0
  %442 = vmatprep.subr.mxu0 0.0
  %443 = vmatpush1.msra.mxu0 0.0
  %444 = vmatprep.subr.mxu0 0.0
  %445 = vmatpush1.msra.mxu0 0.0
  %446 = vmatprep.subr.mxu0 0.0
  %447 = vmatpush1.msra.mxu0 0.0
  %448 = vmatprep.subr.mxu0 0.0
  %449 = vmatpush1.msra.mxu0 0.0
  %450 = vmatprep.subr.mxu0 0.0
  %451 = vmatpush1.msra.mxu0 0.0
  %452 = vmatprep.subr.mxu0 0.0
  %453 = vmatpush1.msra.mxu0 0.0
  %454 = vmatprep.subr.mxu0 0.0
  %455 = vmatpush1.msra.mxu0 0.0
  %456 = vmatprep.subr.mxu0 0.0
  %457 = vmatpush1.msra.mxu0 0.0
  %458 = vmatprep.subr.mxu0 0.0
  %459 = vmatpush1.msra.mxu0 0.0
  %460 = vmatprep.subr.mxu0 0.0
  %461 = vmatpush1.msra.mxu0 0.0
  %462 = vmatprep.subr.mxu0 0.0
  %463 = vmatpush1.msra.mxu0 0.0
  %464 = vmatprep.subr.mxu0 0.0
  %465 = vmatpush1.msra.mxu0 0.0
  %466 = vmatprep.subr.mxu0 0.0
  %467 = vmatpush1.msra.mxu0 0.0
  %468 = vmatprep.subr.mxu0 0.0
  %469 = vmatpush1.msra.mxu0 0.0
  %470 = vmatprep.subr.mxu0 0.0
  %471 = vmatpush1.msra.mxu0 0.0
  %472 = vmatprep.subr.mxu0 0.0
  %473 = vmatpush1.msra.mxu0 0.0
  %474 = vmatprep.subr.mxu0 0.0
  %475 = vmatpush1.msra.mxu0 0.0
  %476 = vmatprep.subr.mxu0 0.0
  %477 = vmatpush1.msra.mxu0 0.0
  %478 = vmatprep.subr.mxu0 0.0
  %479 = vmatpush1.msra.mxu0 0.0
  %480 = vmatprep.subr.mxu0 0.0
  %481 = vmatpush1.msra.mxu0 0.0
  %482 = vmatprep.subr.mxu0 0.0
  %483 = vmatpush1.msra.mxu0 0.0
  %484 = vmatprep.subr.mxu0 0.0
  %485 = vmatpush1.msra.mxu0 0.0
  %486 = vmatprep.subr.mxu0 0.0
  %487 = vmatpush1.msra.mxu0 0.0
  %488 = vmatprep.subr.mxu0 0.0
  %489 = vmatpush1.msra.mxu0 0.0
  %490 = vmatprep.subr.mxu0 0.0
  %491 = vmatpush1.msra.mxu0 0.0
  %492 = vmatprep.subr.mxu0 0.0
  %493 = vmatpush1.msra.mxu0 0.0
  %494 = vmatprep.subr.mxu0 0.0
  %495 = vmatpush1.msra.mxu0 0.0
  %496 = vmatprep.subr.mxu0 0.0
  %497 = vmatpush1.msra.mxu0 0.0
  %498 = vmatprep.subr.mxu0 0.0
  %499 = vmatpush1.msra.mxu0 0.0
  %500 = vmatprep.subr.mxu0 0.0
  %501 = vmatpush1.msra.mxu0 0.0
  %502 = vmatprep.mubr.f32.mxu0 0.0
  %503 = vmatmul.mubr.f32.gmra.mrb[0].mxu0 %v433
  %v504 = vpop.f32.mrb[0].mxu0
  %v505 = vadd.f32 0.0, %v504
  %v506 = vpop.f32.mrb[0].mxu0
  %507 = vdwg.mxu0
  %v509 = vsel %vm341, %v505, 0
  %511 = vmatprep.subr.mxu0 0.0
  %512 = vmatpush1.msra.mxu0 %v333
  %513 = vmatprep.subr.mxu0 0.0
  %514 = vmatpush1.msra.mxu0 %v334
  %515 = vmatprep.subr.mxu0 0.0
  %516 = vmatpush1.msra.mxu0 0.0
  %517 = vmatprep.subr.mxu0 0.0
  %518 = vmatpush1.msra.mxu0 0.0
  %519 = vmatprep.subr.mxu0 0.0
  %520 = vmatpush1.msra.mxu0 0.0
  %521 = vmatprep.subr.mxu0 0.0
  %522 = vmatpush1.msra.mxu0 0.0
  %523 = vmatprep.subr.mxu0 0.0
  %524 = vmatpush1.msra.mxu0 0.0
  %525 = vmatprep.subr.mxu0 0.0
  %526 = vmatpush1.msra.mxu0 0.0
  %527 = vmatprep.subr.mxu0 0.0
  %528 = vmatpush1.msra.mxu0 0.0
  %529 = vmatprep.subr.mxu0 0.0
  %530 = vmatpush1.msra.mxu0 0.0
  %531 = vmatprep.subr.mxu0 0.0
  %532 = vmatpush1.msra.mxu0 0.0
  %533 = vmatprep.subr.mxu0 0.0
  %534 = vmatpush1.msra.mxu0 0.0
  %535 = vmatprep.subr.mxu0 0.0
  %536 = vmatpush1.msra.mxu0 0.0
  %537 = vmatprep.subr.mxu0 0.0
  %538 = vmatpush1.msra.mxu0 0.0
  %539 = vmatprep.subr.mxu0 0.0
  %540 = vmatpush1.msra.mxu0 0.0
  %541 = vmatprep.subr.mxu0 0.0
  %542 = vmatpush1.msra.mxu0 0.0
  %543 = vmatprep.subr.mxu0 0.0
  %544 = vmatpush1.msra.mxu0 0.0
  %545 = vmatprep.subr.mxu0 0.0
  %546 = vmatpush1.msra.mxu0 0.0
  %547 = vmatprep.subr.mxu0 0.0
  %548 = vmatpush1.msra.mxu0 0.0
  %549 = vmatprep.subr.mxu0 0.0
  %550 = vmatpush1.msra.mxu0 0.0
  %551 = vmatprep.subr.mxu0 0.0
  %552 = vmatpush1.msra.mxu0 0.0
  %553 = vmatprep.subr.mxu0 0.0
  %554 = vmatpush1.msra.mxu0 0.0
  %555 = vmatprep.subr.mxu0 0.0
  %556 = vmatpush1.msra.mxu0 0.0
  %557 = vmatprep.subr.mxu0 0.0
  %558 = vmatpush1.msra.mxu0 0.0
  %559 = vmatprep.subr.mxu0 0.0
  %560 = vmatpush1.msra.mxu0 0.0
  %561 = vmatprep.subr.mxu0 0.0
  %562 = vmatpush1.msra.mxu0 0.0
  %563 = vmatprep.subr.mxu0 0.0
  %564 = vmatpush1.msra.mxu0 0.0
  %565 = vmatprep.subr.mxu0 0.0
  %566 = vmatpush1.msra.mxu0 0.0
  %567 = vmatprep.subr.mxu0 0.0
  %568 = vmatpush1.msra.mxu0 0.0
  %569 = vmatprep.subr.mxu0 0.0
  %570 = vmatpush1.msra.mxu0 0.0
  %571 = vmatprep.subr.mxu0 0.0
  %572 = vmatpush1.msra.mxu0 0.0
  %573 = vmatprep.subr.mxu0 0.0
  %574 = vmatpush1.msra.mxu0 0.0
  %575 = vmatprep.mubr.f32.mxu0 0.0
  %576 = vmatmul.mubr.f32.gmra.mrb[0].mxu0 %v509
  %v577 = vpop.f32.mrb[0].mxu0
  %v578 = vadd.f32 0.0, %v577
  %v579 = vpop.f32.mrb[0].mxu0
  %580 = vdwg.mxu0
  %v582 = vlaneseq
  %v583 = vshrl.u32 %v582, 7
  %v584 = vsub.s32 0, %v583
  %v585 = vrot.slane %v337, %v584
  %v587 = vadd.f32 %v585, %v578
  %588 = vrot.lane.b32.xlu0 %v325, 112
  %v589 = vpop.permute.xlu0 %588
  %590 = vrot.lane.b32.xlu0 %v325, 80
  %v591 = vpop.permute.xlu0 %590
  %v592 = vsel %vm341, %v589, 0
  %v594 = vsel %vm341, %v591, 0
  %596 = vmatprep.subr.mxu0 0.0
  %597 = vmatpush1.xpose.msra.mxu0 %v594
  %598 = vmatprep.subr.mxu0 0.0
  %599 = vmatpush1.xpose.msra.mxu0 0.0
  %600 = vmatprep.subr.mxu0 0.0
  %601 = vmatpush1.xpose.msra.mxu0 0.0
  %602 = vmatprep.subr.mxu0 0.0
  %603 = vmatpush1.xpose.msra.mxu0 0.0
  %604 = vmatprep.subr.mxu0 0.0
  %605 = vmatpush1.xpose.msra.mxu0 0.0
  %606 = vmatprep.subr.mxu0 0.0
  %607 = vmatpush1.xpose.msra.mxu0 0.0
  %608 = vmatprep.subr.mxu0 0.0
  %609 = vmatpush1.xpose.msra.mxu0 0.0
  %610 = vmatprep.subr.mxu0 0.0
  %611 = vmatpush1.xpose.msra.mxu0 0.0
  %612 = vmatprep.subr.mxu0 0.0
  %613 = vmatpush1.xpose.msra.mxu0 0.0
  %614 = vmatprep.subr.mxu0 0.0
  %615 = vmatpush1.xpose.msra.mxu0 0.0
  %616 = vmatprep.subr.mxu0 0.0
  %617 = vmatpush1.xpose.msra.mxu0 0.0
  %618 = vmatprep.subr.mxu0 0.0
  %619 = vmatpush1.xpose.msra.mxu0 0.0
  %620 = vmatprep.subr.mxu0 0.0
  %621 = vmatpush1.xpose.msra.mxu0 0.0
  %622 = vmatprep.subr.mxu0 0.0
  %623 = vmatpush1.xpose.msra.mxu0 0.0
  %624 = vmatprep.subr.mxu0 0.0
  %625 = vmatpush1.xpose.msra.mxu0 0.0
  %626 = vmatprep.subr.mxu0 0.0
  %627 = vmatpush1.xpose.msra.mxu0 0.0
  %628 = vmatprep.subr.mxu0 0.0
  %629 = vmatpush1.xpose.msra.mxu0 0.0
  %630 = vmatprep.subr.mxu0 0.0
  %631 = vmatpush1.xpose.msra.mxu0 0.0
  %632 = vmatprep.subr.mxu0 0.0
  %633 = vmatpush1.xpose.msra.mxu0 0.0
  %634 = vmatprep.subr.mxu0 0.0
  %635 = vmatpush1.xpose.msra.mxu0 0.0
  %636 = vmatprep.subr.mxu0 0.0
  %637 = vmatpush1.xpose.msra.mxu0 0.0
  %638 = vmatprep.subr.mxu0 0.0
  %639 = vmatpush1.xpose.msra.mxu0 0.0
  %640 = vmatprep.subr.mxu0 0.0
  %641 = vmatpush1.xpose.msra.mxu0 0.0
  %642 = vmatprep.subr.mxu0 0.0
  %643 = vmatpush1.xpose.msra.mxu0 0.0
  %644 = vmatprep.subr.mxu0 0.0
  %645 = vmatpush1.xpose.msra.mxu0 0.0
  %646 = vmatprep.subr.mxu0 0.0
  %647 = vmatpush1.xpose.msra.mxu0 0.0
  %648 = vmatprep.subr.mxu0 0.0
  %649 = vmatpush1.xpose.msra.mxu0 0.0
  %650 = vmatprep.subr.mxu0 0.0
  %651 = vmatpush1.xpose.msra.mxu0 0.0
  %652 = vmatprep.subr.mxu0 0.0
  %653 = vmatpush1.xpose.msra.mxu0 0.0
  %654 = vmatprep.subr.mxu0 0.0
  %655 = vmatpush1.xpose.msra.mxu0 0.0
  %656 = vmatprep.subr.mxu0 0.0
  %657 = vmatpush1.xpose.msra.mxu0 0.0
  %658 = vmatprep.subr.mxu0 0.0
  %659 = vmatpush1.xpose.msra.mxu0 0.0
  %660 = vmatprep.mubr.f32.mxu0 0.0
  %661 = vmatmul.mubr.f32.gmra.mrb[0].mxu0 %v592
  %v662 = vpop.f32.mrb[0].mxu0
  %v663 = vadd.f32 0.0, %v662
  %v664 = vpop.f32.mrb[0].mxu0
  %665 = vdwg.mxu0
  %v666 = vmul.f32 %v663, 0.25
  %v667 = vsel %vm417, %v666, -inf
  %668 = vmax.xlane.f32.xlu0 %v667
  %v669 = vpop.xlane.xlu0 %668
  %v670 = vsub.f32 %v666, %v669
  %v671 = vmul.f32 %v670, 1.442695
  %v672 = vpow.pop %v671
  %v673 = vsel %vm417, %v672, 0.0
  %674 = vadd.xlane.f32.xlu0 %v673
  %v675 = vpop.xlane.xlu0 %674
  %v676 = vrcp.pop %v675
  %v677 = vmul.f32 %v672, %v676
  %678 = vrot.lane.b32.xlu0 %v325, 48
  %v679 = vpop.permute.xlu0 %678
  %v681 = vsel %vm431, %v677, 0
  %v683 = vsel %vm435, %v679, 0
  %685 = vmatprep.subr.mxu0 0.0
  %686 = vmatpush1.msra.mxu0 %v683
  %687 = vmatprep.subr.mxu0 0.0
  %688 = vmatpush1.msra.mxu0 0.0
  %689 = vmatprep.subr.mxu0 0.0
  %690 = vmatpush1.msra.mxu0 0.0
  %691 = vmatprep.subr.mxu0 0.0
  %692 = vmatpush1.msra.mxu0 0.0
  %693 = vmatprep.subr.mxu0 0.0
  %694 = vmatpush1.msra.mxu0 0.0
  %695 = vmatprep.subr.mxu0 0.0
  %696 = vmatpush1.msra.mxu0 0.0
  %697 = vmatprep.subr.mxu0 0.0
  %698 = vmatpush1.msra.mxu0 0.0
  %699 = vmatprep.subr.mxu0 0.0
  %700 = vmatpush1.msra.mxu0 0.0
  %701 = vmatprep.subr.mxu0 0.0
  %702 = vmatpush1.msra.mxu0 0.0
  %703 = vmatprep.subr.mxu0 0.0
  %704 = vmatpush1.msra.mxu0 0.0
  %705 = vmatprep.subr.mxu0 0.0
  %706 = vmatpush1.msra.mxu0 0.0
  %707 = vmatprep.subr.mxu0 0.0
  %708 = vmatpush1.msra.mxu0 0.0
  %709 = vmatprep.subr.mxu0 0.0
  %710 = vmatpush1.msra.mxu0 0.0
  %711 = vmatprep.subr.mxu0 0.0
  %712 = vmatpush1.msra.mxu0 0.0
  %713 = vmatprep.subr.mxu0 0.0
  %714 = vmatpush1.msra.mxu0 0.0
  %715 = vmatprep.subr.mxu0 0.0
  %716 = vmatpush1.msra.mxu0 0.0
  %717 = vmatprep.subr.mxu0 0.0
  %718 = vmatpush1.msra.mxu0 0.0
  %719 = vmatprep.subr.mxu0 0.0
  %720 = vmatpush1.msra.mxu0 0.0
  %721 = vmatprep.subr.mxu0 0.0
  %722 = vmatpush1.msra.mxu0 0.0
  %723 = vmatprep.subr.mxu0 0.0
  %724 = vmatpush1.msra.mxu0 0.0
  %725 = vmatprep.subr.mxu0 0.0
  %726 = vmatpush1.msra.mxu0 0.0
  %727 = vmatprep.subr.mxu0 0.0
  %728 = vmatpush1.msra.mxu0 0.0
  %729 = vmatprep.subr.mxu0 0.0
  %730 = vmatpush1.msra.mxu0 0.0
  %731 = vmatprep.subr.mxu0 0.0
  %732 = vmatpush1.msra.mxu0 0.0
  %733 = vmatprep.subr.mxu0 0.0
  %734 = vmatpush1.msra.mxu0 0.0
  %735 = vmatprep.subr.mxu0 0.0
  %736 = vmatpush1.msra.mxu0 0.0
  %737 = vmatprep.subr.mxu0 0.0
  %738 = vmatpush1.msra.mxu0 0.0
  %739 = vmatprep.subr.mxu0 0.0
  %740 = vmatpush1.msra.mxu0 0.0
  %741 = vmatprep.subr.mxu0 0.0
  %742 = vmatpush1.msra.mxu0 0.0
  %743 = vmatprep.subr.mxu0 0.0
  %744 = vmatpush1.msra.mxu0 0.0
  %745 = vmatprep.subr.mxu0 0.0
  %746 = vmatpush1.msra.mxu0 0.0
  %747 = vmatprep.subr.mxu0 0.0
  %748 = vmatpush1.msra.mxu0 0.0
  %749 = vmatprep.mubr.f32.mxu0 0.0
  %750 = vmatmul.mubr.f32.gmra.mrb[0].mxu0 %v681
  %v751 = vpop.f32.mrb[0].mxu0
  %v752 = vadd.f32 0.0, %v751
  %v753 = vpop.f32.mrb[0].mxu0
  %754 = vdwg.mxu0
  %v756 = vsel %vm341, %v752, 0
  %758 = vmatprep.subr.mxu0 0.0
  %759 = vmatpush1.msra.mxu0 %v335
  %760 = vmatprep.subr.mxu0 0.0
  %761 = vmatpush1.msra.mxu0 %v336
  %762 = vmatprep.subr.mxu0 0.0
  %763 = vmatpush1.msra.mxu0 0.0
  %764 = vmatprep.subr.mxu0 0.0
  %765 = vmatpush1.msra.mxu0 0.0
  %766 = vmatprep.subr.mxu0 0.0
  %767 = vmatpush1.msra.mxu0 0.0
  %768 = vmatprep.subr.mxu0 0.0
  %769 = vmatpush1.msra.mxu0 0.0
  %770 = vmatprep.subr.mxu0 0.0
  %771 = vmatpush1.msra.mxu0 0.0
  %772 = vmatprep.subr.mxu0 0.0
  %773 = vmatpush1.msra.mxu0 0.0
  %774 = vmatprep.subr.mxu0 0.0
  %775 = vmatpush1.msra.mxu0 0.0
  %776 = vmatprep.subr.mxu0 0.0
  %777 = vmatpush1.msra.mxu0 0.0
  %778 = vmatprep.subr.mxu0 0.0
  %779 = vmatpush1.msra.mxu0 0.0
  %780 = vmatprep.subr.mxu0 0.0
  %781 = vmatpush1.msra.mxu0 0.0
  %782 = vmatprep.subr.mxu0 0.0
  %783 = vmatpush1.msra.mxu0 0.0
  %784 = vmatprep.subr.mxu0 0.0
  %785 = vmatpush1.msra.mxu0 0.0
  %786 = vmatprep.subr.mxu0 0.0
  %787 = vmatpush1.msra.mxu0 0.0
  %788 = vmatprep.subr.mxu0 0.0
  %789 = vmatpush1.msra.mxu0 0.0
  %790 = vmatprep.subr.mxu0 0.0
  %791 = vmatpush1.msra.mxu0 0.0
  %792 = vmatprep.subr.mxu0 0.0
  %793 = vmatpush1.msra.mxu0 0.0
  %794 = vmatprep.subr.mxu0 0.0
  %795 = vmatpush1.msra.mxu0 0.0
  %796 = vmatprep.subr.mxu0 0.0
  %797 = vmatpush1.msra.mxu0 0.0
  %798 = vmatprep.subr.mxu0 0.0
  %799 = vmatpush1.msra.mxu0 0.0
  %800 = vmatprep.subr.mxu0 0.0
  %801 = vmatpush1.msra.mxu0 0.0
  %802 = vmatprep.subr.mxu0 0.0
  %803 = vmatpush1.msra.mxu0 0.0
  %804 = vmatprep.subr.mxu0 0.0
  %805 = vmatpush1.msra.mxu0 0.0
  %806 = vmatprep.subr.mxu0 0.0
  %807 = vmatpush1.msra.mxu0 0.0
  %808 = vmatprep.subr.mxu0 0.0
  %809 = vmatpush1.msra.mxu0 0.0
  %810 = vmatprep.subr.mxu0 0.0
  %811 = vmatpush1.msra.mxu0 0.0
  %812 = vmatprep.subr.mxu0 0.0
  %813 = vmatpush1.msra.mxu0 0.0
  %814 = vmatprep.subr.mxu0 0.0
  %815 = vmatpush1.msra.mxu0 0.0
  %816 = vmatprep.subr.mxu0 0.0
  %817 = vmatpush1.msra.mxu0 0.0
  %818 = vmatprep.subr.mxu0 0.0
  %819 = vmatpush1.msra.mxu0 0.0
  %820 = vmatprep.subr.mxu0 0.0
  %821 = vmatpush1.msra.mxu0 0.0
  %822 = vmatprep.mubr.f32.mxu0 0.0
  %823 = vmatmul.mubr.f32.gmra.mrb[0].mxu0 %v756
  %v824 = vpop.f32.mrb[0].mxu0
  %v825 = vadd.f32 0.0, %v824
  %v826 = vpop.f32.mrb[0].mxu0
  %827 = vdwg.mxu0
  %v828 = vadd.f32 %v587, %v825
  %vm829 = vcmask 258048
  %830 = vst.msk [vmem:[#allocation2] sm:$0x1f] %vm829, %v828
  %vm832 = vcmask 1042432
  %v833 = vrot.slane %v325, 5
  %v834 = vrot.slane %v330, 5
  %v835 = vsel %vm832, %v833, %v834
  %836 = vrot.lane.b32.xlu0 %v835, 96
  %v837 = vpop.permute.xlu0 %836
  %v838 = vsel %vm341, %v835, 0
  %v840 = vsel %vm341, %v837, 0
  %842 = vmatprep.subr.mxu0 0.0
  %843 = vmatpush1.xpose.msra.mxu0 %v840
  %844 = vmatprep.subr.mxu0 0.0
  %845 = vmatpush1.xpose.msra.mxu0 0.0
  %846 = vmatprep.subr.mxu0 0.0
  %847 = vmatpush1.xpose.msra.mxu0 0.0
  %848 = vmatprep.subr.mxu0 0.0
  %849 = vmatpush1.xpose.msra.mxu0 0.0
  %850 = vmatprep.subr.mxu0 0.0
  %851 = vmatpush1.xpose.msra.mxu0 0.0
  %852 = vmatprep.subr.mxu0 0.0
  %853 = vmatpush1.xpose.msra.mxu0 0.0
  %854 = vmatprep.subr.mxu0 0.0
  %855 = vmatpush1.xpose.msra.mxu0 0.0
  %856 = vmatprep.subr.mxu0 0.0
  %857 = vmatpush1.xpose.msra.mxu0 0.0
  %858 = vmatprep.subr.mxu0 0.0
  %859 = vmatpush1.xpose.msra.mxu0 0.0
  %860 = vmatprep.subr.mxu0 0.0
  %861 = vmatpush1.xpose.msra.mxu0 0.0
  %862 = vmatprep.subr.mxu0 0.0
  %863 = vmatpush1.xpose.msra.mxu0 0.0
  %864 = vmatprep.subr.mxu0 0.0
  %865 = vmatpush1.xpose.msra.mxu0 0.0
  %866 = vmatprep.subr.mxu0 0.0
  %867 = vmatpush1.xpose.msra.mxu0 0.0
  %868 = vmatprep.subr.mxu0 0.0
  %869 = vmatpush1.xpose.msra.mxu0 0.0
  %870 = vmatprep.subr.mxu0 0.0
  %871 = vmatpush1.xpose.msra.mxu0 0.0
  %872 = vmatprep.subr.mxu0 0.0
  %873 = vmatpush1.xpose.msra.mxu0 0.0
  %874 = vmatprep.subr.mxu0 0.0
  %875 = vmatpush1.xpose.msra.mxu0 0.0
  %876 = vmatprep.subr.mxu0 0.0
  %877 = vmatpush1.xpose.msra.mxu0 0.0
  %878 = vmatprep.subr.mxu0 0.0
  %879 = vmatpush1.xpose.msra.mxu0 0.0
  %880 = vmatprep.subr.mxu0 0.0
  %881 = vmatpush1.xpose.msra.mxu0 0.0
  %882 = vmatprep.subr.mxu0 0.0
  %883 = vmatpush1.xpose.msra.mxu0 0.0
  %884 = vmatprep.subr.mxu0 0.0
  %885 = vmatpush1.xpose.msra.mxu0 0.0
  %886 = vmatprep.subr.mxu0 0.0
  %887 = vmatpush1.xpose.msra.mxu0 0.0
  %888 = vmatprep.subr.mxu0 0.0
  %889 = vmatpush1.xpose.msra.mxu0 0.0
  %890 = vmatprep.subr.mxu0 0.0
  %891 = vmatpush1.xpose.msra.mxu0 0.0
  %892 = vmatprep.subr.mxu0 0.0
  %893 = vmatpush1.xpose.msra.mxu0 0.0
  %894 = vmatprep.subr.mxu0 0.0
  %895 = vmatpush1.xpose.msra.mxu0 0.0
  %896 = vmatprep.subr.mxu0 0.0
  %897 = vmatpush1.xpose.msra.mxu0 0.0
  %898 = vmatprep.subr.mxu0 0.0
  %899 = vmatpush1.xpose.msra.mxu0 0.0
  %900 = vmatprep.subr.mxu0 0.0
  %901 = vmatpush1.xpose.msra.mxu0 0.0
  %902 = vmatprep.subr.mxu0 0.0
  %903 = vmatpush1.xpose.msra.mxu0 0.0
  %904 = vmatprep.subr.mxu0 0.0
  %905 = vmatpush1.xpose.msra.mxu0 0.0
  %906 = vmatprep.mubr.f32.mxu0 0.0
  %907 = vmatmul.mubr.f32.gmra.mrb[0].mxu0 %v838
  %v908 = vpop.f32.mrb[0].mxu0
  %v909 = vadd.f32 0.0, %v908
  %v910 = vpop.f32.mrb[0].mxu0
  %911 = vdwg.mxu0
  %v912 = vmul.f32 %v909, 0.25
  %v913 = vsel %vm417, %v912, -inf
  %914 = vmax.xlane.f32.xlu0 %v913
  %v915 = vpop.xlane.xlu0 %914
  %v916 = vsub.f32 %v912, %v915
  %v917 = vmul.f32 %v916, 1.442695
  %v918 = vpow.pop %v917
  %v919 = vsel %vm417, %v918, 0.0
  %920 = vadd.xlane.f32.xlu0 %v919
  %v921 = vpop.xlane.xlu0 %920
  %v922 = vrcp.pop %v921
  %v923 = vmul.f32 %v918, %v922
  %924 = vrot.lane.b32.xlu0 %v835, 64
  %v925 = vpop.permute.xlu0 %924
  %v927 = vsel %vm431, %v923, 0
  %v929 = vsel %vm435, %v925, 0
  %931 = vmatprep.subr.mxu0 0.0
  %932 = vmatpush1.msra.mxu0 %v929
  %933 = vmatprep.subr.mxu0 0.0
  %934 = vmatpush1.msra.mxu0 0.0
  %935 = vmatprep.subr.mxu0 0.0
  %936 = vmatpush1.msra.mxu0 0.0
  %937 = vmatprep.subr.mxu0 0.0
  %938 = vmatpush1.msra.mxu0 0.0
  %939 = vmatprep.subr.mxu0 0.0
  %940 = vmatpush1.msra.mxu0 0.0
  %941 = vmatprep.subr.mxu0 0.0
  %942 = vmatpush1.msra.mxu0 0.0
  %943 = vmatprep.subr.mxu0 0.0
  %944 = vmatpush1.msra.mxu0 0.0
  %945 = vmatprep.subr.mxu0 0.0
  %946 = vmatpush1.msra.mxu0 0.0
  %947 = vmatprep.subr.mxu0 0.0
  %948 = vmatpush1.msra.mxu0 0.0
  %949 = vmatprep.subr.mxu0 0.0
  %950 = vmatpush1.msra.mxu0 0.0
  %951 = vmatprep.subr.mxu0 0.0
  %952 = vmatpush1.msra.mxu0 0.0
  %953 = vmatprep.subr.mxu0 0.0
  %954 = vmatpush1.msra.mxu0 0.0
  %955 = vmatprep.subr.mxu0 0.0
  %956 = vmatpush1.msra.mxu0 0.0
  %957 = vmatprep.subr.mxu0 0.0
  %958 = vmatpush1.msra.mxu0 0.0
  %959 = vmatprep.subr.mxu0 0.0
  %960 = vmatpush1.msra.mxu0 0.0
  %961 = vmatprep.subr.mxu0 0.0
  %962 = vmatpush1.msra.mxu0 0.0
  %963 = vmatprep.subr.mxu0 0.0
  %964 = vmatpush1.msra.mxu0 0.0
  %965 = vmatprep.subr.mxu0 0.0
  %966 = vmatpush1.msra.mxu0 0.0
  %967 = vmatprep.subr.mxu0 0.0
  %968 = vmatpush1.msra.mxu0 0.0
  %969 = vmatprep.subr.mxu0 0.0
  %970 = vmatpush1.msra.mxu0 0.0
  %971 = vmatprep.subr.mxu0 0.0
  %972 = vmatpush1.msra.mxu0 0.0
  %973 = vmatprep.subr.mxu0 0.0
  %974 = vmatpush1.msra.mxu0 0.0
  %975 = vmatprep.subr.mxu0 0.0
  %976 = vmatpush1.msra.mxu0 0.0
  %977 = vmatprep.subr.mxu0 0.0
  %978 = vmatpush1.msra.mxu0 0.0
  %979 = vmatprep.subr.mxu0 0.0
  %980 = vmatpush1.msra.mxu0 0.0
  %981 = vmatprep.subr.mxu0 0.0
  %982 = vmatpush1.msra.mxu0 0.0
  %983 = vmatprep.subr.mxu0 0.0
  %984 = vmatpush1.msra.mxu0 0.0
  %985 = vmatprep.subr.mxu0 0.0
  %986 = vmatpush1.msra.mxu0 0.0
  %987 = vmatprep.subr.mxu0 0.0
  %988 = vmatpush1.msra.mxu0 0.0
  %989 = vmatprep.subr.mxu0 0.0
  %990 = vmatpush1.msra.mxu0 0.0
  %991 = vmatprep.subr.mxu0 0.0
  %992 = vmatpush1.msra.mxu0 0.0
  %993 = vmatprep.subr.mxu0 0.0
  %994 = vmatpush1.msra.mxu0 0.0
  %995 = vmatprep.mubr.f32.mxu0 0.0
  %996 = vmatmul.mubr.f32.gmra.mrb[0].mxu0 %v927
  %v997 = vpop.f32.mrb[0].mxu0
  %v998 = vadd.f32 0.0, %v997
  %v999 = vpop.f32.mrb[0].mxu0
  %1000 = vdwg.mxu0
  %v1002 = vsel %vm341, %v998, 0
  %1004 = vmatprep.subr.mxu0 0.0
  %1005 = vmatpush1.msra.mxu0 %v333
  %1006 = vmatprep.subr.mxu0 0.0
  %1007 = vmatpush1.msra.mxu0 %v334
  %1008 = vmatprep.subr.mxu0 0.0
  %1009 = vmatpush1.msra.mxu0 0.0
  %1010 = vmatprep.subr.mxu0 0.0
  %1011 = vmatpush1.msra.mxu0 0.0
  %1012 = vmatprep.subr.mxu0 0.0
  %1013 = vmatpush1.msra.mxu0 0.0
  %1014 = vmatprep.subr.mxu0 0.0
  %1015 = vmatpush1.msra.mxu0 0.0
  %1016 = vmatprep.subr.mxu0 0.0
  %1017 = vmatpush1.msra.mxu0 0.0
  %1018 = vmatprep.subr.mxu0 0.0
  %1019 = vmatpush1.msra.mxu0 0.0
  %1020 = vmatprep.subr.mxu0 0.0
  %1021 = vmatpush1.msra.mxu0 0.0
  %1022 = vmatprep.subr.mxu0 0.0
  %1023 = vmatpush1.msra.mxu0 0.0
  %1024 = vmatprep.subr.mxu0 0.0
  %1025 = vmatpush1.msra.mxu0 0.0
  %1026 = vmatprep.subr.mxu0 0.0
  %1027 = vmatpush1.msra.mxu0 0.0
  %1028 = vmatprep.subr.mxu0 0.0
  %1029 = vmatpush1.msra.mxu0 0.0
  %1030 = vmatprep.subr.mxu0 0.0
  %1031 = vmatpush1.msra.mxu0 0.0
  %1032 = vmatprep.subr.mxu0 0.0
  %1033 = vmatpush1.msra.mxu0 0.0
  %1034 = vmatprep.subr.mxu0 0.0
  %1035 = vmatpush1.msra.mxu0 0.0
  %1036 = vmatprep.subr.mxu0 0.0
  %1037 = vmatpush1.msra.mxu0 0.0
  %1038 = vmatprep.subr.mxu0 0.0
  %1039 = vmatpush1.msra.mxu0 0.0
  %1040 = vmatprep.subr.mxu0 0.0
  %1041 = vmatpush1.msra.mxu0 0.0
  %1042 = vmatprep.subr.mxu0 0.0
  %1043 = vmatpush1.msra.mxu0 0.0
  %1044 = vmatprep.subr.mxu0 0.0
  %1045 = vmatpush1.msra.mxu0 0.0
  %1046 = vmatprep.subr.mxu0 0.0
  %1047 = vmatpush1.msra.mxu0 0.0
  %1048 = vmatprep.subr.mxu0 0.0
  %1049 = vmatpush1.msra.mxu0 0.0
  %1050 = vmatprep.subr.mxu0 0.0
  %1051 = vmatpush1.msra.mxu0 0.0
  %1052 = vmatprep.subr.mxu0 0.0
  %1053 = vmatpush1.msra.mxu0 0.0
  %1054 = vmatprep.subr.mxu0 0.0
  %1055 = vmatpush1.msra.mxu0 0.0
  %1056 = vmatprep.subr.mxu0 0.0
  %1057 = vmatpush1.msra.mxu0 0.0
  %1058 = vmatprep.subr.mxu0 0.0
  %1059 = vmatpush1.msra.mxu0 0.0
  %1060 = vmatprep.subr.mxu0 0.0
  %1061 = vmatpush1.msra.mxu0 0.0
  %1062 = vmatprep.subr.mxu0 0.0
  %1063 = vmatpush1.msra.mxu0 0.0
  %1064 = vmatprep.subr.mxu0 0.0
  %1065 = vmatpush1.msra.mxu0 0.0
  %1066 = vmatprep.subr.mxu0 0.0
  %1067 = vmatpush1.msra.mxu0 0.0
  %1068 = vmatprep.mubr.f32.mxu0 0.0
  %1069 = vmatmul.mubr.f32.gmra.mrb[0].mxu0 %v1002
  %v1070 = vpop.f32.mrb[0].mxu0
  %v1071 = vadd.f32 0.0, %v1070
  %v1072 = vpop.f32.mrb[0].mxu0
  %1073 = vdwg.mxu0
  %v1074 = vadd.f32 %v585, %v1071
  %1075 = vrot.lane.b32.xlu0 %v835, 112
  %v1076 = vpop.permute.xlu0 %1075
  %1077 = vrot.lane.b32.xlu0 %v835, 80
  %v1078 = vpop.permute.xlu0 %1077
  %v1079 = vsel %vm341, %v1076, 0
  %v1081 = vsel %vm341, %v1078, 0
  %1083 = vmatprep.subr.mxu0 0.0
  %1084 = vmatpush1.xpose.msra.mxu0 %v1081
  %1085 = vmatprep.subr.mxu0 0.0
  %1086 = vmatpush1.xpose.msra.mxu0 0.0
  %1087 = vmatprep.subr.mxu0 0.0
  %1088 = vmatpush1.xpose.msra.mxu0 0.0
  %1089 = vmatprep.subr.mxu0 0.0
  %1090 = vmatpush1.xpose.msra.mxu0 0.0
  %1091 = vmatprep.subr.mxu0 0.0
  %1092 = vmatpush1.xpose.msra.mxu0 0.0
  %1093 = vmatprep.subr.mxu0 0.0
  %1094 = vmatpush1.xpose.msra.mxu0 0.0
  %1095 = vmatprep.subr.mxu0 0.0
  %1096 = vmatpush1.xpose.msra.mxu0 0.0
  %1097 = vmatprep.subr.mxu0 0.0
  %1098 = vmatpush1.xpose.msra.mxu0 0.0
  %1099 = vmatprep.subr.mxu0 0.0
  %1100 = vmatpush1.xpose.msra.mxu0 0.0
  %1101 = vmatprep.subr.mxu0 0.0
  %1102 = vmatpush1.xpose.msra.mxu0 0.0
  %1103 = vmatprep.subr.mxu0 0.0
  %1104 = vmatpush1.xpose.msra.mxu0 0.0
  %1105 = vmatprep.subr.mxu0 0.0
  %1106 = vmatpush1.xpose.msra.mxu0 0.0
  %1107 = vmatprep.subr.mxu0 0.0
  %1108 = vmatpush1.xpose.msra.mxu0 0.0
  %1109 = vmatprep.subr.mxu0 0.0
  %1110 = vmatpush1.xpose.msra.mxu0 0.0
  %1111 = vmatprep.subr.mxu0 0.0
  %1112 = vmatpush1.xpose.msra.mxu0 0.0
  %1113 = vmatprep.subr.mxu0 0.0
  %1114 = vmatpush1.xpose.msra.mxu0 0.0
  %1115 = vmatprep.subr.mxu0 0.0
  %1116 = vmatpush1.xpose.msra.mxu0 0.0
  %1117 = vmatprep.subr.mxu0 0.0
  %1118 = vmatpush1.xpose.msra.mxu0 0.0
  %1119 = vmatprep.subr.mxu0 0.0
  %1120 = vmatpush1.xpose.msra.mxu0 0.0
  %1121 = vmatprep.subr.mxu0 0.0
  %1122 = vmatpush1.xpose.msra.mxu0 0.0
  %1123 = vmatprep.subr.mxu0 0.0
  %1124 = vmatpush1.xpose.msra.mxu0 0.0
  %1125 = vmatprep.subr.mxu0 0.0
  %1126 = vmatpush1.xpose.msra.mxu0 0.0
  %1127 = vmatprep.subr.mxu0 0.0
  %1128 = vmatpush1.xpose.msra.mxu0 0.0
  %1129 = vmatprep.subr.mxu0 0.0
  %1130 = vmatpush1.xpose.msra.mxu0 0.0
  %1131 = vmatprep.subr.mxu0 0.0
  %1132 = vmatpush1.xpose.msra.mxu0 0.0
  %1133 = vmatprep.subr.mxu0 0.0
  %1134 = vmatpush1.xpose.msra.mxu0 0.0
  %1135 = vmatprep.subr.mxu0 0.0
  %1136 = vmatpush1.xpose.msra.mxu0 0.0
  %1137 = vmatprep.subr.mxu0 0.0
  %1138 = vmatpush1.xpose.msra.mxu0 0.0
  %1139 = vmatprep.subr.mxu0 0.0
  %1140 = vmatpush1.xpose.msra.mxu0 0.0
  %1141 = vmatprep.subr.mxu0 0.0
  %1142 = vmatpush1.xpose.msra.mxu0 0.0
  %1143 = vmatprep.subr.mxu0 0.0
  %1144 = vmatpush1.xpose.msra.mxu0 0.0
  %1145 = vmatprep.subr.mxu0 0.0
  %1146 = vmatpush1.xpose.msra.mxu0 0.0
  %1147 = vmatprep.mubr.f32.mxu0 0.0
  %1148 = vmatmul.mubr.f32.gmra.mrb[0].mxu0 %v1079
  %v1149 = vpop.f32.mrb[0].mxu0
  %v1150 = vadd.f32 0.0, %v1149
  %v1151 = vpop.f32.mrb[0].mxu0
  %1152 = vdwg.mxu0
  %v1153 = vmul.f32 %v1150, 0.25
  %v1154 = vsel %vm417, %v1153, -inf
  %1155 = vmax.xlane.f32.xlu0 %v1154
  %v1156 = vpop.xlane.xlu0 %1155
  %v1157 = vsub.f32 %v1153, %v1156
  %v1158 = vmul.f32 %v1157, 1.442695
  %v1159 = vpow.pop %v1158
  %v1160 = vsel %vm417, %v1159, 0.0
  %1161 = vadd.xlane.f32.xlu0 %v1160
  %v1162 = vpop.xlane.xlu0 %1161
  %v1163 = vrcp.pop %v1162
  %v1164 = vmul.f32 %v1159, %v1163
  %1165 = vrot.lane.b32.xlu0 %v835, 48
  %v1166 = vpop.permute.xlu0 %1165
  %v1168 = vsel %vm431, %v1164, 0
  %v1170 = vsel %vm435, %v1166, 0
  %1172 = vmatprep.subr.mxu0 0.0
  %1173 = vmatpush1.msra.mxu0 %v1170
  %1174 = vmatprep.subr.mxu0 0.0
  %1175 = vmatpush1.msra.mxu0 0.0
  %1176 = vmatprep.subr.mxu0 0.0
  %1177 = vmatpush1.msra.mxu0 0.0
  %1178 = vmatprep.subr.mxu0 0.0
  %1179 = vmatpush1.msra.mxu0 0.0
  %1180 = vmatprep.subr.mxu0 0.0
  %1181 = vmatpush1.msra.mxu0 0.0
  %1182 = vmatprep.subr.mxu0 0.0
  %1183 = vmatpush1.msra.mxu0 0.0
  %1184 = vmatprep.subr.mxu0 0.0
  %1185 = vmatpush1.msra.mxu0 0.0
  %1186 = vmatprep.subr.mxu0 0.0
  %1187 = vmatpush1.msra.mxu0 0.0
  %1188 = vmatprep.subr.mxu0 0.0
  %1189 = vmatpush1.msra.mxu0 0.0
  %1190 = vmatprep.subr.mxu0 0.0
  %1191 = vmatpush1.msra.mxu0 0.0
  %1192 = vmatprep.subr.mxu0 0.0
  %1193 = vmatpush1.msra.mxu0 0.0
  %1194 = vmatprep.subr.mxu0 0.0
  %1195 = vmatpush1.msra.mxu0 0.0
  %1196 = vmatprep.subr.mxu0 0.0
  %1197 = vmatpush1.msra.mxu0 0.0
  %1198 = vmatprep.subr.mxu0 0.0
  %1199 = vmatpush1.msra.mxu0 0.0
  %1200 = vmatprep.subr.mxu0 0.0
  %1201 = vmatpush1.msra.mxu0 0.0
  %1202 = vmatprep.subr.mxu0 0.0
  %1203 = vmatpush1.msra.mxu0 0.0
  %1204 = vmatprep.subr.mxu0 0.0
  %1205 = vmatpush1.msra.mxu0 0.0
  %1206 = vmatprep.subr.mxu0 0.0
  %1207 = vmatpush1.msra.mxu0 0.0
  %1208 = vmatprep.subr.mxu0 0.0
  %1209 = vmatpush1.msra.mxu0 0.0
  %1210 = vmatprep.subr.mxu0 0.0
  %1211 = vmatpush1.msra.mxu0 0.0
  %1212 = vmatprep.subr.mxu0 0.0
  %1213 = vmatpush1.msra.mxu0 0.0
  %1214 = vmatprep.subr.mxu0 0.0
  %1215 = vmatpush1.msra.mxu0 0.0
  %1216 = vmatprep.subr.mxu0 0.0
  %1217 = vmatpush1.msra.mxu0 0.0
  %1218 = vmatprep.subr.mxu0 0.0
  %1219 = vmatpush1.msra.mxu0 0.0
  %1220 = vmatprep.subr.mxu0 0.0
  %1221 = vmatpush1.msra.mxu0 0.0
  %1222 = vmatprep.subr.mxu0 0.0
  %1223 = vmatpush1.msra.mxu0 0.0
  %1224 = vmatprep.subr.mxu0 0.0
  %1225 = vmatpush1.msra.mxu0 0.0
  %1226 = vmatprep.subr.mxu0 0.0
  %1227 = vmatpush1.msra.mxu0 0.0
  %1228 = vmatprep.subr.mxu0 0.0
  %1229 = vmatpush1.msra.mxu0 0.0
  %1230 = vmatprep.subr.mxu0 0.0
  %1231 = vmatpush1.msra.mxu0 0.0
  %1232 = vmatprep.subr.mxu0 0.0
  %1233 = vmatpush1.msra.mxu0 0.0
  %1234 = vmatprep.subr.mxu0 0.0
  %1235 = vmatpush1.msra.mxu0 0.0
  %1236 = vmatprep.mubr.f32.mxu0 0.0
  %1237 = vmatmul.mubr.f32.gmra.mrb[0].mxu0 %v1168
  %v1238 = vpop.f32.mrb[0].mxu0
  %v1239 = vadd.f32 0.0, %v1238
  %v1240 = vpop.f32.mrb[0].mxu0
  %1241 = vdwg.mxu0
  %v1243 = vsel %vm341, %v1239, 0
  %1245 = vmatprep.subr.mxu0 0.0
  %1246 = vmatpush1.msra.mxu0 %v335
  %1247 = vmatprep.subr.mxu0 0.0
  %1248 = vmatpush1.msra.mxu0 %v336
  %1249 = vmatprep.subr.mxu0 0.0
  %1250 = vmatpush1.msra.mxu0 0.0
  %1251 = vmatprep.subr.mxu0 0.0
  %1252 = vmatpush1.msra.mxu0 0.0
  %1253 = vmatprep.subr.mxu0 0.0
  %1254 = vmatpush1.msra.mxu0 0.0
  %1255 = vmatprep.subr.mxu0 0.0
  %1256 = vmatpush1.msra.mxu0 0.0
  %1257 = vmatprep.subr.mxu0 0.0
  %1258 = vmatpush1.msra.mxu0 0.0
  %1259 = vmatprep.subr.mxu0 0.0
  %1260 = vmatpush1.msra.mxu0 0.0
  %1261 = vmatprep.subr.mxu0 0.0
  %1262 = vmatpush1.msra.mxu0 0.0
  %1263 = vmatprep.subr.mxu0 0.0
  %1264 = vmatpush1.msra.mxu0 0.0
  %1265 = vmatprep.subr.mxu0 0.0
  %1266 = vmatpush1.msra.mxu0 0.0
  %1267 = vmatprep.subr.mxu0 0.0
  %1268 = vmatpush1.msra.mxu0 0.0
  %1269 = vmatprep.subr.mxu0 0.0
  %1270 = vmatpush1.msra.mxu0 0.0
  %1271 = vmatprep.subr.mxu0 0.0
  %1272 = vmatpush1.msra.mxu0 0.0
  %1273 = vmatprep.subr.mxu0 0.0
  %1274 = vmatpush1.msra.mxu0 0.0
  %1275 = vmatprep.subr.mxu0 0.0
  %1276 = vmatpush1.msra.mxu0 0.0
  %1277 = vmatprep.subr.mxu0 0.0
  %1278 = vmatpush1.msra.mxu0 0.0
  %1279 = vmatprep.subr.mxu0 0.0
  %1280 = vmatpush1.msra.mxu0 0.0
  %1281 = vmatprep.subr.mxu0 0.0
  %1282 = vmatpush1.msra.mxu0 0.0
  %1283 = vmatprep.subr.mxu0 0.0
  %1284 = vmatpush1.msra.mxu0 0.0
  %1285 = vmatprep.subr.mxu0 0.0
  %1286 = vmatpush1.msra.mxu0 0.0
  %1287 = vmatprep.subr.mxu0 0.0
  %1288 = vmatpush1.msra.mxu0 0.0
  %1289 = vmatprep.subr.mxu0 0.0
  %1290 = vmatpush1.msra.mxu0 0.0
  %1291 = vmatprep.subr.mxu0 0.0
  %1292 = vmatpush1.msra.mxu0 0.0
  %1293 = vmatprep.subr.mxu0 0.0
  %1294 = vmatpush1.msra.mxu0 0.0
  %1295 = vmatprep.subr.mxu0 0.0
  %1296 = vmatpush1.msra.mxu0 0.0
  %1297 = vmatprep.subr.mxu0 0.0
  %1298 = vmatpush1.msra.mxu0 0.0
  %1299 = vmatprep.subr.mxu0 0.0
  %1300 = vmatpush1.msra.mxu0 0.0
  %1301 = vmatprep.subr.mxu0 0.0
  %1302 = vmatpush1.msra.mxu0 0.0
  %1303 = vmatprep.subr.mxu0 0.0
  %1304 = vmatpush1.msra.mxu0 0.0
  %1305 = vmatprep.subr.mxu0 0.0
  %1306 = vmatpush1.msra.mxu0 0.0
  %1307 = vmatprep.subr.mxu0 0.0
  %1308 = vmatpush1.msra.mxu0 0.0
  %1309 = vmatprep.mubr.f32.mxu0 0.0
  %1310 = vmatmul.mubr.f32.gmra.mrb[0].mxu0 %v1243
  %v1311 = vpop.f32.mrb[0].mxu0
  %v1312 = vadd.f32 0.0, %v1311
  %v1313 = vpop.f32.mrb[0].mxu0
  %1314 = vdwg.mxu0
  %v1315 = vadd.f32 %v1074, %v1312
  %1316 = vst.msk [vmem:[#allocation2 + $0x5] sm:$0x1f] %vm829, %v1315
  %v1317 = vld [vmem:[#allocation2] sm:$0xff]
  %v1318 = vld [vmem:[#allocation2 + $0x8] sm:$0x3]
  %v1319 = vadd.f32 %v192, %v1317
  %v1320 = vadd.f32 %v193, %v1318
  %v1321 = vld [vmem:[%s11] sm:$0x1]
  %v1322 = vld [vmem:[%s12] sm:$0x1]
  %v1323 = vsel %vm196, %v1319, 0.0
  %1324 = vadd.xlane.f32.xlu0 %v1323
  %v1325 = vpop.xlane.xlu0 %1324
  %v1326 = vsel %vm200, %v1320, 0.0
  %1327 = vadd.xlane.f32.xlu0 %v1326
  %v1328 = vpop.xlane.xlu0 %1327
  %v1329 = vmul.f32 %v1325, %v204
  %v1330 = vmul.f32 %v1328, %v204
  %v1331 = vsub.f32 %v1319, %v1329
  %v1332 = vsub.f32 %v1320, %v1330
  %v1333 = vmul.f32 %v1331, %v1331
  %v1334 = vmul.f32 %v1332, %v1332
  %v1335 = vsel %vm196, %v1333, 0.0
  %1336 = vadd.xlane.f32.xlu0 %v1335
  %v1337 = vpop.xlane.xlu0 %1336
  %v1338 = vsel %vm200, %v1334, 0.0
  %1339 = vadd.xlane.f32.xlu0 %v1338
  %v1340 = vpop.xlane.xlu0 %1339
  %v1341 = vmul.f32 %v1337, %v204
  %v1342 = vmul.f32 %v1340, %v204
  %v1343 = vadd.f32 %v1341, 1e-12
  %v1344 = vadd.f32 %v1342, 1e-12
  %v1345 = vrsqrt.pop %v1343
  %v1346 = vrsqrt.pop %v1344
  %v1347 = vmul.f32 %v1331, %v1345
  %v1348 = vmul.f32 %v1332, %v1346
  %v1350 = vlaneseq
  %v1351 = vshrl.u32 %v1350, 7
  %v1352 = vsub.s32 0, %v1351
  %v1353 = vrot.slane %v1321, %v1352
  %v1355 = vmul.f32 %v1347, %v1353
  %v1356 = vmul.f32 %v1348, %v1353
  %v1358 = vlaneseq
  %v1359 = vshrl.u32 %v1358, 7
  %v1360 = vsub.s32 0, %v1359
  %v1361 = vrot.slane %v1322, %v1360
  %v1363 = vadd.f32 %v1355, %v1361
  %v1364 = vadd.f32 %v1356, %v1361
  %v1365 = vld [vmem:[%s13] sm:$0xff]
  %v1366 = vld [vmem:[%s13 + $0x8] sm:$0xff]
  %v1367 = vld [vmem:[%s13 + $0x10] sm:$0xff]
  %v1368 = vld [vmem:[%s13 + $0x18] sm:$0xff]
  %v1369 = vld [vmem:[%s14] sm:$0x1]
  %v1371 = vlaneseq
  %v1372 = vshrl.u32 %v1371, 7
  %v1373 = vsub.s32 0, %v1372
  %v1374 = vrot.slane %v1369, %v1373
  %v1377 = vsel %vm196, %v1363, 0
  %v1380 = vsel %vm196, %v1364, 0
  %1382 = vmatprep.subr.mxu0 0.0
  %1383 = vmatpush1.msra.mxu0 %v1365
  %1384 = vmatprep.subr.mxu0 0.0
  %1385 = vmatpush1.msra.mxu0 %v1366
  %1386 = vmatprep.subr.mxu0 0.0
  %1387 = vmatpush1.msra.mxu0 %v1367
  %1388 = vmatprep.subr.mxu0 0.0
  %1389 = vmatpush1.msra.mxu0 %v1368
  %1390 = vmatprep.subr.mxu0 0.0
  %1391 = vmatpush1.msra.mxu0 0.0
  %1392 = vmatprep.subr.mxu0 0.0
  %1393 = vmatpush1.msra.mxu0 0.0
  %1394 = vmatprep.subr.mxu0 0.0
  %1395 = vmatpush1.msra.mxu0 0.0
  %1396 = vmatprep.subr.mxu0 0.0
  %1397 = vmatpush1.msra.mxu0 0.0
  %1398 = vmatprep.subr.mxu0 0.0
  %1399 = vmatpush1.msra.mxu0 0.0
  %1400 = vmatprep.subr.mxu0 0.0
  %1401 = vmatpush1.msra.mxu0 0.0
  %1402 = vmatprep.subr.mxu0 0.0
  %1403 = vmatpush1.msra.mxu0 0.0
  %1404 = vmatprep.subr.mxu0 0.0
  %1405 = vmatpush1.msra.mxu0 0.0
  %1406 = vmatprep.subr.mxu0 0.0
  %1407 = vmatpush1.msra.mxu0 0.0
  %1408 = vmatprep.subr.mxu0 0.0
  %1409 = vmatpush1.msra.mxu0 0.0
  %1410 = vmatprep.subr.mxu0 0.0
  %1411 = vmatpush1.msra.mxu0 0.0
  %1412 = vmatprep.subr.mxu0 0.0
  %1413 = vmatpush1.msra.mxu0 0.0
  %1414 = vmatprep.subr.mxu0 0.0
  %1415 = vmatpush1.msra.mxu0 0.0
  %1416 = vmatprep.subr.mxu0 0.0
  %1417 = vmatpush1.msra.mxu0 0.0
  %1418 = vmatprep.subr.mxu0 0.0
  %1419 = vmatpush1.msra.mxu0 0.0
  %1420 = vmatprep.subr.mxu0 0.0
  %1421 = vmatpush1.msra.mxu0 0.0
  %1422 = vmatprep.subr.mxu0 0.0
  %1423 = vmatpush1.msra.mxu0 0.0
  %1424 = vmatprep.subr.mxu0 0.0
  %1425 = vmatpush1.msra.mxu0 0.0
  %1426 = vmatprep.subr.mxu0 0.0
  %1427 = vmatpush1.msra.mxu0 0.0
  %1428 = vmatprep.subr.mxu0 0.0
  %1429 = vmatpush1.msra.mxu0 0.0
  %1430 = vmatprep.subr.mxu0 0.0
  %1431 = vmatpush1.msra.mxu0 0.0
  %1432 = vmatprep.subr.mxu0 0.0
  %1433 = vmatpush1.msra.mxu0 0.0
  %1434 = vmatprep.subr.mxu0 0.0
  %1435 = vmatpush1.msra.mxu0 0.0
  %1436 = vmatprep.subr.mxu0 0.0
  %1437 = vmatpush1.msra.mxu0 0.0
  %1438 = vmatprep.subr.mxu0 0.0
  %1439 = vmatpush1.msra.mxu0 0.0
  %1440 = vmatprep.subr.mxu0 0.0
  %1441 = vmatpush1.msra.mxu0 0.0
  %1442 = vmatprep.subr.mxu0 0.0
  %1443 = vmatpush1.msra.mxu0 0.0
  %1444 = vmatprep.subr.mxu0 0.0
  %1445 = vmatpush1.msra.mxu0 0.0
  %1446 = vmatprep.mubr.f32.mxu0 0.0
  %1447 = vmatmul.mubr.f32.gmra.mrb[0].mxu0 %v1377
  %v1448 = vpop.f32.mrb[0].mxu0
  %v1449 = vadd.f32 %v1374, %v1448
  %v1450 = vpop.f32.mrb[0].mxu0
  %1451 = vmatprep.mubr.f32.mxu0 0.0
  %1452 = vmatmul.mubr.f32.gmra.mrb[0].mxu0 %v1380
  %v1453 = vpop.f32.mrb[0].mxu0
  %v1454 = vadd.f32 %v1374, %v1453
  %v1455 = vpop.f32.mrb[0].mxu0
  %1456 = vdwg.mxu0
  %v1457 = vmul.f32 %v1449, 0.5
  %v1458 = vmul.f32 %v1454, 0.5
  %v1459 = vmul.f32 %v1449, 0.70710677
  %v1460 = vmul.f32 %v1454, 0.70710677
  %v1461 = verf.f32.pop %v1459
  %v1462 = verf.f32.pop %v1460
  %v1463 = vadd.f32 %v1461, 1.0
  %v1464 = vadd.f32 %v1462, 1.0
  %v1465 = vmul.f32 %v1457, %v1463
  %v1466 = vmul.f32 %v1458, %v1464
  %v1467 = vld [vmem:[%s15] sm:$0xff]
  %v1468 = vld [vmem:[%s15 + $0x8] sm:$0xff]
  %v1469 = vld [vmem:[%s15 + $0x10] sm:$0xff]
  %v1470 = vld [vmem:[%s15 + $0x18] sm:$0xff]
  %v1471 = vld [vmem:[%s15 + $0x20] sm:$0xff]
  %v1472 = vld [vmem:[%s15 + $0x28] sm:$0xff]
  %v1473 = vld [vmem:[%s15 + $0x30] sm:$0xff]
  %v1474 = vld [vmem:[%s15 + $0x38] sm:$0xff]
  %v1475 = vld [vmem:[%s16] sm:$0x1]
  %v1477 = vlaneseq
  %v1478 = vshrl.u32 %v1477, 7
  %v1479 = vsub.s32 0, %v1478
  %v1480 = vrot.slane %v1475, %v1479
  %v1483 = vsel %vm101, %v1465, 0
  %v1486 = vsel %vm101, %v1466, 0
  %1488 = vmatprep.subr.mxu0 0.0
  %1489 = vmatpush1.msra.mxu0 %v1467
  %1490 = vmatprep.subr.mxu0 0.0
  %1491 = vmatpush1.msra.mxu0 %v1468
  %1492 = vmatprep.subr.mxu0 0.0
  %1493 = vmatpush1.msra.mxu0 %v1469
  %1494 = vmatprep.subr.mxu0 0.0
  %1495 = vmatpush1.msra.mxu0 %v1470
  %1496 = vmatprep.subr.mxu0 0.0
  %1497 = vmatpush1.msra.mxu0 %v1471
  %1498 = vmatprep.subr.mxu0 0.0
  %1499 = vmatpush1.msra.mxu0 %v1472
  %1500 = vmatprep.subr.mxu0 0.0
  %1501 = vmatpush1.msra.mxu0 %v1473
  %1502 = vmatprep.subr.mxu0 0.0
  %1503 = vmatpush1.msra.mxu0 %v1474
  %1504 = vmatprep.subr.mxu0 0.0
  %1505 = vmatpush1.msra.mxu0 0.0
  %1506 = vmatprep.subr.mxu0 0.0
  %1507 = vmatpush1.msra.mxu0 0.0
  %1508 = vmatprep.subr.mxu0 0.0
  %1509 = vmatpush1.msra.mxu0 0.0
  %1510 = vmatprep.subr.mxu0 0.0
  %1511 = vmatpush1.msra.mxu0 0.0
  %1512 = vmatprep.subr.mxu0 0.0
  %1513 = vmatpush1.msra.mxu0 0.0
  %1514 = vmatprep.subr.mxu0 0.0
  %1515 = vmatpush1.msra.mxu0 0.0
  %1516 = vmatprep.subr.mxu0 0.0
  %1517 = vmatpush1.msra.mxu0 0.0
  %1518 = vmatprep.subr.mxu0 0.0
  %1519 = vmatpush1.msra.mxu0 0.0
  %1520 = vmatprep.subr.mxu0 0.0
  %1521 = vmatpush1.msra.mxu0 0.0
  %1522 = vmatprep.subr.mxu0 0.0
  %1523 = vmatpush1.msra.mxu0 0.0
  %1524 = vmatprep.subr.mxu0 0.0
  %1525 = vmatpush1.msra.mxu0 0.0
  %1526 = vmatprep.subr.mxu0 0.0
  %1527 = vmatpush1.msra.mxu0 0.0
  %1528 = vmatprep.subr.mxu0 0.0
  %1529 = vmatpush1.msra.mxu0 0.0
  %1530 = vmatprep.subr.mxu0 0.0
  %1531 = vmatpush1.msra.mxu0 0.0
  %1532 = vmatprep.subr.mxu0 0.0
  %1533 = vmatpush1.msra.mxu0 0.0
  %1534 = vmatprep.subr.mxu0 0.0
  %1535 = vmatpush1.msra.mxu0 0.0
  %1536 = vmatprep.subr.mxu0 0.0
  %1537 = vmatpush1.msra.mxu0 0.0
  %1538 = vmatprep.subr.mxu0 0.0
  %1539 = vmatpush1.msra.mxu0 0.0
  %1540 = vmatprep.subr.mxu0 0.0
  %1541 = vmatpush1.msra.mxu0 0.0
  %1542 = vmatprep.subr.mxu0 0.0
  %1543 = vmatpush1.msra.mxu0 0.0
  %1544 = vmatprep.subr.mxu0 0.0
  %1545 = vmatpush1.msra.mxu0 0.0
  %1546 = vmatprep.subr.mxu0 0.0
  %1547 = vmatpush1.msra.mxu0 0.0
  %1548 = vmatprep.subr.mxu0 0.0
  %1549 = vmatpush1.msra.mxu0 0.0
  %1550 = vmatprep.subr.mxu0 0.0
  %1551 = vmatpush1.msra.mxu0 0.0
  %1552 = vmatprep.mubr.f32.mxu0 0.0
  %1553 = vmatmul.mubr.f32.gmra.mrb[0].mxu0 %v1483
  %v1554 = vpop.f32.mrb[0].mxu0
  %v1555 = vadd.f32 %v1480, %v1554
  %v1556 = vpop.f32.mrb[0].mxu0
  %1557 = vmatprep.mubr.f32.mxu0 0.0
  %1558 = vmatmul.mubr.f32.gmra.mrb[0].mxu0 %v1486
  %v1559 = vpop.f32.mrb[0].mxu0
  %v1560 = vadd.f32 %v1480, %v1559
  %v1561 = vpop.f32.mrb[0].mxu0
  %1562 = vdwg.mxu0
  %v1563 = vadd.f32 %v1319, %v1555
  %v1564 = vadd.f32 %v1320, %v1560
  %s1565 = scalar_lea.vmem %s5, 1
  %v1566 = vld [vmem:[%s1565] sm:$0x1]
  %s1567 = scalar_lea.vmem %s6, 1
  %v1568 = vld [vmem:[%s1567] sm:$0x1]
  %v1569 = vsel %vm196, %v1563, 0.0
  %1570 = vadd.xlane.f32.xlu0 %v1569
  %v1571 = vpop.xlane.xlu0 %1570
  %v1572 = vsel %vm200, %v1564, 0.0
  %1573 = vadd.xlane.f32.xlu0 %v1572
  %v1574 = vpop.xlane.xlu0 %1573
  %v1575 = vmul.f32 %v1571, %v204
  %v1576 = vmul.f32 %v1574, %v204
  %v1577 = vsub.f32 %v1563, %v1575
  %v1578 = vsub.f32 %v1564, %v1576
  %v1579 = vmul.f32 %v1577, %v1577
  %v1580 = vmul.f32 %v1578, %v1578
  %v1581 = vsel %vm196, %v1579, 0.0
  %1582 = vadd.xlane.f32.xlu0 %v1581
  %v1583 = vpop.xlane.xlu0 %1582
  %v1584 = vsel %vm200, %v1580, 0.0
  %1585 = vadd.xlane.f32.xlu0 %v1584
  %v1586 = vpop.xlane.xlu0 %1585
  %v1587 = vmul.f32 %v1583, %v204
  %v1588 = vmul.f32 %v1586, %v204
  %v1589 = vadd.f32 %v1587, 1e-12
  %v1590 = vadd.f32 %v1588, 1e-12
  %v1591 = vrsqrt.pop %v1589
  %v1592 = vrsqrt.pop %v1590
  %v1593 = vmul.f32 %v1577, %v1591
  %v1594 = vmul.f32 %v1578, %v1592
  %v1596 = vlaneseq
  %v1597 = vshrl.u32 %v1596, 7
  %v1598 = vsub.s32 0, %v1597
  %v1599 = vrot.slane %v1566, %v1598
  %v1601 = vmul.f32 %v1593, %v1599
  %v1602 = vmul.f32 %v1594, %v1599
  %v1604 = vlaneseq
  %v1605 = vshrl.u32 %v1604, 7
  %v1606 = vsub.s32 0, %v1605
  %v1607 = vrot.slane %v1568, %v1606
  %v1609 = vadd.f32 %v1601, %v1607
  %v1610 = vadd.f32 %v1602, %v1607
  %s1611 = scalar_lea.vmem %s7, 32
  %v1612 = vld [vmem:[%s1611] sm:$0xff]
  %v1613 = vld [vmem:[%s1611 + $0x8] sm:$0xff]
  %v1614 = vld [vmem:[%s1611 + $0x10] sm:$0xff]
  %v1615 = vld [vmem:[%s1611 + $0x18] sm:$0xff]
  %s1616 = scalar_lea.vmem %s8, 1
  %v1617 = vld [vmem:[%s1616] sm:$0x1]
  %v1619 = vlaneseq
  %v1620 = vshrl.u32 %v1619, 7
  %v1621 = vsub.s32 0, %v1620
  %v1622 = vrot.slane %v1617, %v1621
  %v1625 = vsel %vm196, %v1609, 0
  %v1628 = vsel %vm196, %v1610, 0
  %1630 = vmatprep.subr.mxu0 0.0
  %1631 = vmatpush1.msra.mxu0 %v1612
  %1632 = vmatprep.subr.mxu0 0.0
  %1633 = vmatpush1.msra.mxu0 %v1613
  %1634 = vmatprep.subr.mxu0 0.0
  %1635 = vmatpush1.msra.mxu0 %v1614
  %1636 = vmatprep.subr.mxu0 0.0
  %1637 = vmatpush1.msra.mxu0 %v1615
  %1638 = vmatprep.subr.mxu0 0.0
  %1639 = vmatpush1.msra.mxu0 0.0
  %1640 = vmatprep.subr.mxu0 0.0
  %1641 = vmatpush1.msra.mxu0 0.0
  %1642 = vmatprep.subr.mxu0 0.0
  %1643 = vmatpush1.msra.mxu0 0.0
  %1644 = vmatprep.subr.mxu0 0.0
  %1645 = vmatpush1.msra.mxu0 0.0
  %1646 = vmatprep.subr.mxu0 0.0
  %1647 = vmatpush1.msra.mxu0 0.0
  %1648 = vmatprep.subr.mxu0 0.0
  %1649 = vmatpush1.msra.mxu0 0.0
  %1650 = vmatprep.subr.mxu0 0.0
  %1651 = vmatpush1.msra.mxu0 0.0
  %1652 = vmatprep.subr.mxu0 0.0
  %1653 = vmatpush1.msra.mxu0 0.0
  %1654 = vmatprep.subr.mxu0 0.0
  %1655 = vmatpush1.msra.mxu0 0.0
  %1656 = vmatprep.subr.mxu0 0.0
  %1657 = vmatpush1.msra.mxu0 0.0
  %1658 = vmatprep.subr.mxu0 0.0
  %1659 = vmatpush1.msra.mxu0 0.0
  %1660 = vmatprep.subr.mxu0 0.0
  %1661 = vmatpush1.msra.mxu0 0.0
  %1662 = vmatprep.subr.mxu0 0.0
  %1663 = vmatpush1.msra.mxu0 0.0
  %1664 = vmatprep.subr.mxu0 0.0
  %1665 = vmatpush1.msra.mxu0 0.0
  %1666 = vmatprep.subr.mxu0 0.0
  %1667 = vmatpush1.msra.mxu0 0.0
  %1668 = vmatprep.subr.mxu0 0.0
  %1669 = vmatpush1.msra.mxu0 0.0
  %1670 = vmatprep.subr.mxu0 0.0
  %1671 = vmatpush1.msra.mxu0 0.0
  %1672 = vmatprep.subr.mxu0 0.0
  %1673 = vmatpush1.msra.mxu0 0.0
  %1674 = vmatprep.subr.mxu0 0.0
  %1675 = vmatpush1.msra.mxu0 0.0
  %1676 = vmatprep.subr.mxu0 0.0
  %1677 = vmatpush1.msra.mxu0 0.0
  %1678 = vmatprep.subr.mxu0 0.0
  %1679 = vmatpush1.msra.mxu0 0.0
  %1680 = vmatprep.subr.mxu0 0.0
  %1681 = vmatpush1.msra.mxu0 0.0
  %1682 = vmatprep.subr.mxu0 0.0
  %1683 = vmatpush1.msra.mxu0 0.0
  %1684 = vmatprep.subr.mxu0 0.0
  %1685 = vmatpush1.msra.mxu0 0.0
  %1686 = vmatprep.subr.mxu0 0.0
  %1687 = vmatpush1.msra.mxu0 0.0
  %1688 = vmatprep.subr.mxu0 0.0
  %1689 = vmatpush1.msra.mxu0 0.0
  %1690 = vmatprep.subr.mxu0 0.0
  %1691 = vmatpush1.msra.mxu0 0.0
  %1692 = vmatprep.subr.mxu0 0.0
  %1693 = vmatpush1.msra.mxu0 0.0
  %1694 = vmatprep.mubr.f32.mxu0 0.0
  %1695 = vmatmul.mubr.f32.gmra.mrb[0].mxu0 %v1625
  %v1696 = vpop.f32.mrb[0].mxu0
  %v1697 = vadd.f32 %v1622, %v1696
  %v1698 = vpop.f32.mrb[0].mxu0
  %1699 = vmatprep.mubr.f32.mxu0 0.0
  %1700 = vmatmul.mubr.f32.gmra.mrb[0].mxu0 %v1628
  %v1701 = vpop.f32.mrb[0].mxu0
  %v1702 = vadd.f32 %v1622, %v1701
  %v1703 = vpop.f32.mrb[0].mxu0
  %1704 = vdwg.mxu0
  %s1705 = scalar_lea.vmem %s9, 32
  %v1706 = vld [vmem:[%s1705] sm:$0xff]
  %v1707 = vld [vmem:[%s1705 + $0x8] sm:$0xff]
  %v1708 = vld [vmem:[%s1705 + $0x10] sm:$0xff]
  %v1709 = vld [vmem:[%s1705 + $0x18] sm:$0xff]
  %s1710 = scalar_lea.vmem %s10, 1
  %v1711 = vld [vmem:[%s1710] sm:$0x1]
  %1713 = vrot.lane.b32.xlu0 %v1697, 96
  %v1714 = vpop.permute.xlu0 %1713
  %v1715 = vsel %vm341, %v1697, 0
  %v1717 = vsel %vm341, %v1714, 0
  %1719 = vmatprep.subr.mxu0 0.0
  %1720 = vmatpush1.xpose.msra.mxu0 %v1717
  %1721 = vmatprep.subr.mxu0 0.0
  %1722 = vmatpush1.xpose.msra.mxu0 0.0
  %1723 = vmatprep.subr.mxu0 0.0
  %1724 = vmatpush1.xpose.msra.mxu0 0.0
  %1725 = vmatprep.subr.mxu0 0.0
  %1726 = vmatpush1.xpose.msra.mxu0 0.0
  %1727 = vmatprep.subr.mxu0 0.0
  %1728 = vmatpush1.xpose.msra.mxu0 0.0
  %1729 = vmatprep.subr.mxu0 0.0
  %1730 = vmatpush1.xpose.msra.mxu0 0.0
  %1731 = vmatprep.subr.mxu0 0.0
  %1732 = vmatpush1.xpose.msra.mxu0 0.0
  %1733 = vmatprep.subr.mxu0 0.0
  %1734 = vmatpush1.xpose.msra.mxu0 0.0
  %1735 = vmatprep.subr.mxu0 0.0
  %1736 = vmatpush1.xpose.msra.mxu0 0.0
  %1737 = vmatprep.subr.mxu0 0.0
  %1738 = vmatpush1.xpose.msra.mxu0 0.0
  %1739 = vmatprep.subr.mxu0 0.0
  %1740 = vmatpush1.xpose.msra.mxu0 0.0
  %1741 = vmatprep.subr.mxu0 0.0
  %1742 = vmatpush1.xpose.msra.mxu0 0.0
  %1743 = vmatprep.subr.mxu0 0.0
  %1744 = vmatpush1.xpose.msra.mxu0 0.0
  %1745 = vmatprep.subr.mxu0 0.0
  %1746 = vmatpush1.xpose.msra.mxu0 0.0
  %1747 = vmatprep.subr.mxu0 0.0
  %1748 = vmatpush1.xpose.msra.mxu0 0.0
  %1749 = vmatprep.subr.mxu0 0.0
  %1750 = vmatpush1.xpose.msra.mxu0 0.0
  %1751 = vmatprep.subr.mxu0 0.0
  %1752 = vmatpush1.xpose.msra.mxu0 0.0
  %1753 = vmatprep.subr.mxu0 0.0
  %1754 = vmatpush1.xpose.msra.mxu0 0.0
  %1755 = vmatprep.subr.mxu0 0.0
  %1756 = vmatpush1.xpose.msra.mxu0 0.0
  %1757 = vmatprep.subr.mxu0 0.0
  %1758 = vmatpush1.xpose.msra.mxu0 0.0
  %1759 = vmatprep.subr.mxu0 0.0
  %1760 = vmatpush1.xpose.msra.mxu0 0.0
  %1761 = vmatprep.subr.mxu0 0.0
  %1762 = vmatpush1.xpose.msra.mxu0 0.0
  %1763 = vmatprep.subr.mxu0 0.0
  %1764 = vmatpush1.xpose.msra.mxu0 0.0
  %1765 = vmatprep.subr.mxu0 0.0
  %1766 = vmatpush1.xpose.msra.mxu0 0.0
  %1767 = vmatprep.subr.mxu0 0.0
  %1768 = vmatpush1.xpose.msra.mxu0 0.0
  %1769 = vmatprep.subr.mxu0 0.0
  %1770 = vmatpush1.xpose.msra.mxu0 0.0
  %1771 = vmatprep.subr.mxu0 0.0
  %1772 = vmatpush1.xpose.msra.mxu0 0.0
  %1773 = vmatprep.subr.mxu0 0.0
  %1774 = vmatpush1.xpose.msra.mxu0 0.0
  %1775 = vmatprep.subr.mxu0 0.0
  %1776 = vmatpush1.xpose.msra.mxu0 0.0
  %1777 = vmatprep.subr.mxu0 0.0
  %1778 = vmatpush1.xpose.msra.mxu0 0.0
  %1779 = vmatprep.subr.mxu0 0.0
  %1780 = vmatpush1.xpose.msra.mxu0 0.0
  %1781 = vmatprep.subr.mxu0 0.0
  %1782 = vmatpush1.xpose.msra.mxu0 0.0
  %1783 = vmatprep.mubr.f32.mxu0 0.0
  %1784 = vmatmul.mubr.f32.gmra.mrb[0].mxu0 %v1715
  %v1785 = vpop.f32.mrb[0].mxu0
  %v1786 = vadd.f32 0.0, %v1785
  %v1787 = vpop.f32.mrb[0].mxu0
  %1788 = vdwg.mxu0
  %v1789 = vmul.f32 %v1786, 0.25
  %v1790 = vsel %vm417, %v1789, -inf
  %1791 = vmax.xlane.f32.xlu0 %v1790
  %v1792 = vpop.xlane.xlu0 %1791
  %v1793 = vsub.f32 %v1789, %v1792
  %v1794 = vmul.f32 %v1793, 1.442695
  %v1795 = vpow.pop %v1794
  %v1796 = vsel %vm417, %v1795, 0.0
  %1797 = vadd.xlane.f32.xlu0 %v1796
  %v1798 = vpop.xlane.xlu0 %1797
  %v1799 = vrcp.pop %v1798
  %v1800 = vmul.f32 %v1795, %v1799
  %1801 = vrot.lane.b32.xlu0 %v1697, 64
  %v1802 = vpop.permute.xlu0 %1801
  %v1804 = vsel %vm431, %v1800, 0
  %v1806 = vsel %vm435, %v1802, 0
  %1808 = vmatprep.subr.mxu0 0.0
  %1809 = vmatpush1.msra.mxu0 %v1806
  %1810 = vmatprep.subr.mxu0 0.0
  %1811 = vmatpush1.msra.mxu0 0.0
  %1812 = vmatprep.subr.mxu0 0.0
  %1813 = vmatpush1.msra.mxu0 0.0
  %1814 = vmatprep.subr.mxu0 0.0
  %1815 = vmatpush1.msra.mxu0 0.0
  %1816 = vmatprep.subr.mxu0 0.0
  %1817 = vmatpush1.msra.mxu0 0.0
  %1818 = vmatprep.subr.mxu0 0.0
  %1819 = vmatpush1.msra.mxu0 0.0
  %1820 = vmatprep.subr.mxu0 0.0
  %1821 = vmatpush1.msra.mxu0 0.0
  %1822 = vmatprep.subr.mxu0 0.0
  %1823 = vmatpush1.msra.mxu0 0.0
  %1824 = vmatprep.subr.mxu0 0.0
  %1825 = vmatpush1.msra.mxu0 0.0
  %1826 = vmatprep.subr.mxu0 0.0
  %1827 = vmatpush1.msra.mxu0 0.0
  %1828 = vmatprep.subr.mxu0 0.0
  %1829 = vmatpush1.msra.mxu0 0.0
  %1830 = vmatprep.subr.mxu0 0.0
  %1831 = vmatpush1.msra.mxu0 0.0
  %1832 = vmatprep.subr.mxu0 0.0
  %1833 = vmatpush1.msra.mxu0 0.0
  %1834 = vmatprep.subr.mxu0 0.0
  %1835 = vmatpush1.msra.mxu0 0.0
  %1836 = vmatprep.subr.mxu0 0.0
  %1837 = vmatpush1.msra.mxu0 0.0
  %1838 = vmatprep.subr.mxu0 0.0
  %1839 = vmatpush1.msra.mxu0 0.0
  %1840 = vmatprep.subr.mxu0 0.0
  %1841 = vmatpush1.msra.mxu0 0.0
  %1842 = vmatprep.subr.mxu0 0.0
  %1843 = vmatpush1.msra.mxu0 0.0
  %1844 = vmatprep.subr.mxu0 0.0
  %1845 = vmatpush1.msra.mxu0 0.0
  %1846 = vmatprep.subr.mxu0 0.0
  %1847 = vmatpush1.msra.mxu0 0.0
  %1848 = vmatprep.subr.mxu0 0.0
  %1849 = vmatpush1.msra.mxu0 0.0
  %1850 = vmatprep.subr.mxu0 0.0
  %1851 = vmatpush1.msra.mxu0 0.0
  %1852 = vmatprep.subr.mxu0 0.0
  %1853 = vmatpush1.msra.mxu0 0.0
  %1854 = vmatprep.subr.mxu0 0.0
  %1855 = vmatpush1.msra.mxu0 0.0
  %1856 = vmatprep.subr.mxu0 0.0
  %1857 = vmatpush1.msra.mxu0 0.0
  %1858 = vmatprep.subr.mxu0 0.0
  %1859 = vmatpush1.msra.mxu0 0.0
  %1860 = vmatprep.subr.mxu0 0.0
  %1861 = vmatpush1.msra.mxu0 0.0
  %1862 = vmatprep.subr.mxu0 0.0
  %1863 = vmatpush1.msra.mxu0 0.0
  %1864 = vmatprep.subr.mxu0 0.0
  %1865 = vmatpush1.msra.mxu0 0.0
  %1866 = vmatprep.subr.mxu0 0.0
  %1867 = vmatpush1.msra.mxu0 0.0
  %1868 = vmatprep.subr.mxu0 0.0
  %1869 = vmatpush1.msra.mxu0 0.0
  %1870 = vmatprep.subr.mxu0 0.0
  %1871 = vmatpush1.msra.mxu0 0.0
  %1872 = vmatprep.mubr.f32.mxu0 0.0
  %1873 = vmatmul.mubr.f32.gmra.mrb[0].mxu0 %v1804
  %v1874 = vpop.f32.mrb[0].mxu0
  %v1875 = vadd.f32 0.0, %v1874
  %v1876 = vpop.f32.mrb[0].mxu0
  %1877 = vdwg.mxu0
  %v1879 = vsel %vm341, %v1875, 0
  %1881 = vmatprep.subr.mxu0 0.0
  %1882 = vmatpush1.msra.mxu0 %v1706
  %1883 = vmatprep.subr.mxu0 0.0
  %1884 = vmatpush1.msra.mxu0 %v1707
  %1885 = vmatprep.subr.mxu0 0.0
  %1886 = vmatpush1.msra.mxu0 0.0
  %1887 = vmatprep.subr.mxu0 0.0
  %1888 = vmatpush1.msra.mxu0 0.0
  %1889 = vmatprep.subr.mxu0 0.0
  %1890 = vmatpush1.msra.mxu0 0.0
  %1891 = vmatprep.subr.mxu0 0.0
  %1892 = vmatpush1.msra.mxu0 0.0
  %1893 = vmatprep.subr.mxu0 0.0
  %1894 = vmatpush1.msra.mxu0 0.0
  %1895 = vmatprep.subr.mxu0 0.0
  %1896 = vmatpush1.msra.mxu0 0.0
  %1897 = vmatprep.subr.mxu0 0.0
  %1898 = vmatpush1.msra.mxu0 0.0
  %1899 = vmatprep.subr.mxu0 0.0
  %1900 = vmatpush1.msra.mxu0 0.0
  %1901 = vmatprep.subr.mxu0 0.0
  %1902 = vmatpush1.msra.mxu0 0.0
  %1903 = vmatprep.subr.mxu0 0.0
  %1904 = vmatpush1.msra.mxu0 0.0
  %1905 = vmatprep.subr.mxu0 0.0
  %1906 = vmatpush1.msra.mxu0 0.0
  %1907 = vmatprep.subr.mxu0 0.0
  %1908 = vmatpush1.msra.mxu0 0.0
  %1909 = vmatprep.subr.mxu0 0.0
  %1910 = vmatpush1.msra.mxu0 0.0
  %1911 = vmatprep.subr.mxu0 0.0
  %1912 = vmatpush1.msra.mxu0 0.0
  %1913 = vmatprep.subr.mxu0 0.0
  %1914 = vmatpush1.msra.mxu0 0.0
  %1915 = vmatprep.subr.mxu0 0.0
  %1916 = vmatpush1.msra.mxu0 0.0
  %1917 = vmatprep.subr.mxu0 0.0
  %1918 = vmatpush1.msra.mxu0 0.0
  %1919 = vmatprep.subr.mxu0 0.0
  %1920 = vmatpush1.msra.mxu0 0.0
  %1921 = vmatprep.subr.mxu0 0.0
  %1922 = vmatpush1.msra.mxu0 0.0
  %1923 = vmatprep.subr.mxu0 0.0
  %1924 = vmatpush1.msra.mxu0 0.0
  %1925 = vmatprep.subr.mxu0 0.0
  %1926 = vmatpush1.msra.mxu0 0.0
  %1927 = vmatprep.subr.mxu0 0.0
  %1928 = vmatpush1.msra.mxu0 0.0
  %1929 = vmatprep.subr.mxu0 0.0
  %1930 = vmatpush1.msra.mxu0 0.0
  %1931 = vmatprep.subr.mxu0 0.0
  %1932 = vmatpush1.msra.mxu0 0.0
  %1933 = vmatprep.subr.mxu0 0.0
  %1934 = vmatpush1.msra.mxu0 0.0
  %1935 = vmatprep.subr.mxu0 0.0
  %1936 = vmatpush1.msra.mxu0 0.0
  %1937 = vmatprep.subr.mxu0 0.0
  %1938 = vmatpush1.msra.mxu0 0.0
  %1939 = vmatprep.subr.mxu0 0.0
  %1940 = vmatpush1.msra.mxu0 0.0
  %1941 = vmatprep.subr.mxu0 0.0
  %1942 = vmatpush1.msra.mxu0 0.0
  %1943 = vmatprep.subr.mxu0 0.0
  %1944 = vmatpush1.msra.mxu0 0.0
  %1945 = vmatprep.mubr.f32.mxu0 0.0
  %1946 = vmatmul.mubr.f32.gmra.mrb[0].mxu0 %v1879
  %v1947 = vpop.f32.mrb[0].mxu0
  %v1948 = vadd.f32 0.0, %v1947
  %v1949 = vpop.f32.mrb[0].mxu0
  %1950 = vdwg.mxu0
  %v1952 = vlaneseq
  %v1953 = vshrl.u32 %v1952, 7
  %v1954 = vsub.s32 0, %v1953
  %v1955 = vrot.slane %v1711, %v1954
  %v1957 = vadd.f32 %v1955, %v1948
  %1958 = vrot.lane.b32.xlu0 %v1697, 112
  %v1959 = vpop.permute.xlu0 %1958
  %1960 = vrot.lane.b32.xlu0 %v1697, 80
  %v1961 = vpop.permute.xlu0 %1960
  %v1962 = vsel %vm341, %v1959, 0
  %v1964 = vsel %vm341, %v1961, 0
  %1966 = vmatprep.subr.mxu0 0.0
  %1967 = vmatpush1.xpose.msra.mxu0 %v1964
  %1968 = vmatprep.subr.mxu0 0.0
  %1969 = vmatpush1.xpose.msra.mxu0 0.0
  %1970 = vmatprep.subr.mxu0 0.0
  %1971 = vmatpush1.xpose.msra.mxu0 0.0
  %1972 = vmatprep.subr.mxu0 0.0
  %1973 = vmatpush1.xpose.msra.mxu0 0.0
  %1974 = vmatprep.subr.mxu0 0.0
  %1975 = vmatpush1.xpose.msra.mxu0 0.0
  %1976 = vmatprep.subr.mxu0 0.0
  %1977 = vmatpush1.xpose.msra.mxu0 0.0
  %1978 = vmatprep.subr.mxu0 0.0
  %1979 = vmatpush1.xpose.msra.mxu0 0.0
  %1980 = vmatprep.subr.mxu0 0.0
  %1981 = vmatpush1.xpose.msra.mxu0 0.0
  %1982 = vmatprep.subr.mxu0 0.0
  %1983 = vmatpush1.xpose.msra.mxu0 0.0
  %1984 = vmatprep.subr.mxu0 0.0
  %1985 = vmatpush1.xpose.msra.mxu0 0.0
  %1986 = vmatprep.subr.mxu0 0.0
  %1987 = vmatpush1.xpose.msra.mxu0 0.0
  %1988 = vmatprep.subr.mxu0 0.0
  %1989 = vmatpush1.xpose.msra.mxu0 0.0
  %1990 = vmatprep.subr.mxu0 0.0
  %1991 = vmatpush1.xpose.msra.mxu0 0.0
  %1992 = vmatprep.subr.mxu0 0.0
  %1993 = vmatpush1.xpose.msra.mxu0 0.0
  %1994 = vmatprep.subr.mxu0 0.0
  %1995 = vmatpush1.xpose.msra.mxu0 0.0
  %1996 = vmatprep.subr.mxu0 0.0
  %1997 = vmatpush1.xpose.msra.mxu0 0.0
  %1998 = vmatprep.subr.mxu0 0.0
  %1999 = vmatpush1.xpose.msra.mxu0 0.0
  %2000 = vmatprep.subr.mxu0 0.0
  %2001 = vmatpush1.xpose.msra.mxu0 0.0
  %2002 = vmatprep.subr.mxu0 0.0
  %2003 = vmatpush1.xpose.msra.mxu0 0.0
  %2004 = vmatprep.subr.mxu0 0.0
  %2005 = vmatpush1.xpose.msra.mxu0 0.0
  %2006 = vmatprep.subr.mxu0 0.0
  %2007 = vmatpush1.xpose.msra.mxu0 0.0
  %2008 = vmatprep.subr.mxu0 0.0
  %2009 = vmatpush1.xpose.msra.mxu0 0.0
  %2010 = vmatprep.subr.mxu0 0.0
  %2011 = vmatpush1.xpose.msra.mxu0 0.0
  %2012 = vmatprep.subr.mxu0 0.0
  %2013 = vmatpush1.xpose.msra.mxu0 0.0
  %2014 = vmatprep.subr.mxu0 0.0
  %2015 = vmatpush1.xpose.msra.mxu0 0.0
  %2016 = vmatprep.subr.mxu0 0.0
  %2017 = vmatpush1.xpose.msra.mxu0 0.0
  %2018 = vmatprep.subr.mxu0 0.0
  %2019 = vmatpush1.xpose.msra.mxu0 0.0
  %2020 = vmatprep.subr.mxu0 0.0
  %2021 = vmatpush1.xpose.msra.mxu0 0.0
  %2022 = vmatprep.subr.mxu0 0.0
  %2023 = vmatpush1.xpose.msra.mxu0 0.0
  %2024 = vmatprep.subr.mxu0 0.0
  %2025 = vmatpush1.xpose.msra.mxu0 0.0
  %2026 = vmatprep.subr.mxu0 0.0
  %2027 = vmatpush1.xpose.msra.mxu0 0.0
  %2028 = vmatprep.subr.mxu0 0.0
  %2029 = vmatpush1.xpose.msra.mxu0 0.0
  %2030 = vmatprep.mubr.f32.mxu0 0.0
  %2031 = vmatmul.mubr.f32.gmra.mrb[0].mxu0 %v1962
  %v2032 = vpop.f32.mrb[0].mxu0
  %v2033 = vadd.f32 0.0, %v2032
  %v2034 = vpop.f32.mrb[0].mxu0
  %2035 = vdwg.mxu0
  %v2036 = vmul.f32 %v2033, 0.25
  %v2037 = vsel %vm417, %v2036, -inf
  %2038 = vmax.xlane.f32.xlu0 %v2037
  %v2039 = vpop.xlane.xlu0 %2038
  %v2040 = vsub.f32 %v2036, %v2039
  %v2041 = vmul.f32 %v2040, 1.442695
  %v2042 = vpow.pop %v2041
  %v2043 = vsel %vm417, %v2042, 0.0
  %2044 = vadd.xlane.f32.xlu0 %v2043
  %v2045 = vpop.xlane.xlu0 %2044
  %v2046 = vrcp.pop %v2045
  %v2047 = vmul.f32 %v2042, %v2046
  %2048 = vrot.lane.b32.xlu0 %v1697, 48
  %v2049 = vpop.permute.xlu0 %2048
  %v2051 = vsel %vm431, %v2047, 0
  %v2053 = vsel %vm435, %v2049, 0
  %2055 = vmatprep.subr.mxu0 0.0
  %2056 = vmatpush1.msra.mxu0 %v2053
  %2057 = vmatprep.subr.mxu0 0.0
  %2058 = vmatpush1.msra.mxu0 0.0
  %2059 = vmatprep.subr.mxu0 0.0
  %2060 = vmatpush1.msra.mxu0 0.0
  %2061 = vmatprep.subr.mxu0 0.0
  %2062 = vmatpush1.msra.mxu0 0.0
  %2063 = vmatprep.subr.mxu0 0.0
  %2064 = vmatpush1.msra.mxu0 0.0
  %2065 = vmatprep.subr.mxu0 0.0
  %2066 = vmatpush1.msra.mxu0 0.0
  %2067 = vmatprep.subr.mxu0 0.0
  %2068 = vmatpush1.msra.mxu0 0.0
  %2069 = vmatprep.subr.mxu0 0.0
  %2070 = vmatpush1.msra.mxu0 0.0
  %2071 = vmatprep.subr.mxu0 0.0
  %2072 = vmatpush1.msra.mxu0 0.0
  %2073 = vmatprep.subr.mxu0 0.0
  %2074 = vmatpush1.msra.mxu0 0.0
  %2075 = vmatprep.subr.mxu0 0.0
  %2076 = vmatpush1.msra.mxu0 0.0
  %2077 = vmatprep.subr.mxu0 0.0
  %2078 = vmatpush1.msra.mxu0 0.0
  %2079 = vmatprep.subr.mxu0 0.0
  %2080 = vmatpush1.msra.mxu0 0.0
  %2081 = vmatprep.subr.mxu0 0.0
  %2082 = vmatpush1.msra.mxu0 0.0
  %2083 = vmatprep.subr.mxu0 0.0
  %2084 = vmatpush1.msra.mxu0 0.0
  %2085 = vmatprep.subr.mxu0 0.0
  %2086 = vmatpush1.msra.mxu0 0.0
  %2087 = vmatprep.subr.mxu0 0.0
  %2088 = vmatpush1.msra.mxu0 0.0
  %2089 = vmatprep.subr.mxu0 0.0
  %2090 = vmatpush1.msra.mxu0 0.0
  %2091 = vmatprep.subr.mxu0 0.0
  %2092 = vmatpush1.msra.mxu0 0.0
  %2093 = vmatprep.subr.mxu0 0.0
  %2094 = vmatpush1.msra.mxu0 0.0
  %2095 = vmatprep.subr.mxu0 0.0
  %2096 = vmatpush1.msra.mxu0 0.0
  %2097 = vmatprep.subr.mxu0 0.0
  %2098 = vmatpush1.msra.mxu0 0.0
  %2099 = vmatprep.subr.mxu0 0.0
  %2100 = vmatpush1.msra.mxu0 0.0
  %2101 = vmatprep.subr.mxu0 0.0
  %2102 = vmatpush1.msra.mxu0 0.0
  %2103 = vmatprep.subr.mxu0 0.0
  %2104 = vmatpush1.msra.mxu0 0.0
  %2105 = vmatprep.subr.mxu0 0.0
  %2106 = vmatpush1.msra.mxu0 0.0
  %2107 = vmatprep.subr.mxu0 0.0
  %2108 = vmatpush1.msra.mxu0 0.0
  %2109 = vmatprep.subr.mxu0 0.0
  %2110 = vmatpush1.msra.mxu0 0.0
  %2111 = vmatprep.subr.mxu0 0.0
  %2112 = vmatpush1.msra.mxu0 0.0
  %2113 = vmatprep.subr.mxu0 0.0
  %2114 = vmatpush1.msra.mxu0 0.0
  %2115 = vmatprep.subr.mxu0 0.0
  %2116 = vmatpush1.msra.mxu0 0.0
  %2117 = vmatprep.subr.mxu0 0.0
  %2118 = vmatpush1.msra.mxu0 0.0
  %2119 = vmatprep.mubr.f32.mxu0 0.0
  %2120 = vmatmul.mubr.f32.gmra.mrb[0].mxu0 %v2051
  %v2121 = vpop.f32.mrb[0].mxu0
  %v2122 = vadd.f32 0.0, %v2121
  %v2123 = vpop.f32.mrb[0].mxu0
  %2124 = vdwg.mxu0
  %v2126 = vsel %vm341, %v2122, 0
  %2128 = vmatprep.subr.mxu0 0.0
  %2129 = vmatpush1.msra.mxu0 %v1708
  %2130 = vmatprep.subr.mxu0 0.0
  %2131 = vmatpush1.msra.mxu0 %v1709
  %2132 = vmatprep.subr.mxu0 0.0
  %2133 = vmatpush1.msra.mxu0 0.0
  %2134 = vmatprep.subr.mxu0 0.0
  %2135 = vmatpush1.msra.mxu0 0.0
  %2136 = vmatprep.subr.mxu0 0.0
  %2137 = vmatpush1.msra.mxu0 0.0
  %2138 = vmatprep.subr.mxu0 0.0
  %2139 = vmatpush1.msra.mxu0 0.0
  %2140 = vmatprep.subr.mxu0 0.0
  %2141 = vmatpush1.msra.mxu0 0.0
  %2142 = vmatprep.subr.mxu0 0.0
  %2143 = vmatpush1.msra.mxu0 0.0
  %2144 = vmatprep.subr.mxu0 0.0
  %2145 = vmatpush1.msra.mxu0 0.0
  %2146 = vmatprep.subr.mxu0 0.0
  %2147 = vmatpush1.msra.mxu0 0.0
  %2148 = vmatprep.subr.mxu0 0.0
  %2149 = vmatpush1.msra.mxu0 0.0
  %2150 = vmatprep.subr.mxu0 0.0
  %2151 = vmatpush1.msra.mxu0 0.0
  %2152 = vmatprep.subr.mxu0 0.0
  %2153 = vmatpush1.msra.mxu0 0.0
  %2154 = vmatprep.subr.mxu0 0.0
  %2155 = vmatpush1.msra.mxu0 0.0
  %2156 = vmatprep.subr.mxu0 0.0
  %2157 = vmatpush1.msra.mxu0 0.0
  %2158 = vmatprep.subr.mxu0 0.0
  %2159 = vmatpush1.msra.mxu0 0.0
  %2160 = vmatprep.subr.mxu0 0.0
  %2161 = vmatpush1.msra.mxu0 0.0
  %2162 = vmatprep.subr.mxu0 0.0
  %2163 = vmatpush1.msra.mxu0 0.0
  %2164 = vmatprep.subr.mxu0 0.0
  %2165 = vmatpush1.msra.mxu0 0.0
  %2166 = vmatprep.subr.mxu0 0.0
  %2167 = vmatpush1.msra.mxu0 0.0
  %2168 = vmatprep.subr.mxu0 0.0
  %2169 = vmatpush1.msra.mxu0 0.0
  %2170 = vmatprep.subr.mxu0 0.0
  %2171 = vmatpush1.msra.mxu0 0.0
  %2172 = vmatprep.subr.mxu0 0.0
  %2173 = vmatpush1.msra.mxu0 0.0
  %2174 = vmatprep.subr.mxu0 0.0
  %2175 = vmatpush1.msra.mxu0 0.0
  %2176 = vmatprep.subr.mxu0 0.0
  %2177 = vmatpush1.msra.mxu0 0.0
  %2178 = vmatprep.subr.mxu0 0.0
  %2179 = vmatpush1.msra.mxu0 0.0
  %2180 = vmatprep.subr.mxu0 0.0
  %2181 = vmatpush1.msra.mxu0 0.0
  %2182 = vmatprep.subr.mxu0 0.0
  %2183 = vmatpush1.msra.mxu0 0.0
  %2184 = vmatprep.subr.mxu0 0.0
  %2185 = vmatpush1.msra.mxu0 0.0
  %2186 = vmatprep.subr.mxu0 0.0
  %2187 = vmatpush1.msra.mxu0 0.0
  %2188 = vmatprep.subr.mxu0 0.0
  %2189 = vmatpush1.msra.mxu0 0.0
  %2190 = vmatprep.subr.mxu0 0.0
  %2191 = vmatpush1.msra.mxu0 0.0
  %2192 = vmatprep.mubr.f32.mxu0 0.0
  %2193 = vmatmul.mubr.f32.gmra.mrb[0].mxu0 %v2126
  %v2194 = vpop.f32.mrb[0].mxu0
  %v2195 = vadd.f32 0.0, %v2194
  %v2196 = vpop.f32.mrb[0].mxu0
  %2197 = vdwg.mxu0
  %v2198 = vadd.f32 %v1957, %v2195
  %2199 = vst.msk [vmem:[#allocation2] sm:$0x1f] %vm829, %v2198
  %v2201 = vrot.slane %v1697, 5
  %v2202 = vrot.slane %v1702, 5
  %v2203 = vsel %vm832, %v2201, %v2202
  %2204 = vrot.lane.b32.xlu0 %v2203, 96
  %v2205 = vpop.permute.xlu0 %2204
  %v2206 = vsel %vm341, %v2203, 0
  %v2208 = vsel %vm341, %v2205, 0
  %2210 = vmatprep.subr.mxu0 0.0
  %2211 = vmatpush1.xpose.msra.mxu0 %v2208
  %2212 = vmatprep.subr.mxu0 0.0
  %2213 = vmatpush1.xpose.msra.mxu0 0.0
  %2214 = vmatprep.subr.mxu0 0.0
  %2215 = vmatpush1.xpose.msra.mxu0 0.0
  %2216 = vmatprep.subr.mxu0 0.0
  %2217 = vmatpush1.xpose.msra.mxu0 0.0
  %2218 = vmatprep.subr.mxu0 0.0
  %2219 = vmatpush1.xpose.msra.mxu0 0.0
  %2220 = vmatprep.subr.mxu0 0.0
  %2221 = vmatpush1.xpose.msra.mxu0 0.0
  %2222 = vmatprep.subr.mxu0 0.0
  %2223 = vmatpush1.xpose.msra.mxu0 0.0
  %2224 = vmatprep.subr.mxu0 0.0
  %2225 = vmatpush1.xpose.msra.mxu0 0.0
  %2226 = vmatprep.subr.mxu0 0.0
  %2227 = vmatpush1.xpose.msra.mxu0 0.0
  %2228 = vmatprep.subr.mxu0 0.0
  %2229 = vmatpush1.xpose.msra.mxu0 0.0
  %2230 = vmatprep.subr.mxu0 0.0
  %2231 = vmatpush1.xpose.msra.mxu0 0.0
  %2232 = vmatprep.subr.mxu0 0.0
  %2233 = vmatpush1.xpose.msra.mxu0 0.0
  %2234 = vmatprep.subr.mxu0 0.0
  %2235 = vmatpush1.xpose.msra.mxu0 0.0
  %2236 = vmatprep.subr.mxu0 0.0
  %2237 = vmatpush1.xpose.msra.mxu0 0.0
  %2238 = vmatprep.subr.mxu0 0.0
  %2239 = vmatpush1.xpose.msra.mxu0 0.0
  %2240 = vmatprep.subr.mxu0 0.0
  %2241 = vmatpush1.xpose.msra.mxu0 0.0
  %2242 = vmatprep.subr.mxu0 0.0
  %2243 = vmatpush1.xpose.msra.mxu0 0.0
  %2244 = vmatprep.subr.mxu0 0.0
  %2245 = vmatpush1.xpose.msra.mxu0 0.0
  %2246 = vmatprep.subr.mxu0 0.0
  %2247 = vmatpush1.xpose.msra.mxu0 0.0
  %2248 = vmatprep.subr.mxu0 0.0
  %2249 = vmatpush1.xpose.msra.mxu0 0.0
  %2250 = vmatprep.subr.mxu0 0.0
  %2251 = vmatpush1.xpose.msra.mxu0 0.0
  %2252 = vmatprep.subr.mxu0 0.0
  %2253 = vmatpush1.xpose.msra.mxu0 0.0
  %2254 = vmatprep.subr.mxu0 0.0
  %2255 = vmatpush1.xpose.msra.mxu0 0.0
  %2256 = vmatprep.subr.mxu0 0.0
  %2257 = vmatpush1.xpose.msra.mxu0 0.0
  %2258 = vmatprep.subr.mxu0 0.0
  %2259 = vmatpush1.xpose.msra.mxu0 0.0
  %2260 = vmatprep.subr.mxu0 0.0
  %2261 = vmatpush1.xpose.msra.mxu0 0.0
  %2262 = vmatprep.subr.mxu0 0.0
  %2263 = vmatpush1.xpose.msra.mxu0 0.0
  %2264 = vmatprep.subr.mxu0 0.0
  %2265 = vmatpush1.xpose.msra.mxu0 0.0
  %2266 = vmatprep.subr.mxu0 0.0
  %2267 = vmatpush1.xpose.msra.mxu0 0.0
  %2268 = vmatprep.subr.mxu0 0.0
  %2269 = vmatpush1.xpose.msra.mxu0 0.0
  %2270 = vmatprep.subr.mxu0 0.0
  %2271 = vmatpush1.xpose.msra.mxu0 0.0
  %2272 = vmatprep.subr.mxu0 0.0
  %2273 = vmatpush1.xpose.msra.mxu0 0.0
  %2274 = vmatprep.mubr.f32.mxu0 0.0
  %2275 = vmatmul.mubr.f32.gmra.mrb[0].mxu0 %v2206
  %v2276 = vpop.f32.mrb[0].mxu0
  %v2277 = vadd.f32 0.0, %v2276
  %v2278 = vpop.f32.mrb[0].mxu0
  %2279 = vdwg.mxu0
  %v2280 = vmul.f32 %v2277, 0.25
  %v2281 = vsel %vm417, %v2280, -inf
  %2282 = vmax.xlane.f32.xlu0 %v2281
  %v2283 = vpop.xlane.xlu0 %2282
  %v2284 = vsub.f32 %v2280, %v2283
  %v2285 = vmul.f32 %v2284, 1.442695
  %v2286 = vpow.pop %v2285
  %v2287 = vsel %vm417, %v2286, 0.0
  %2288 = vadd.xlane.f32.xlu0 %v2287
  %v2289 = vpop.xlane.xlu0 %2288
  %v2290 = vrcp.pop %v2289
  %v2291 = vmul.f32 %v2286, %v2290
  %2292 = vrot.lane.b32.xlu0 %v2203, 64
  %v2293 = vpop.permute.xlu0 %2292
  %v2295 = vsel %vm431, %v2291, 0
  %v2297 = vsel %vm435, %v2293, 0
  %2299 = vmatprep.subr.mxu0 0.0
  %2300 = vmatpush1.msra.mxu0 %v2297
  %2301 = vmatprep.subr.mxu0 0.0
  %2302 = vmatpush1.msra.mxu0 0.0
  %2303 = vmatprep.subr.mxu0 0.0
  %2304 = vmatpush1.msra.mxu0 0.0
  %2305 = vmatprep.subr.mxu0 0.0
  %2306 = vmatpush1.msra.mxu0 0.0
  %2307 = vmatprep.subr.mxu0 0.0
  %2308 = vmatpush1.msra.mxu0 0.0
  %2309 = vmatprep.subr.mxu0 0.0
  %2310 = vmatpush1.msra.mxu0 0.0
  %2311 = vmatprep.subr.mxu0 0.0
  %2312 = vmatpush1.msra.mxu0 0.0
  %2313 = vmatprep.subr.mxu0 0.0
  %2314 = vmatpush1.msra.mxu0 0.0
  %2315 = vmatprep.subr.mxu0 0.0
  %2316 = vmatpush1.msra.mxu0 0.0
  %2317 = vmatprep.subr.mxu0 0.0
  %2318 = vmatpush1.msra.mxu0 0.0
  %2319 = vmatprep.subr.mxu0 0.0
  %2320 = vmatpush1.msra.mxu0 0.0
  %2321 = vmatprep.subr.mxu0 0.0
  %2322 = vmatpush1.msra.mxu0 0.0
  %2323 = vmatprep.subr.mxu0 0.0
  %2324 = vmatpush1.msra.mxu0 0.0
  %2325 = vmatprep.subr.mxu0 0.0
  %2326 = vmatpush1.msra.mxu0 0.0
  %2327 = vmatprep.subr.mxu0 0.0
  %2328 = vmatpush1.msra.mxu0 0.0
  %2329 = vmatprep.subr.mxu0 0.0
  %2330 = vmatpush1.msra.mxu0 0.0
  %2331 = vmatprep.subr.mxu0 0.0
  %2332 = vmatpush1.msra.mxu0 0.0
  %2333 = vmatprep.subr.mxu0 0.0
  %2334 = vmatpush1.msra.mxu0 0.0
  %2335 = vmatprep.subr.mxu0 0.0
  %2336 = vmatpush1.msra.mxu0 0.0
  %2337 = vmatprep.subr.mxu0 0.0
  %2338 = vmatpush1.msra.mxu0 0.0
  %2339 = vmatprep.subr.mxu0 0.0
  %2340 = vmatpush1.msra.mxu0 0.0
  %2341 = vmatprep.subr.mxu0 0.0
  %2342 = vmatpush1.msra.mxu0 0.0
  %2343 = vmatprep.subr.mxu0 0.0
  %2344 = vmatpush1.msra.mxu0 0.0
  %2345 = vmatprep.subr.mxu0 0.0
  %2346 = vmatpush1.msra.mxu0 0.0
  %2347 = vmatprep.subr.mxu0 0.0
  %2348 = vmatpush1.msra.mxu0 0.0
  %2349 = vmatprep.subr.mxu0 0.0
  %2350 = vmatpush1.msra.mxu0 0.0
  %2351 = vmatprep.subr.mxu0 0.0
  %2352 = vmatpush1.msra.mxu0 0.0
  %2353 = vmatprep.subr.mxu0 0.0
  %2354 = vmatpush1.msra.mxu0 0.0
  %2355 = vmatprep.subr.mxu0 0.0
  %2356 = vmatpush1.msra.mxu0 0.0
  %2357 = vmatprep.subr.mxu0 0.0
  %2358 = vmatpush1.msra.mxu0 0.0
  %2359 = vmatprep.subr.mxu0 0.0
  %2360 = vmatpush1.msra.mxu0 0.0
  %2361 = vmatprep.subr.mxu0 0.0
  %2362 = vmatpush1.msra.mxu0 0.0
  %2363 = vmatprep.mubr.f32.mxu0 0.0
  %2364 = vmatmul.mubr.f32.gmra.mrb[0].mxu0 %v2295
  %v2365 = vpop.f32.mrb[0].mxu0
  %v2366 = vadd.f32 0.0, %v2365
  %v2367 = vpop.f32.mrb[0].mxu0
  %2368 = vdwg.mxu0
  %v2370 = vsel %vm341, %v2366, 0
  %2372 = vmatprep.subr.mxu0 0.0
  %2373 = vmatpush1.msra.mxu0 %v1706
  %2374 = vmatprep.subr.mxu0 0.0
  %2375 = vmatpush1.msra.mxu0 %v1707
  %2376 = vmatprep.subr.mxu0 0.0
  %2377 = vmatpush1.msra.mxu0 0.0
  %2378 = vmatprep.subr.mxu0 0.0
  %2379 = vmatpush1.msra.mxu0 0.0
  %2380 = vmatprep.subr.mxu0 0.0
  %2381 = vmatpush1.msra.mxu0 0.0
  %2382 = vmatprep.subr.mxu0 0.0
  %2383 = vmatpush1.msra.mxu0 0.0
  %2384 = vmatprep.subr.mxu0 0.0
  %2385 = vmatpush1.msra.mxu0 0.0
  %2386 = vmatprep.subr.mxu0 0.0
  %2387 = vmatpush1.msra.mxu0 0.0
  %2388 = vmatprep.subr.mxu0 0.0
  %2389 = vmatpush1.msra.mxu0 0.0
  %2390 = vmatprep.subr.mxu0 0.0
  %2391 = vmatpush1.msra.mxu0 0.0
  %2392 = vmatprep.subr.mxu0 0.0
  %2393 = vmatpush1.msra.mxu0 0.0
  %2394 = vmatprep.subr.mxu0 0.0
  %2395 = vmatpush1.msra.mxu0 0.0
  %2396 = vmatprep.subr.mxu0 0.0
  %2397 = vmatpush1.msra.mxu0 0.0
  %2398 = vmatprep.subr.mxu0 0.0
  %2399 = vmatpush1.msra.mxu0 0.0
  %2400 = vmatprep.subr.mxu0 0.0
  %2401 = vmatpush1.msra.mxu0 0.0
  %2402 = vmatprep.subr.mxu0 0.0
  %2403 = vmatpush1.msra.mxu0 0.0
  %2404 = vmatprep.subr.mxu0 0.0
  %2405 = vmatpush1.msra.mxu0 0.0
  %2406 = vmatprep.subr.mxu0 0.0
  %2407 = vmatpush1.msra.mxu0 0.0
  %2408 = vmatprep.subr.mxu0 0.0
  %2409 = vmatpush1.msra.mxu0 0.0
  %2410 = vmatprep.subr.mxu0 0.0
  %2411 = vmatpush1.msra.mxu0 0.0
  %2412 = vmatprep.subr.mxu0 0.0
  %2413 = vmatpush1.msra.mxu0 0.0
  %2414 = vmatprep.subr.mxu0 0.0
  %2415 = vmatpush1.msra.mxu0 0.0
  %2416 = vmatprep.subr.mxu0 0.0
  %2417 = vmatpush1.msra.mxu0 0.0
  %2418 = vmatprep.subr.mxu0 0.0
  %2419 = vmatpush1.msra.mxu0 0.0
  %2420 = vmatprep.subr.mxu0 0.0
  %2421 = vmatpush1.msra.mxu0 0.0
  %2422 = vmatprep.subr.mxu0 0.0
  %2423 = vmatpush1.msra.mxu0 0.0
  %2424 = vmatprep.subr.mxu0 0.0
  %2425 = vmatpush1.msra.mxu0 0.0
  %2426 = vmatprep.subr.mxu0 0.0
  %2427 = vmatpush1.msra.mxu0 0.0
  %2428 = vmatprep.subr.mxu0 0.0
  %2429 = vmatpush1.msra.mxu0 0.0
  %2430 = vmatprep.subr.mxu0 0.0
  %2431 = vmatpush1.msra.mxu0 0.0
  %2432 = vmatprep.subr.mxu0 0.0
  %2433 = vmatpush1.msra.mxu0 0.0
  %2434 = vmatprep.subr.mxu0 0.0
  %2435 = vmatpush1.msra.mxu0 0.0
  %2436 = vmatprep.mubr.f32.mxu0 0.0
  %2437 = vmatmul.mubr.f32.gmra.mrb[0].mxu0 %v2370
  %v2438 = vpop.f32.mrb[0].mxu0
  %v2439 = vadd.f32 0.0, %v2438
  %v2440 = vpop.f32.mrb[0].mxu0
  %2441 = vdwg.mxu0
  %v2442 = vadd.f32 %v1955, %v2439
  %2443 = vrot.lane.b32.xlu0 %v2203, 112
  %v2444 = vpop.permute.xlu0 %2443
  %2445 = vrot.lane.b32.xlu0 %v2203, 80
  %v2446 = vpop.permute.xlu0 %2445
  %v2447 = vsel %vm341, %v2444, 0
  %v2449 = vsel %vm341, %v2446, 0
  %2451 = vmatprep.subr.mxu0 0.0
  %2452 = vmatpush1.xpose.msra.mxu0 %v2449
  %2453 = vmatprep.subr.mxu0 0.0
  %2454 = vmatpush1.xpose.msra.mxu0 0.0
  %2455 = vmatprep.subr.mxu0 0.0
  %2456 = vmatpush1.xpose.msra.mxu0 0.0
  %2457 = vmatprep.subr.mxu0 0.0
  %2458 = vmatpush1.xpose.msra.mxu0 0.0
  %2459 = vmatprep.subr.mxu0 0.0
  %2460 = vmatpush1.xpose.msra.mxu0 0.0
  %2461 = vmatprep.subr.mxu0 0.0
  %2462 = vmatpush1.xpose.msra.mxu0 0.0
  %2463 = vmatprep.subr.mxu0 0.0
  %2464 = vmatpush1.xpose.msra.mxu0 0.0
  %2465 = vmatprep.subr.mxu0 0.0
  %2466 = vmatpush1.xpose.msra.mxu0 0.0
  %2467 = vmatprep.subr.mxu0 0.0
  %2468 = vmatpush1.xpose.msra.mxu0 0.0
  %2469 = vmatprep.subr.mxu0 0.0
  %2470 = vmatpush1.xpose.msra.mxu0 0.0
  %2471 = vmatprep.subr.mxu0 0.0
  %2472 = vmatpush1.xpose.msra.mxu0 0.0
  %2473 = vmatprep.subr.mxu0 0.0
  %2474 = vmatpush1.xpose.msra.mxu0 0.0
  %2475 = vmatprep.subr.mxu0 0.0
  %2476 = vmatpush1.xpose.msra.mxu0 0.0
  %2477 = vmatprep.subr.mxu0 0.0
  %2478 = vmatpush1.xpose.msra.mxu0 0.0
  %2479 = vmatprep.subr.mxu0 0.0
  %2480 = vmatpush1.xpose.msra.mxu0 0.0
  %2481 = vmatprep.subr.mxu0 0.0
  %2482 = vmatpush1.xpose.msra.mxu0 0.0
  %2483 = vmatprep.subr.mxu0 0.0
  %2484 = vmatpush1.xpose.msra.mxu0 0.0
  %2485 = vmatprep.subr.mxu0 0.0
  %2486 = vmatpush1.xpose.msra.mxu0 0.0
  %2487 = vmatprep.subr.mxu0 0.0
  %2488 = vmatpush1.xpose.msra.mxu0 0.0
  %2489 = vmatprep.subr.mxu0 0.0
  %2490 = vmatpush1.xpose.msra.mxu0 0.0
  %2491 = vmatprep.subr.mxu0 0.0
  %2492 = vmatpush1.xpose.msra.mxu0 0.0
  %2493 = vmatprep.subr.mxu0 0.0
  %2494 = vmatpush1.xpose.msra.mxu0 0.0
  %2495 = vmatprep.subr.mxu0 0.0
  %2496 = vmatpush1.xpose.msra.mxu0 0.0
  %2497 = vmatprep.subr.mxu0 0.0
  %2498 = vmatpush1.xpose.msra.mxu0 0.0
  %2499 = vmatprep.subr.mxu0 0.0
  %2500 = vmatpush1.xpose.msra.mxu0 0.0
  %2501 = vmatprep.subr.mxu0 0.0
  %2502 = vmatpush1.xpose.msra.mxu0 0.0
  %2503 = vmatprep.subr.mxu0 0.0
  %2504 = vmatpush1.xpose.msra.mxu0 0.0
  %2505 = vmatprep.subr.mxu0 0.0
  %2506 = vmatpush1.xpose.msra.mxu0 0.0
  %2507 = vmatprep.subr.mxu0 0.0
  %2508 = vmatpush1.xpose.msra.mxu0 0.0
  %2509 = vmatprep.subr.mxu0 0.0
  %2510 = vmatpush1.xpose.msra.mxu0 0.0
  %2511 = vmatprep.subr.mxu0 0.0
  %2512 = vmatpush1.xpose.msra.mxu0 0.0
  %2513 = vmatprep.subr.mxu0 0.0
  %2514 = vmatpush1.xpose.msra.mxu0 0.0
  %2515 = vmatprep.mubr.f32.mxu0 0.0
  %2516 = vmatmul.mubr.f32.gmra.mrb[0].mxu0 %v2447
  %v2517 = vpop.f32.mrb[0].mxu0
  %v2518 = vadd.f32 0.0, %v2517
  %v2519 = vpop.f32.mrb[0].mxu0
  %2520 = vdwg.mxu0
  %v2521 = vmul.f32 %v2518, 0.25
  %v2522 = vsel %vm417, %v2521, -inf
  %2523 = vmax.xlane.f32.xlu0 %v2522
  %v2524 = vpop.xlane.xlu0 %2523
  %v2525 = vsub.f32 %v2521, %v2524
  %v2526 = vmul.f32 %v2525, 1.442695
  %v2527 = vpow.pop %v2526
  %v2528 = vsel %vm417, %v2527, 0.0
  %2529 = vadd.xlane.f32.xlu0 %v2528
  %v2530 = vpop.xlane.xlu0 %2529
  %v2531 = vrcp.pop %v2530
  %v2532 = vmul.f32 %v2527, %v2531
  %2533 = vrot.lane.b32.xlu0 %v2203, 48
  %v2534 = vpop.permute.xlu0 %2533
  %v2536 = vsel %vm431, %v2532, 0
  %v2538 = vsel %vm435, %v2534, 0
  %2540 = vmatprep.subr.mxu0 0.0
  %2541 = vmatpush1.msra.mxu0 %v2538
  %2542 = vmatprep.subr.mxu0 0.0
  %2543 = vmatpush1.msra.mxu0 0.0
  %2544 = vmatprep.subr.mxu0 0.0
  %2545 = vmatpush1.msra.mxu0 0.0
  %2546 = vmatprep.subr.mxu0 0.0
  %2547 = vmatpush1.msra.mxu0 0.0
  %2548 = vmatprep.subr.mxu0 0.0
  %2549 = vmatpush1.msra.mxu0 0.0
  %2550 = vmatprep.subr.mxu0 0.0
  %2551 = vmatpush1.msra.mxu0 0.0
  %2552 = vmatprep.subr.mxu0 0.0
  %2553 = vmatpush1.msra.mxu0 0.0
  %2554 = vmatprep.subr.mxu0 0.0
  %2555 = vmatpush1.msra.mxu0 0.0
  %2556 = vmatprep.subr.mxu0 0.0
  %2557 = vmatpush1.msra.mxu0 0.0
  %2558 = vmatprep.subr.mxu0 0.0
  %2559 = vmatpush1.msra.mxu0 0.0
  %2560 = vmatprep.subr.mxu0 0.0
  %2561 = vmatpush1.msra.mxu0 0.0
  %2562 = vmatprep.subr.mxu0 0.0
  %2563 = vmatpush1.msra.mxu0 0.0
  %2564 = vmatprep.subr.mxu0 0.0
  %2565 = vmatpush1.msra.mxu0 0.0
  %2566 = vmatprep.subr.mxu0 0.0
  %2567 = vmatpush1.msra.mxu0 0.0
  %2568 = vmatprep.subr.mxu0 0.0
  %2569 = vmatpush1.msra.mxu0 0.0
  %2570 = vmatprep.subr.mxu0 0.0
  %2571 = vmatpush1.msra.mxu0 0.0
  %2572 = vmatprep.subr.mxu0 0.0
  %2573 = vmatpush1.msra.mxu0 0.0
  %2574 = vmatprep.subr.mxu0 0.0
  %2575 = vmatpush1.msra.mxu0 0.0
  %2576 = vmatprep.subr.mxu0 0.0
  %2577 = vmatpush1.msra.mxu0 0.0
  %2578 = vmatprep.subr.mxu0 0.0
  %2579 = vmatpush1.msra.mxu0 0.0
  %2580 = vmatprep.subr.mxu0 0.0
  %2581 = vmatpush1.msra.mxu0 0.0
  %2582 = vmatprep.subr.mxu0 0.0
  %2583 = vmatpush1.msra.mxu0 0.0
  %2584 = vmatprep.subr.mxu0 0.0
  %2585 = vmatpush1.msra.mxu0 0.0
  %2586 = vmatprep.subr.mxu0 0.0
  %2587 = vmatpush1.msra.mxu0 0.0
  %2588 = vmatprep.subr.mxu0 0.0
  %2589 = vmatpush1.msra.mxu0 0.0
  %2590 = vmatprep.subr.mxu0 0.0
  %2591 = vmatpush1.msra.mxu0 0.0
  %2592 = vmatprep.subr.mxu0 0.0
  %2593 = vmatpush1.msra.mxu0 0.0
  %2594 = vmatprep.subr.mxu0 0.0
  %2595 = vmatpush1.msra.mxu0 0.0
  %2596 = vmatprep.subr.mxu0 0.0
  %2597 = vmatpush1.msra.mxu0 0.0
  %2598 = vmatprep.subr.mxu0 0.0
  %2599 = vmatpush1.msra.mxu0 0.0
  %2600 = vmatprep.subr.mxu0 0.0
  %2601 = vmatpush1.msra.mxu0 0.0
  %2602 = vmatprep.subr.mxu0 0.0
  %2603 = vmatpush1.msra.mxu0 0.0
  %2604 = vmatprep.mubr.f32.mxu0 0.0
  %2605 = vmatmul.mubr.f32.gmra.mrb[0].mxu0 %v2536
  %v2606 = vpop.f32.mrb[0].mxu0
  %v2607 = vadd.f32 0.0, %v2606
  %v2608 = vpop.f32.mrb[0].mxu0
  %2609 = vdwg.mxu0
  %v2611 = vsel %vm341, %v2607, 0
  %2613 = vmatprep.subr.mxu0 0.0
  %2614 = vmatpush1.msra.mxu0 %v1708
  %2615 = vmatprep.subr.mxu0 0.0
  %2616 = vmatpush1.msra.mxu0 %v1709
  %2617 = vmatprep.subr.mxu0 0.0
  %2618 = vmatpush1.msra.mxu0 0.0
  %2619 = vmatprep.subr.mxu0 0.0
  %2620 = vmatpush1.msra.mxu0 0.0
  %2621 = vmatprep.subr.mxu0 0.0
  %2622 = vmatpush1.msra.mxu0 0.0
  %2623 = vmatprep.subr.mxu0 0.0
  %2624 = vmatpush1.msra.mxu0 0.0
  %2625 = vmatprep.subr.mxu0 0.0
  %2626 = vmatpush1.msra.mxu0 0.0
  %2627 = vmatprep.subr.mxu0 0.0
  %2628 = vmatpush1.msra.mxu0 0.0
  %2629 = vmatprep.subr.mxu0 0.0
  %2630 = vmatpush1.msra.mxu0 0.0
  %2631 = vmatprep.subr.mxu0 0.0
  %2632 = vmatpush1.msra.mxu0 0.0
  %2633 = vmatprep.subr.mxu0 0.0
  %2634 = vmatpush1.msra.mxu0 0.0
  %2635 = vmatprep.subr.mxu0 0.0
  %2636 = vmatpush1.msra.mxu0 0.0
  %2637 = vmatprep.subr.mxu0 0.0
  %2638 = vmatpush1.msra.mxu0 0.0
  %2639 = vmatprep.subr.mxu0 0.0
  %2640 = vmatpush1.msra.mxu0 0.0
  %2641 = vmatprep.subr.mxu0 0.0
  %2642 = vmatpush1.msra.mxu0 0.0
  %2643 = vmatprep.subr.mxu0 0.0
  %2644 = vmatpush1.msra.mxu0 0.0
  %2645 = vmatprep.subr.mxu0 0.0
  %2646 = vmatpush1.msra.mxu0 0.0
  %2647 = vmatprep.subr.mxu0 0.0
  %2648 = vmatpush1.msra.mxu0 0.0
  %2649 = vmatprep.subr.mxu0 0.0
  %2650 = vmatpush1.msra.mxu0 0.0
  %2651 = vmatprep.subr.mxu0 0.0
  %2652 = vmatpush1.msra.mxu0 0.0
  %2653 = vmatprep.subr.mxu0 0.0
  %2654 = vmatpush1.msra.mxu0 0.0
  %2655 = vmatprep.subr.mxu0 0.0
  %2656 = vmatpush1.msra.mxu0 0.0
  %2657 = vmatprep.subr.mxu0 0.0
  %2658 = vmatpush1.msra.mxu0 0.0
  %2659 = vmatprep.subr.mxu0 0.0
  %2660 = vmatpush1.msra.mxu0 0.0
  %2661 = vmatprep.subr.mxu0 0.0
  %2662 = vmatpush1.msra.mxu0 0.0
  %2663 = vmatprep.subr.mxu0 0.0
  %2664 = vmatpush1.msra.mxu0 0.0
  %2665 = vmatprep.subr.mxu0 0.0
  %2666 = vmatpush1.msra.mxu0 0.0
  %2667 = vmatprep.subr.mxu0 0.0
  %2668 = vmatpush1.msra.mxu0 0.0
  %2669 = vmatprep.subr.mxu0 0.0
  %2670 = vmatpush1.msra.mxu0 0.0
  %2671 = vmatprep.subr.mxu0 0.0
  %2672 = vmatpush1.msra.mxu0 0.0
  %2673 = vmatprep.subr.mxu0 0.0
  %2674 = vmatpush1.msra.mxu0 0.0
  %2675 = vmatprep.subr.mxu0 0.0
  %2676 = vmatpush1.msra.mxu0 0.0
  %2677 = vmatprep.mubr.f32.mxu0 0.0
  %2678 = vmatmul.mubr.f32.gmra.mrb[0].mxu0 %v2611
  %v2679 = vpop.f32.mrb[0].mxu0
  %v2680 = vadd.f32 0.0, %v2679
  %v2681 = vpop.f32.mrb[0].mxu0
  %2682 = vdwg.mxu0
  %v2683 = vadd.f32 %v2442, %v2680
  %2684 = vst.msk [vmem:[#allocation2 + $0x5] sm:$0x1f] %vm829, %v2683
  %v2685 = vld [vmem:[#allocation2] sm:$0xff]
  %v2686 = vld [vmem:[#allocation2 + $0x8] sm:$0x3]
  %v2687 = vadd.f32 %v1563, %v2685
  %v2688 = vadd.f32 %v1564, %v2686
  %s2689 = scalar_lea.vmem %s11, 1
  %v2690 = vld [vmem:[%s2689] sm:$0x1]
  %s2691 = scalar_lea.vmem %s12, 1
  %v2692 = vld [vmem:[%s2691] sm:$0x1]
  %v2693 = vsel %vm196, %v2687, 0.0
  %2694 = vadd.xlane.f32.xlu0 %v2693
  %v2695 = vpop.xlane.xlu0 %2694
  %v2696 = vsel %vm200, %v2688, 0.0
  %2697 = vadd.xlane.f32.xlu0 %v2696
  %v2698 = vpop.xlane.xlu0 %2697
  %v2699 = vmul.f32 %v2695, %v204
  %v2700 = vmul.f32 %v2698, %v204
  %v2701 = vsub.f32 %v2687, %v2699
  %v2702 = vsub.f32 %v2688, %v2700
  %v2703 = vmul.f32 %v2701, %v2701
  %v2704 = vmul.f32 %v2702, %v2702
  %v2705 = vsel %vm196, %v2703, 0.0
  %2706 = vadd.xlane.f32.xlu0 %v2705
  %v2707 = vpop.xlane.xlu0 %2706
  %v2708 = vsel %vm200, %v2704, 0.0
  %2709 = vadd.xlane.f32.xlu0 %v2708
  %v2710 = vpop.xlane.xlu0 %2709
  %v2711 = vmul.f32 %v2707, %v204
  %v2712 = vmul.f32 %v2710, %v204
  %v2713 = vadd.f32 %v2711, 1e-12
  %v2714 = vadd.f32 %v2712, 1e-12
  %v2715 = vrsqrt.pop %v2713
  %v2716 = vrsqrt.pop %v2714
  %v2717 = vmul.f32 %v2701, %v2715
  %v2718 = vmul.f32 %v2702, %v2716
  %v2720 = vlaneseq
  %v2721 = vshrl.u32 %v2720, 7
  %v2722 = vsub.s32 0, %v2721
  %v2723 = vrot.slane %v2690, %v2722
  %v2725 = vmul.f32 %v2717, %v2723
  %v2726 = vmul.f32 %v2718, %v2723
  %v2728 = vlaneseq
  %v2729 = vshrl.u32 %v2728, 7
  %v2730 = vsub.s32 0, %v2729
  %v2731 = vrot.slane %v2692, %v2730
  %v2733 = vadd.f32 %v2725, %v2731
  %v2734 = vadd.f32 %v2726, %v2731
  %s2735 = scalar_lea.vmem %s13, 32
  %v2736 = vld [vmem:[%s2735] sm:$0xff]
  %v2737 = vld [vmem:[%s2735 + $0x8] sm:$0xff]
  %v2738 = vld [vmem:[%s2735 + $0x10] sm:$0xff]
  %v2739 = vld [vmem:[%s2735 + $0x18] sm:$0xff]
  %s2740 = scalar_lea.vmem %s14, 1
  %v2741 = vld [vmem:[%s2740] sm:$0x1]
  %v2743 = vlaneseq
  %v2744 = vshrl.u32 %v2743, 7
  %v2745 = vsub.s32 0, %v2744
  %v2746 = vrot.slane %v2741, %v2745
  %v2749 = vsel %vm196, %v2733, 0
  %v2752 = vsel %vm196, %v2734, 0
  %2754 = vmatprep.subr.mxu0 0.0
  %2755 = vmatpush1.msra.mxu0 %v2736
  %2756 = vmatprep.subr.mxu0 0.0
  %2757 = vmatpush1.msra.mxu0 %v2737
  %2758 = vmatprep.subr.mxu0 0.0
  %2759 = vmatpush1.msra.mxu0 %v2738
  %2760 = vmatprep.subr.mxu0 0.0
  %2761 = vmatpush1.msra.mxu0 %v2739
  %2762 = vmatprep.subr.mxu0 0.0
  %2763 = vmatpush1.msra.mxu0 0.0
  %2764 = vmatprep.subr.mxu0 0.0
  %2765 = vmatpush1.msra.mxu0 0.0
  %2766 = vmatprep.subr.mxu0 0.0
  %2767 = vmatpush1.msra.mxu0 0.0
  %2768 = vmatprep.subr.mxu0 0.0
  %2769 = vmatpush1.msra.mxu0 0.0
  %2770 = vmatprep.subr.mxu0 0.0
  %2771 = vmatpush1.msra.mxu0 0.0
  %2772 = vmatprep.subr.mxu0 0.0
  %2773 = vmatpush1.msra.mxu0 0.0
  %2774 = vmatprep.subr.mxu0 0.0
  %2775 = vmatpush1.msra.mxu0 0.0
  %2776 = vmatprep.subr.mxu0 0.0
  %2777 = vmatpush1.msra.mxu0 0.0
  %2778 = vmatprep.subr.mxu0 0.0
  %2779 = vmatpush1.msra.mxu0 0.0
  %2780 = vmatprep.subr.mxu0 0.0
  %2781 = vmatpush1.msra.mxu0 0.0
  %2782 = vmatprep.subr.mxu0 0.0
  %2783 = vmatpush1.msra.mxu0 0.0
  %2784 = vmatprep.subr.mxu0 0.0
  %2785 = vmatpush1.msra.mxu0 0.0
  %2786 = vmatprep.subr.mxu0 0.0
  %2787 = vmatpush1.msra.mxu0 0.0
  %2788 = vmatprep.subr.mxu0 0.0
  %2789 = vmatpush1.msra.mxu0 0.0
  %2790 = vmatprep.subr.mxu0 0.0
  %2791 = vmatpush1.msra.mxu0 0.0
  %2792 = vmatprep.subr.mxu0 0.0
  %2793 = vmatpush1.msra.mxu0 0.0
  %2794 = vmatprep.subr.mxu0 0.0
  %2795 = vmatpush1.msra.mxu0 0.0
  %2796 = vmatprep.subr.mxu0 0.0
  %2797 = vmatpush1.msra.mxu0 0.0
  %2798 = vmatprep.subr.mxu0 0.0
  %2799 = vmatpush1.msra.mxu0 0.0
  %2800 = vmatprep.subr.mxu0 0.0
  %2801 = vmatpush1.msra.mxu0 0.0
  %2802 = vmatprep.subr.mxu0 0.0
  %2803 = vmatpush1.msra.mxu0 0.0
  %2804 = vmatprep.subr.mxu0 0.0
  %2805 = vmatpush1.msra.mxu0 0.0
  %2806 = vmatprep.subr.mxu0 0.0
  %2807 = vmatpush1.msra.mxu0 0.0
  %2808 = vmatprep.subr.mxu0 0.0
  %2809 = vmatpush1.msra.mxu0 0.0
  %2810 = vmatprep.subr.mxu0 0.0
  %2811 = vmatpush1.msra.mxu0 0.0
  %2812 = vmatprep.subr.mxu0 0.0
  %2813 = vmatpush1.msra.mxu0 0.0
  %2814 = vmatprep.subr.mxu0 0.0
  %2815 = vmatpush1.msra.mxu0 0.0
  %2816 = vmatprep.subr.mxu0 0.0
  %2817 = vmatpush1.msra.mxu0 0.0
  %2818 = vmatprep.mubr.f32.mxu0 0.0
  %2819 = vmatmul.mubr.f32.gmra.mrb[0].mxu0 %v2749
  %v2820 = vpop.f32.mrb[0].mxu0
  %v2821 = vadd.f32 %v2746, %v2820
  %v2822 = vpop.f32.mrb[0].mxu0
  %2823 = vmatprep.mubr.f32.mxu0 0.0
  %2824 = vmatmul.mubr.f32.gmra.mrb[0].mxu0 %v2752
  %v2825 = vpop.f32.mrb[0].mxu0
  %v2826 = vadd.f32 %v2746, %v2825
  %v2827 = vpop.f32.mrb[0].mxu0
  %2828 = vdwg.mxu0
  %v2829 = vmul.f32 %v2821, 0.5
  %v2830 = vmul.f32 %v2826, 0.5
  %v2831 = vmul.f32 %v2821, 0.70710677
  %v2832 = vmul.f32 %v2826, 0.70710677
  %v2833 = verf.f32.pop %v2831
  %v2834 = verf.f32.pop %v2832
  %v2835 = vadd.f32 %v2833, 1.0
  %v2836 = vadd.f32 %v2834, 1.0
  %v2837 = vmul.f32 %v2829, %v2835
  %v2838 = vmul.f32 %v2830, %v2836
  %s2839 = scalar_lea.vmem %s15, 64
  %v2840 = vld [vmem:[%s2839] sm:$0xff]
  %v2841 = vld [vmem:[%s2839 + $0x8] sm:$0xff]
  %v2842 = vld [vmem:[%s2839 + $0x10] sm:$0xff]
  %v2843 = vld [vmem:[%s2839 + $0x18] sm:$0xff]
  %v2844 = vld [vmem:[%s2839 + $0x20] sm:$0xff]
  %v2845 = vld [vmem:[%s2839 + $0x28] sm:$0xff]
  %v2846 = vld [vmem:[%s2839 + $0x30] sm:$0xff]
  %v2847 = vld [vmem:[%s2839 + $0x38] sm:$0xff]
  %s2848 = scalar_lea.vmem %s16, 1
  %v2849 = vld [vmem:[%s2848] sm:$0x1]
  %v2851 = vlaneseq
  %v2852 = vshrl.u32 %v2851, 7
  %v2853 = vsub.s32 0, %v2852
  %v2854 = vrot.slane %v2849, %v2853
  %v2857 = vsel %vm101, %v2837, 0
  %v2860 = vsel %vm101, %v2838, 0
  %2862 = vmatprep.subr.mxu0 0.0
  %2863 = vmatpush1.msra.mxu0 %v2840
  %2864 = vmatprep.subr.mxu0 0.0
  %2865 = vmatpush1.msra.mxu0 %v2841
  %2866 = vmatprep.subr.mxu0 0.0
  %2867 = vmatpush1.msra.mxu0 %v2842
  %2868 = vmatprep.subr.mxu0 0.0
  %2869 = vmatpush1.msra.mxu0 %v2843
  %2870 = vmatprep.subr.mxu0 0.0
  %2871 = vmatpush1.msra.mxu0 %v2844
  %2872 = vmatprep.subr.mxu0 0.0
  %2873 = vmatpush1.msra.mxu0 %v2845
  %2874 = vmatprep.subr.mxu0 0.0
  %2875 = vmatpush1.msra.mxu0 %v2846
  %2876 = vmatprep.subr.mxu0 0.0
  %2877 = vmatpush1.msra.mxu0 %v2847
  %2878 = vmatprep.subr.mxu0 0.0
  %2879 = vmatpush1.msra.mxu0 0.0
  %2880 = vmatprep.subr.mxu0 0.0
  %2881 = vmatpush1.msra.mxu0 0.0
  %2882 = vmatprep.subr.mxu0 0.0
  %2883 = vmatpush1.msra.mxu0 0.0
  %2884 = vmatprep.subr.mxu0 0.0
  %2885 = vmatpush1.msra.mxu0 0.0
  %2886 = vmatprep.subr.mxu0 0.0
  %2887 = vmatpush1.msra.mxu0 0.0
  %2888 = vmatprep.subr.mxu0 0.0
  %2889 = vmatpush1.msra.mxu0 0.0
  %2890 = vmatprep.subr.mxu0 0.0
  %2891 = vmatpush1.msra.mxu0 0.0
  %2892 = vmatprep.subr.mxu0 0.0
  %2893 = vmatpush1.msra.mxu0 0.0
  %2894 = vmatprep.subr.mxu0 0.0
  %2895 = vmatpush1.msra.mxu0 0.0
  %2896 = vmatprep.subr.mxu0 0.0
  %2897 = vmatpush1.msra.mxu0 0.0
  %2898 = vmatprep.subr.mxu0 0.0
  %2899 = vmatpush1.msra.mxu0 0.0
  %2900 = vmatprep.subr.mxu0 0.0
  %2901 = vmatpush1.msra.mxu0 0.0
  %2902 = vmatprep.subr.mxu0 0.0
  %2903 = vmatpush1.msra.mxu0 0.0
  %2904 = vmatprep.subr.mxu0 0.0
  %2905 = vmatpush1.msra.mxu0 0.0
  %2906 = vmatprep.subr.mxu0 0.0
  %2907 = vmatpush1.msra.mxu0 0.0
  %2908 = vmatprep.subr.mxu0 0.0
  %2909 = vmatpush1.msra.mxu0 0.0
  %2910 = vmatprep.subr.mxu0 0.0
  %2911 = vmatpush1.msra.mxu0 0.0
  %2912 = vmatprep.subr.mxu0 0.0
  %2913 = vmatpush1.msra.mxu0 0.0
  %2914 = vmatprep.subr.mxu0 0.0
  %2915 = vmatpush1.msra.mxu0 0.0
  %2916 = vmatprep.subr.mxu0 0.0
  %2917 = vmatpush1.msra.mxu0 0.0
  %2918 = vmatprep.subr.mxu0 0.0
  %2919 = vmatpush1.msra.mxu0 0.0
  %2920 = vmatprep.subr.mxu0 0.0
  %2921 = vmatpush1.msra.mxu0 0.0
  %2922 = vmatprep.subr.mxu0 0.0
  %2923 = vmatpush1.msra.mxu0 0.0
  %2924 = vmatprep.subr.mxu0 0.0
  %2925 = vmatpush1.msra.mxu0 0.0
  %2926 = vmatprep.mubr.f32.mxu0 0.0
  %2927 = vmatmul.mubr.f32.gmra.mrb[0].mxu0 %v2857
  %v2928 = vpop.f32.mrb[0].mxu0
  %v2929 = vadd.f32 %v2854, %v2928
  %v2930 = vpop.f32.mrb[0].mxu0
  %2931 = vmatprep.mubr.f32.mxu0 0.0
  %2932 = vmatmul.mubr.f32.gmra.mrb[0].mxu0 %v2860
  %v2933 = vpop.f32.mrb[0].mxu0
  %v2934 = vpop.f32.mrb[0].mxu0
  %2935 = vdwg.mxu0
  %v2936 = vadd.f32 %v2687, %v2929
  %v2937 = vld [vmem:[%s17] sm:$0x1]
  %v2938 = vld [vmem:[%s18] sm:$0x1]
  %v2939 = vsel %vm196, %v2936, 0.0
  %2940 = vadd.xlane.f32.xlu0 %v2939
  %v2941 = vpop.xlane.xlu0 %2940
  %v2942 = vmul.f32 %v2941, %v204
  %v2943 = vsub.f32 %v2936, %v2942
  %v2944 = vmul.f32 %v2943, %v2943
  %v2945 = vsel %vm196, %v2944, 0.0
  %2946 = vadd.xlane.f32.xlu0 %v2945
  %v2947 = vpop.xlane.xlu0 %2946
  %v2948 = vmul.f32 %v2947, %v204
  %v2949 = vadd.f32 %v2948, 1e-12
  %v2950 = vrsqrt.pop %v2949
  %v2951 = vmul.f32 %v2943, %v2950
  %v2953 = vlaneseq
  %v2954 = vshrl.u32 %v2953, 7
  %v2955 = vsub.s32 0, %v2954
  %v2956 = vrot.slane %v2937, %v2955
  %v2958 = vmul.f32 %v2951, %v2956
  %v2960 = vlaneseq
  %v2961 = vshrl.u32 %v2960, 7
  %v2962 = vsub.s32 0, %v2961
  %v2963 = vrot.slane %v2938, %v2962
  %v2965 = vadd.f32 %v2958, %v2963
  %2966 = vst.msk [vmem:[#allocation3] sm:$0xff] %vm196, 0.0
  %2967 = vst.msk [vmem:[#allocation3] sm:$0x1] %vm178, %v2965
  %vm2968 = vcmask 259077
  %2969 = vst.msk [vmem:[#allocation3 - $0x4] sm:$0x20] %vm2968, %v2965
  %v2970 = vld [vmem:[#allocation3] sm:$0xff]
  %v2971 = vld [vmem:[%s19] sm:$0xff]
  %v2972 = vld [vmem:[%s19 + $0x8] sm:$0xff]
  %v2973 = vld [vmem:[%s19 + $0x10] sm:$0xff]
  %v2974 = vld [vmem:[%s19 + $0x18] sm:$0xff]
  %v2975 = vld [vmem:[%s20] sm:$0x1]
  %v2977 = vlaneseq
  %v2978 = vshrl.u32 %v2977, 7
  %v2979 = vsub.s32 0, %v2978
  %v2980 = vrot.slane %v2975, %v2979
  %v2983 = vsel %vm196, %v2970, 0
  %2985 = vmatprep.subr.mxu0 0.0
  %2986 = vmatpush1.msra.mxu0 %v2971
  %2987 = vmatprep.subr.mxu0 0.0
  %2988 = vmatpush1.msra.mxu0 %v2972
  %2989 = vmatprep.subr.mxu0 0.0
  %2990 = vmatpush1.msra.mxu0 %v2973
  %2991 = vmatprep.subr.mxu0 0.0
  %2992 = vmatpush1.msra.mxu0 %v2974
  %2993 = vmatprep.subr.mxu0 0.0
  %2994 = vmatpush1.msra.mxu0 0.0
  %2995 = vmatprep.subr.mxu0 0.0
  %2996 = vmatpush1.msra.mxu0 0.0
  %2997 = vmatprep.subr.mxu0 0.0
  %2998 = vmatpush1.msra.mxu0 0.0
  %2999 = vmatprep.subr.mxu0 0.0
  %3000 = vmatpush1.msra.mxu0 0.0
  %3001 = vmatprep.subr.mxu0 0.0
  %3002 = vmatpush1.msra.mxu0 0.0
  %3003 = vmatprep.subr.mxu0 0.0
  %3004 = vmatpush1.msra.mxu0 0.0
  %3005 = vmatprep.subr.mxu0 0.0
  %3006 = vmatpush1.msra.mxu0 0.0
  %3007 = vmatprep.subr.mxu0 0.0
  %3008 = vmatpush1.msra.mxu0 0.0
  %3009 = vmatprep.subr.mxu0 0.0
  %3010 = vmatpush1.msra.mxu0 0.0
  %3011 = vmatprep.subr.mxu0 0.0
  %3012 = vmatpush1.msra.mxu0 0.0
  %3013 = vmatprep.subr.mxu0 0.0
  %3014 = vmatpush1.msra.mxu0 0.0
  %3015 = vmatprep.subr.mxu0 0.0
  %3016 = vmatpush1.msra.mxu0 0.0
  %3017 = vmatprep.subr.mxu0 0.0
  %3018 = vmatpush1.msra.mxu0 0.0
  %3019 = vmatprep.subr.mxu0 0.0
  %3020 = vmatpush1.msra.mxu0 0.0
  %3021 = vmatprep.subr.mxu0 0.0
  %3022 = vmatpush1.msra.mxu0 0.0
  %3023 = vmatprep.subr.mxu0 0.0
  %3024 = vmatpush1.msra.mxu0 0.0
  %3025 = vmatprep.subr.mxu0 0.0
  %3026 = vmatpush1.msra.mxu0 0.0
  %3027 = vmatprep.subr.mxu0 0.0
  %3028 = vmatpush1.msra.mxu0 0.0
  %3029 = vmatprep.subr.mxu0 0.0
  %3030 = vmatpush1.msra.mxu0 0.0
  %3031 = vmatprep.subr.mxu0 0.0
  %3032 = vmatpush1.msra.mxu0 0.0
  %3033 = vmatprep.subr.mxu0 0.0
  %3034 = vmatpush1.msra.mxu0 0.0
  %3035 = vmatprep.subr.mxu0 0.0
  %3036 = vmatpush1.msra.mxu0 0.0
  %3037 = vmatprep.subr.mxu0 0.0
  %3038 = vmatpush1.msra.mxu0 0.0
  %3039 = vmatprep.subr.mxu0 0.0
  %3040 = vmatpush1.msra.mxu0 0.0
  %3041 = vmatprep.subr.mxu0 0.0
  %3042 = vmatpush1.msra.mxu0 0.0
  %3043 = vmatprep.subr.mxu0 0.0
  %3044 = vmatpush1.msra.mxu0 0.0
  %3045 = vmatprep.subr.mxu0 0.0
  %3046 = vmatpush1.msra.mxu0 0.0
  %3047 = vmatprep.subr.mxu0 0.0
  %3048 = vmatpush1.msra.mxu0 0.0
  %3049 = vmatprep.mubr.f32.mxu0 0.0
  %3050 = vmatmul.mubr.f32.gmra.mrb[0].mxu0 %v2983
  %v3051 = vpop.f32.mrb[0].mxu0
  %v3052 = vadd.f32 %v2980, %v3051
  %v3053 = vpop.f32.mrb[0].mxu0
  %3054 = vdwg.mxu0
  %3055 = vst [vmem:[%s21] sm:$0xff] %v3052
  // Predicated region
  $region86: #{vit_forward.1} parent=0 // pred_check
    _
  $region87: #{vit_forward.1} parent=0 // pred_check_branch
    %3057 = sbr.rel (0) target = $region89
  $region88: #{vit_forward.1} parent=0 // pred_region
    _
  $region89: #{vit_forward.1} parent=0 // pred_fallthru
    _
  // Predicated region
  $region90: #{vit_forward.1} parent=0 // pred_check
    _
  $region91: #{vit_forward.1} parent=0 // pred_check_branch
    %3059 = sbr.rel (0) target = $region93
  $region92: #{vit_forward.1} parent=0 // pred_region
    _
  $region93: #{vit_forward.1} parent=0 // pred_fallthru
    _

</llo_original>
